<compile_context>
chip_gen: v7x
topology: tpu7x:2x2x1
jax: 0.10.0
libtpu: 0.0.40
codegen_flags: <defaults>
</compile_context>

<pallas_src>
import functools

import jax
import jax.numpy as jnp
from jax.experimental import pallas as pl
from jax.experimental.pallas import tpu as pltpu


EPS = 1e-5
SLOPE = 0.05
TM_MAX = 512                      # multiple of 16; audited to fit v7x's 64 MiB VMEM


def _round_up(x, m):
    return (x + m - 1) // m * m


def _vmem_limit_bytes():
    # Derive the scoped-VMEM budget from the actual chip so the same tiling is portable:
    #   v5e/v6e (128 MiB physical) -> 96 MiB; v7x (64 MiB physical) -> 48 MiB.
    try:
        cap = pltpu.get_tpu_info().vmem_capacity_bytes
    except Exception:
        cap = 64 * 1024 * 1024    # conservative fallback (v7x-sized)
    return min((cap * 3) // 4, 96 * 1024 * 1024)


# ----------------------------- Pallas kernels ------------------------------

def _matmul_stats_kernel(p_ref, w_ref, y_ref, stat_ref):
    # p_ref: (TM, K) bf16, w_ref: (K, CP) bf16
    # y_ref: (TM, CP) bf16 conv output, stat_ref: (8, CP) f32 partial BN stats (rows 0/1 only)
    y = jnp.dot(p_ref[...], w_ref[...], preferred_element_type=jnp.float32)
    y_ref[...] = y.astype(y_ref.dtype)                     # bf16 store; stats from f32 below
    stat_ref[0:1, :] = jnp.sum(y, axis=0, keepdims=True)   # per-channel partial sum
    stat_ref[1:2, :] = jnp.sum(y * y, axis=0, keepdims=True)  # per-channel partial sum of sq.
    # rows 2..7 of stat_ref are padding and are never read by the wrapper.


def _bn_lrelu_kernel(y_ref, sc_ref, sh_ref, o_ref, *, slope):
    # Epilogue kept in f32 (safe on v5e which has no bf16 VPU path); bf16 only on store.
    z = y_ref[...].astype(jnp.float32) * sc_ref[...] + sh_ref[...]
    o_ref[...] = jnp.where(z > 0, z, slope * z).astype(o_ref.dtype)


def _bn_lrelu_head_kernel(y_ref, sc_ref, sh_ref, wf_ref, bf_ref, h_ref, *, slope):
    # Layer-4 epilogue with the 1x1 fc head fused: BN + LeakyReLU, then (TM,CP)@(CP,128)+bias.
    z = y_ref[...].astype(jnp.float32) * sc_ref[...] + sh_ref[...]
    a = jnp.where(z > 0, z, slope * z)
    h_ref[...] = (
        jnp.dot(a.astype(jnp.bfloat16), wf_ref[...], preferred_element_type=jnp.float32)
        + bf_ref[...]
    )


# ----------------------------- Pallas wrappers ------------------------------

def _cparams():
    return pltpu.CompilerParams(
        dimension_semantics=("parallel",),
        vmem_limit_bytes=_vmem_limit_bytes(),
    )


def conv_stats(patches, w, *, tm):
    """patches: (Mp, K) bf16, w: (K, CP) bf16 -> (y (Mp,CP) bf16, sum (1,CP) f32, sumsq (1,CP) f32)."""
    mp, k = patches.shape
    cp = w.shape[1]
    gm = mp // tm
    y, stats = pl.pallas_call(
        _matmul_stats_kernel,
        out_shape=(jax.ShapeDtypeStruct((mp, cp), jnp.bfloat16),
                   jax.ShapeDtypeStruct((gm * 8, cp), jnp.float32)),
        grid=(gm,),
        in_specs=[pl.BlockSpec((tm, k), lambda i: (i, 0)),
                  pl.BlockSpec((k, cp), lambda i: (0, 0))],   # grid-invariant weight block
        out_specs=(pl.BlockSpec((tm, cp), lambda i: (i, 0)),
                   pl.BlockSpec((8, cp), lambda i: (i, 0))),
        compiler_params=_cparams(),
    )(patches, w)
    stats = stats.reshape(gm, 8, cp)
    ssum = jnp.sum(stats[:, 0, :], axis=0, keepdims=True)   # (1, CP)
    ssq = jnp.sum(stats[:, 1, :], axis=0, keepdims=True)    # (1, CP)
    return y, ssum, ssq


def bn_lrelu(y, scale, shift, *, tm, slope=SLOPE):
    mp, cp = y.shape
    gm = mp // tm
    return pl.pallas_call(
        functools.partial(_bn_lrelu_kernel, slope=slope),
        out_shape=jax.ShapeDtypeStruct((mp, cp), jnp.bfloat16),
        grid=(gm,),
        in_specs=[pl.BlockSpec((tm, cp), lambda i: (i, 0)),
                  pl.BlockSpec((1, cp), lambda i: (0, 0)),
                  pl.BlockSpec((1, cp), lambda i: (0, 0))],
        out_specs=pl.BlockSpec((tm, cp), lambda i: (i, 0)),
        compiler_params=_cparams(),
    )(y, scale, shift)


def bn_lrelu_head(y, scale, shift, w_fc, b_fc, *, tm, slope=SLOPE):
    mp, cp = y.shape
    cph = w_fc.shape[1]
    gm = mp // tm
    return pl.pallas_call(
        functools.partial(_bn_lrelu_head_kernel, slope=slope),
        out_shape=jax.ShapeDtypeStruct((mp, cph), jnp.float32),
        grid=(gm,),
        in_specs=[pl.BlockSpec((tm, cp), lambda i: (i, 0)),
                  pl.BlockSpec((1, cp), lambda i: (0, 0)),
                  pl.BlockSpec((1, cp), lambda i: (0, 0)),
                  pl.BlockSpec((cp, cph), lambda i: (0, 0)),
                  pl.BlockSpec((1, cph), lambda i: (0, 0))],
        out_specs=pl.BlockSpec((tm, cph), lambda i: (i, 0)),
        compiler_params=_cparams(),
    )(y, scale, shift, w_fc, b_fc)


# ------------------------------- JAX glue ----------------------------------

def _pick_tm(m):
    # v7x megacore: at least 2 grid steps whenever the layer is big enough to split,
    # capped at TM_MAX for VMEM; always a multiple of 16 (bf16 sublane pack).
    if m >= 32:
        return min(TM_MAX, _round_up(pl.cdiv(m, 2), 16))
    return _round_up(m, 16)


def im2col_padded(x, k, stride, pad, k_padded):
    """x: (N,H,W,C) bf16 -> zero-padded patches (Mp, k_padded) bf16, (n,ho,wo), M, tile_m.

    Padded rows / padded K columns are exactly zero, so they contribute nothing to the matmul
    or to the BN partial sums (conv bias is not added in-kernel for BN layers).
    """
    if pad > 0:
        x = jnp.pad(x, ((0, 0), (pad, pad), (pad, pad), (0, 0)))
    n, hp, wp, c = x.shape
    ho = (hp - k) // stride + 1
    wo = (wp - k) // stride + 1
    cols = []
    for i in range(k):
        for j in range(k):
            cols.append(x[:, i:i + stride * ho:stride, j:j + stride * wo:stride, :])
    p = jnp.stack(cols, axis=3).reshape(n * ho * wo, k * k * c)   # (kh, kw, C) order
    m = n * ho * wo
    tm = _pick_tm(m)
    mp = _round_up(m, tm)
    p = jnp.pad(p, ((0, mp - m), (0, k_padded - k * k * c)))
    return p, (n, ho, wo), m, tm


def init_params(key, conv_dim=8):
    # (c_in, c_out, k, stride, pad, bn) mirroring D2.__init__
    cfgs = [
        (3, conv_dim, 5, 2, 2, True),
        (conv_dim, conv_dim * 2, 5, 2, 2, True),
        (conv_dim * 2, conv_dim * 4, 5, 2, 2, True),
        (conv_dim * 4, conv_dim * 8, 4, 1, 0, True),
        (conv_dim * 8, 1, 1, 1, 0, False),
    ]
    params = []
    for (c_in, c_out, k, s, p, bn) in cfgs:
        key, k_w, k_b = jax.random.split(key, 3)
        fan_in = c_in * k * k
        bound = 1.0 / (fan_in ** 0.5)
        w = jax.random.uniform(k_w, (k, k, c_in, c_out), jnp.float32, -bound, bound)
        b = jax.random.uniform(k_b, (c_out,), jnp.float32, -bound, bound)
        k_real = k * k * c_in
        if bn:
            kp = _round_up(k_real, 16)    # contraction dim: bf16 sublane alignment only
        else:
            kp = _round_up(k_real, 128)   # fused 1x1 head consumes the lane-padded activation
        cp = _round_up(c_out, 128)        # Cout lane-padded for lane-dense stores
        w_pad = (jnp.zeros((kp, cp), jnp.float32)
                 .at[:k_real, :c_out].set(w.reshape(k_real, c_out))
                 .astype(jnp.bfloat16))
        b_pad = jnp.zeros((1, cp), jnp.float32).at[0, :c_out].set(b)
        params.append(dict(
            w=w_pad, b=b_pad,
            gamma=jnp.ones((1, cp), jnp.float32),
            beta=jnp.zeros((1, cp), jnp.float32),
            k=k, s=s, p=p, bn=bn, c_out=c_out,
        ))
    return params


def d2_forward(x_nchw, params):
    x = jnp.transpose(x_nchw, (0, 2, 3, 1)).astype(jnp.bfloat16)   # NHWC, bf16 for the MXU
    for li in range(4):
        lay = params[li]
        patches, (n, ho, wo), m, tm = im2col_padded(
            x, lay["k"], lay["s"], lay["p"], lay["w"].shape[0])
        # Pass 1: gridded matmul + partial BN stats (conv bias cancels under batch-norm).
        y, ssum, ssq = conv_stats(patches, lay["w"], tm=tm)
        # Global batch statistics (divide by the true M; padded rows contributed zero).
        mean = ssum / float(m)
        var = jnp.maximum(ssq / float(m) - mean * mean, 0.0)
        scale = lay["gamma"] * jax.lax.rsqrt(var + EPS)
        shift = lay["beta"] - mean * scale
        if li < 3:
            # Pass 2: normalize + LeakyReLU(0.05), bf16 out.
            a = bn_lrelu(y, scale, shift, tm=tm)
            x = a[:m, :lay["c_out"]].reshape(n, ho, wo, lay["c_out"])
        else:
            # Pass 2 with the 1x1 fc head (bias, no BN) fused into the epilogue.
            head = params[4]
            h = bn_lrelu_head(y, scale, shift, head["w"], head["b"], tm=tm)
            out = h[:m, 0].reshape(n, ho, wo)
            return jnp.squeeze(out)


# --------------------------------- main -------------------------------------

if __name__ == "__main__":
    key = jax.random.PRNGKey(0)
    k_params, k_x = jax.random.split(key)

    conv_dim = 8            # small stand-in for the default 64
    batch = 2
    # 3-channel 32x32 input (matching the 3 -> ... -> 4x4 -> 1x1 conv stack)
    x = jax.random.normal(k_x, (batch, 3, 32, 32), dtype=jnp.float32)

    params = init_params(k_params, conv_dim=conv_dim)

    out = jax.jit(lambda inp: d2_forward(inp, params))(x)
    out = jax.block_until_ready(out)

    assert out.shape == (batch,), out.shape
    assert bool(jnp.all(jnp.isfinite(out)))
    print("KERNEL_OK")
</pallas_src>

<mosaic_0001>
module attributes {stable_mosaic.version = 11 : i64} {
  func.func @_matmul_stats_kernel(%arg0: i32, %arg1: memref<256x80xbf16, #tpu.memory_space<vmem>>, %arg2: memref<80x128xbf16, #tpu.memory_space<vmem>>, %arg3: memref<256x128xbf16, #tpu.memory_space<vmem>>, %arg4: memref<8x128xf32, #tpu.memory_space<vmem>>) attributes {dimension_semantics = [#tpu.dimension_semantics<parallel>], iteration_bounds = array<i64: 2>, scalar_prefetch = 0 : i64, scratch_operands = 0 : i64, tpu.core_type = #tpu.core_type<tc>, window_params = [{transform_indices = @transform_0, window_bounds = array<i64: 256, 80>}, {pipeline_mode = #tpu.pipeline_mode<synchronous>, transform_indices = @transform_1, window_bounds = array<i64: 80, 128>}, {transform_indices = @transform_2, window_bounds = array<i64: 256, 128>}, {transform_indices = @transform_3, window_bounds = array<i64: 8, 128>}]} {
    %c0 = arith.constant 0 : index
    %c0_0 = arith.constant 0 : index
    %0 = vector.load %arg1[%c0, %c0_0] : memref<256x80xbf16, #tpu.memory_space<vmem>>, vector<256x80xbf16>
    %c0_1 = arith.constant 0 : index
    %c0_2 = arith.constant 0 : index
    %1 = vector.load %arg2[%c0_1, %c0_2] : memref<80x128xbf16, #tpu.memory_space<vmem>>, vector<80x128xbf16>
    %cst = arith.constant dense<0.000000e+00> : vector<256x128xf32>
    %2 = tpu.matmul %0, %1, %cst {dimension_numbers = #tpu.dot_dimension_numbers<[1], [0], [0], [1], [0, 0, 1, 1], [], []>} : vector<256x80xbf16>, vector<80x128xbf16>, vector<256x128xf32> -> vector<256x128xf32>
    %3 = arith.truncf %2 : vector<256x128xf32> to vector<256x128xbf16>
    %c0_3 = arith.constant 0 : index
    %c0_4 = arith.constant 0 : index
    %4 = vector.load %arg3[%c0_3, %c0_4] : memref<256x128xbf16, #tpu.memory_space<vmem>>, vector<256x128xbf16>
    tpu.vector_store %arg3[%c0_3, %c0_4], %3 {strides = array<i32>} : memref<256x128xbf16, #tpu.memory_space<vmem>>, vector<256x128xbf16>,
    %cst_5 = arith.constant dense<0.000000e+00> : vector<128xf32>
    %5 = vector.multi_reduction <add>, %2, %cst_5 [0] : vector<256x128xf32> to vector<128xf32>
    %6 = vector.shape_cast %5 : vector<128xf32> to vector<1x128xf32>
    %c0_6 = arith.constant 0 : index
    %c0_7 = arith.constant 0 : index
    %7 = vector.load %arg4[%c0_6, %c0_7] : memref<8x128xf32, #tpu.memory_space<vmem>>, vector<1x128xf32>
    tpu.vector_store %arg4[%c0_6, %c0_7], %6 {strides = array<i32>} : memref<8x128xf32, #tpu.memory_space<vmem>>, vector<1x128xf32>,
    %8 = arith.mulf %2, %2 : vector<256x128xf32>
    %cst_8 = arith.constant dense<0.000000e+00> : vector<128xf32>
    %9 = vector.multi_reduction <add>, %8, %cst_8 [0] : vector<256x128xf32> to vector<128xf32>
    %10 = vector.shape_cast %9 : vector<128xf32> to vector<1x128xf32>
    %c1 = arith.constant 1 : index
    %c0_9 = arith.constant 0 : index
    %11 = vector.load %arg4[%c1, %c0_9] : memref<8x128xf32, #tpu.memory_space<vmem>>, vector<1x128xf32>
    tpu.vector_store %arg4[%c1, %c0_9], %10 {strides = array<i32>} : memref<8x128xf32, #tpu.memory_space<vmem>>, vector<1x128xf32>,
    return
  }
  func.func @transform_0(%arg0: i32) -> (i32, i32) {
    %c0_i32 = arith.constant 0 : i32
    %c0_i32_0 = arith.constant 0 : i32
    return %arg0, %c0_i32 : i32, i32
  }
  func.func @transform_1(%arg0: i32) -> (i32, i32) {
    %c0_i32 = arith.constant 0 : i32
    %c0_i32_0 = arith.constant 0 : i32
    %c0_i32_1 = arith.constant 0 : i32
    return %c0_i32, %c0_i32_0 : i32, i32
  }
  func.func @transform_2(%arg0: i32) -> (i32, i32) {
    %c0_i32 = arith.constant 0 : i32
    %c0_i32_0 = arith.constant 0 : i32
    return %arg0, %c0_i32 : i32, i32
  }
  func.func @transform_3(%arg0: i32) -> (i32, i32) {
    %c0_i32 = arith.constant 0 : i32
    %c0_i32_0 = arith.constant 0 : i32
    return %arg0, %c0_i32 : i32, i32
  }
}

module attributes {stable_mosaic.version = 11 : i64} {
  func.func @_bn_lrelu_kernel(%arg0: i32, %arg1: memref<256x128xbf16, #tpu.memory_space<vmem>>, %arg2: memref<1x128xf32, #tpu.memory_space<vmem>>, %arg3: memref<1x128xf32, #tpu.memory_space<vmem>>, %arg4: memref<256x128xbf16, #tpu.memory_space<vmem>>) attributes {dimension_semantics = [#tpu.dimension_semantics<parallel>], iteration_bounds = array<i64: 2>, scalar_prefetch = 0 : i64, scratch_operands = 0 : i64, tpu.core_type = #tpu.core_type<tc>, window_params = [{transform_indices = @transform_0, window_bounds = array<i64: 256, 128>}, {pipeline_mode = #tpu.pipeline_mode<synchronous>, transform_indices = @transform_1, window_bounds = array<i64: 1, 128>}, {pipeline_mode = #tpu.pipeline_mode<synchronous>, transform_indices = @transform_2, window_bounds = array<i64: 1, 128>}, {transform_indices = @transform_3, window_bounds = array<i64: 256, 128>}]} {
    %c0 = arith.constant 0 : index
    %c0_0 = arith.constant 0 : index
    %0 = vector.load %arg1[%c0, %c0_0] : memref<256x128xbf16, #tpu.memory_space<vmem>>, vector<256x128xbf16>
    %1 = arith.extf %0 : vector<256x128xbf16> to vector<256x128xf32>
    %c0_1 = arith.constant 0 : index
    %c0_2 = arith.constant 0 : index
    %2 = vector.load %arg2[%c0_1, %c0_2] : memref<1x128xf32, #tpu.memory_space<vmem>>, vector<1x128xf32>
    %3 = vector.broadcast %2 : vector<1x128xf32> to vector<256x128xf32>
    %4 = arith.mulf %1, %3 : vector<256x128xf32>
    %c0_3 = arith.constant 0 : index
    %c0_4 = arith.constant 0 : index
    %5 = vector.load %arg3[%c0_3, %c0_4] : memref<1x128xf32, #tpu.memory_space<vmem>>, vector<1x128xf32>
    %6 = vector.broadcast %5 : vector<1x128xf32> to vector<256x128xf32>
    %7 = arith.addf %4, %6 : vector<256x128xf32>
    %cst = arith.constant 0.000000e+00 : f32
    %8 = vector.broadcast %cst : f32 to vector<256x128xf32>
    %9 = arith.cmpf ogt, %7, %8 : vector<256x128xf32>
    %cst_5 = arith.constant 5.000000e-02 : f32
    %10 = vector.broadcast %cst_5 : f32 to vector<256x128xf32>
    %11 = arith.mulf %10, %7 : vector<256x128xf32>
    %12 = arith.select %9, %7, %11 : vector<256x128xi1>, vector<256x128xf32>
    %13 = arith.truncf %12 : vector<256x128xf32> to vector<256x128xbf16>
    %c0_6 = arith.constant 0 : index
    %c0_7 = arith.constant 0 : index
    %14 = vector.load %arg4[%c0_6, %c0_7] : memref<256x128xbf16, #tpu.memory_space<vmem>>, vector<256x128xbf16>
    tpu.vector_store %arg4[%c0_6, %c0_7], %13 {strides = array<i32>} : memref<256x128xbf16, #tpu.memory_space<vmem>>, vector<256x128xbf16>,
    return
  }
  func.func @transform_0(%arg0: i32) -> (i32, i32) {
    %c0_i32 = arith.constant 0 : i32
    %c0_i32_0 = arith.constant 0 : i32
    return %arg0, %c0_i32 : i32, i32
  }
  func.func @transform_1(%arg0: i32) -> (i32, i32) {
    %c0_i32 = arith.constant 0 : i32
    %c0_i32_0 = arith.constant 0 : i32
    %c0_i32_1 = arith.constant 0 : i32
    return %c0_i32, %c0_i32_0 : i32, i32
  }
  func.func @transform_2(%arg0: i32) -> (i32, i32) {
    %c0_i32 = arith.constant 0 : i32
    %c0_i32_0 = arith.constant 0 : i32
    %c0_i32_1 = arith.constant 0 : i32
    return %c0_i32, %c0_i32_0 : i32, i32
  }
  func.func @transform_3(%arg0: i32) -> (i32, i32) {
    %c0_i32 = arith.constant 0 : i32
    %c0_i32_0 = arith.constant 0 : i32
    return %arg0, %c0_i32 : i32, i32
  }
}

module attributes {stable_mosaic.version = 11 : i64} {
  func.func @_matmul_stats_kernel(%arg0: i32, %arg1: memref<64x208xbf16, #tpu.memory_space<vmem>>, %arg2: memref<208x128xbf16, #tpu.memory_space<vmem>>, %arg3: memref<64x128xbf16, #tpu.memory_space<vmem>>, %arg4: memref<8x128xf32, #tpu.memory_space<vmem>>) attributes {dimension_semantics = [#tpu.dimension_semantics<parallel>], iteration_bounds = array<i64: 2>, scalar_prefetch = 0 : i64, scratch_operands = 0 : i64, tpu.core_type = #tpu.core_type<tc>, window_params = [{transform_indices = @transform_0, window_bounds = array<i64: 64, 208>}, {pipeline_mode = #tpu.pipeline_mode<synchronous>, transform_indices = @transform_1, window_bounds = array<i64: 208, 128>}, {transform_indices = @transform_2, window_bounds = array<i64: 64, 128>}, {transform_indices = @transform_3, window_bounds = array<i64: 8, 128>}]} {
    %c0 = arith.constant 0 : index
    %c0_0 = arith.constant 0 : index
    %0 = vector.load %arg1[%c0, %c0_0] : memref<64x208xbf16, #tpu.memory_space<vmem>>, vector<64x208xbf16>
    %c0_1 = arith.constant 0 : index
    %c0_2 = arith.constant 0 : index
    %1 = vector.load %arg2[%c0_1, %c0_2] : memref<208x128xbf16, #tpu.memory_space<vmem>>, vector<208x128xbf16>
    %cst = arith.constant dense<0.000000e+00> : vector<64x128xf32>
    %2 = tpu.matmul %0, %1, %cst {dimension_numbers = #tpu.dot_dimension_numbers<[1], [0], [0], [1], [0, 0, 1, 1], [], []>} : vector<64x208xbf16>, vector<208x128xbf16>, vector<64x128xf32> -> vector<64x128xf32>
    %3 = arith.truncf %2 : vector<64x128xf32> to vector<64x128xbf16>
    %c0_3 = arith.constant 0 : index
    %c0_4 = arith.constant 0 : index
    %4 = vector.load %arg3[%c0_3, %c0_4] : memref<64x128xbf16, #tpu.memory_space<vmem>>, vector<64x128xbf16>
    tpu.vector_store %arg3[%c0_3, %c0_4], %3 {strides = array<i32>} : memref<64x128xbf16, #tpu.memory_space<vmem>>, vector<64x128xbf16>,
    %cst_5 = arith.constant dense<0.000000e+00> : vector<128xf32>
    %5 = vector.multi_reduction <add>, %2, %cst_5 [0] : vector<64x128xf32> to vector<128xf32>
    %6 = vector.shape_cast %5 : vector<128xf32> to vector<1x128xf32>
    %c0_6 = arith.constant 0 : index
    %c0_7 = arith.constant 0 : index
    %7 = vector.load %arg4[%c0_6, %c0_7] : memref<8x128xf32, #tpu.memory_space<vmem>>, vector<1x128xf32>
    tpu.vector_store %arg4[%c0_6, %c0_7], %6 {strides = array<i32>} : memref<8x128xf32, #tpu.memory_space<vmem>>, vector<1x128xf32>,
    %8 = arith.mulf %2, %2 : vector<64x128xf32>
    %cst_8 = arith.constant dense<0.000000e+00> : vector<128xf32>
    %9 = vector.multi_reduction <add>, %8, %cst_8 [0] : vector<64x128xf32> to vector<128xf32>
    %10 = vector.shape_cast %9 : vector<128xf32> to vector<1x128xf32>
    %c1 = arith.constant 1 : index
    %c0_9 = arith.constant 0 : index
    %11 = vector.load %arg4[%c1, %c0_9] : memref<8x128xf32, #tpu.memory_space<vmem>>, vector<1x128xf32>
    tpu.vector_store %arg4[%c1, %c0_9], %10 {strides = array<i32>} : memref<8x128xf32, #tpu.memory_space<vmem>>, vector<1x128xf32>,
    return
  }
  func.func @transform_0(%arg0: i32) -> (i32, i32) {
    %c0_i32 = arith.constant 0 : i32
    %c0_i32_0 = arith.constant 0 : i32
    return %arg0, %c0_i32 : i32, i32
  }
  func.func @transform_1(%arg0: i32) -> (i32, i32) {
    %c0_i32 = arith.constant 0 : i32
    %c0_i32_0 = arith.constant 0 : i32
    %c0_i32_1 = arith.constant 0 : i32
    return %c0_i32, %c0_i32_0 : i32, i32
  }
  func.func @transform_2(%arg0: i32) -> (i32, i32) {
    %c0_i32 = arith.constant 0 : i32
    %c0_i32_0 = arith.constant 0 : i32
    return %arg0, %c0_i32 : i32, i32
  }
  func.func @transform_3(%arg0: i32) -> (i32, i32) {
    %c0_i32 = arith.constant 0 : i32
    %c0_i32_0 = arith.constant 0 : i32
    return %arg0, %c0_i32 : i32, i32
  }
}

module attributes {stable_mosaic.version = 11 : i64} {
  func.func @_bn_lrelu_kernel(%arg0: i32, %arg1: memref<64x128xbf16, #tpu.memory_space<vmem>>, %arg2: memref<1x128xf32, #tpu.memory_space<vmem>>, %arg3: memref<1x128xf32, #tpu.memory_space<vmem>>, %arg4: memref<64x128xbf16, #tpu.memory_space<vmem>>) attributes {dimension_semantics = [#tpu.dimension_semantics<parallel>], iteration_bounds = array<i64: 2>, scalar_prefetch = 0 : i64, scratch_operands = 0 : i64, tpu.core_type = #tpu.core_type<tc>, window_params = [{transform_indices = @transform_0, window_bounds = array<i64: 64, 128>}, {pipeline_mode = #tpu.pipeline_mode<synchronous>, transform_indices = @transform_1, window_bounds = array<i64: 1, 128>}, {pipeline_mode = #tpu.pipeline_mode<synchronous>, transform_indices = @transform_2, window_bounds = array<i64: 1, 128>}, {transform_indices = @transform_3, window_bounds = array<i64: 64, 128>}]} {
    %c0 = arith.constant 0 : index
    %c0_0 = arith.constant 0 : index
    %0 = vector.load %arg1[%c0, %c0_0] : memref<64x128xbf16, #tpu.memory_space<vmem>>, vector<64x128xbf16>
    %1 = arith.extf %0 : vector<64x128xbf16> to vector<64x128xf32>
    %c0_1 = arith.constant 0 : index
    %c0_2 = arith.constant 0 : index
    %2 = vector.load %arg2[%c0_1, %c0_2] : memref<1x128xf32, #tpu.memory_space<vmem>>, vector<1x128xf32>
    %3 = vector.broadcast %2 : vector<1x128xf32> to vector<64x128xf32>
    %4 = arith.mulf %1, %3 : vector<64x128xf32>
    %c0_3 = arith.constant 0 : index
    %c0_4 = arith.constant 0 : index
    %5 = vector.load %arg3[%c0_3, %c0_4] : memref<1x128xf32, #tpu.memory_space<vmem>>, vector<1x128xf32>
    %6 = vector.broadcast %5 : vector<1x128xf32> to vector<64x128xf32>
    %7 = arith.addf %4, %6 : vector<64x128xf32>
    %cst = arith.constant 0.000000e+00 : f32
    %8 = vector.broadcast %cst : f32 to vector<64x128xf32>
    %9 = arith.cmpf ogt, %7, %8 : vector<64x128xf32>
    %cst_5 = arith.constant 5.000000e-02 : f32
    %10 = vector.broadcast %cst_5 : f32 to vector<64x128xf32>
    %11 = arith.mulf %10, %7 : vector<64x128xf32>
    %12 = arith.select %9, %7, %11 : vector<64x128xi1>, vector<64x128xf32>
    %13 = arith.truncf %12 : vector<64x128xf32> to vector<64x128xbf16>
    %c0_6 = arith.constant 0 : index
    %c0_7 = arith.constant 0 : index
    %14 = vector.load %arg4[%c0_6, %c0_7] : memref<64x128xbf16, #tpu.memory_space<vmem>>, vector<64x128xbf16>
    tpu.vector_store %arg4[%c0_6, %c0_7], %13 {strides = array<i32>} : memref<64x128xbf16, #tpu.memory_space<vmem>>, vector<64x128xbf16>,
    return
  }
  func.func @transform_0(%arg0: i32) -> (i32, i32) {
    %c0_i32 = arith.constant 0 : i32
    %c0_i32_0 = arith.constant 0 : i32
    return %arg0, %c0_i32 : i32, i32
  }
  func.func @transform_1(%arg0: i32) -> (i32, i32) {
    %c0_i32 = arith.constant 0 : i32
    %c0_i32_0 = arith.constant 0 : i32
    %c0_i32_1 = arith.constant 0 : i32
    return %c0_i32, %c0_i32_0 : i32, i32
  }
  func.func @transform_2(%arg0: i32) -> (i32, i32) {
    %c0_i32 = arith.constant 0 : i32
    %c0_i32_0 = arith.constant 0 : i32
    %c0_i32_1 = arith.constant 0 : i32
    return %c0_i32, %c0_i32_0 : i32, i32
  }
  func.func @transform_3(%arg0: i32) -> (i32, i32) {
    %c0_i32 = arith.constant 0 : i32
    %c0_i32_0 = arith.constant 0 : i32
    return %arg0, %c0_i32 : i32, i32
  }
}

module attributes {stable_mosaic.version = 11 : i64} {
  func.func @_matmul_stats_kernel(%arg0: i32, %arg1: memref<16x400xbf16, #tpu.memory_space<vmem>>, %arg2: memref<400x128xbf16, #tpu.memory_space<vmem>>, %arg3: memref<16x128xbf16, #tpu.memory_space<vmem>>, %arg4: memref<8x128xf32, #tpu.memory_space<vmem>>) attributes {dimension_semantics = [#tpu.dimension_semantics<parallel>], iteration_bounds = array<i64: 2>, scalar_prefetch = 0 : i64, scratch_operands = 0 : i64, tpu.core_type = #tpu.core_type<tc>, window_params = [{transform_indices = @transform_0, window_bounds = array<i64: 16, 400>}, {pipeline_mode = #tpu.pipeline_mode<synchronous>, transform_indices = @transform_1, window_bounds = array<i64: 400, 128>}, {transform_indices = @transform_2, window_bounds = array<i64: 16, 128>}, {transform_indices = @transform_3, window_bounds = array<i64: 8, 128>}]} {
    %c0 = arith.constant 0 : index
    %c0_0 = arith.constant 0 : index
    %0 = vector.load %arg1[%c0, %c0_0] : memref<16x400xbf16, #tpu.memory_space<vmem>>, vector<16x400xbf16>
    %c0_1 = arith.constant 0 : index
    %c0_2 = arith.constant 0 : index
    %1 = vector.load %arg2[%c0_1, %c0_2] : memref<400x128xbf16, #tpu.memory_space<vmem>>, vector<400x128xbf16>
    %cst = arith.constant dense<0.000000e+00> : vector<16x128xf32>
    %2 = tpu.matmul %0, %1, %cst {dimension_numbers = #tpu.dot_dimension_numbers<[1], [0], [0], [1], [0, 0, 1, 1], [], []>} : vector<16x400xbf16>, vector<400x128xbf16>, vector<16x128xf32> -> vector<16x128xf32>
    %3 = arith.truncf %2 : vector<16x128xf32> to vector<16x128xbf16>
    %c0_3 = arith.constant 0 : index
    %c0_4 = arith.constant 0 : index
    %4 = vector.load %arg3[%c0_3, %c0_4] : memref<16x128xbf16, #tpu.memory_space<vmem>>, vector<16x128xbf16>
    tpu.vector_store %arg3[%c0_3, %c0_4], %3 {strides = array<i32>} : memref<16x128xbf16, #tpu.memory_space<vmem>>, vector<16x128xbf16>,
    %cst_5 = arith.constant dense<0.000000e+00> : vector<128xf32>
    %5 = vector.multi_reduction <add>, %2, %cst_5 [0] : vector<16x128xf32> to vector<128xf32>
    %6 = vector.shape_cast %5 : vector<128xf32> to vector<1x128xf32>
    %c0_6 = arith.constant 0 : index
    %c0_7 = arith.constant 0 : index
    %7 = vector.load %arg4[%c0_6, %c0_7] : memref<8x128xf32, #tpu.memory_space<vmem>>, vector<1x128xf32>
    tpu.vector_store %arg4[%c0_6, %c0_7], %6 {strides = array<i32>} : memref<8x128xf32, #tpu.memory_space<vmem>>, vector<1x128xf32>,
    %8 = arith.mulf %2, %2 : vector<16x128xf32>
    %cst_8 = arith.constant dense<0.000000e+00> : vector<128xf32>
    %9 = vector.multi_reduction <add>, %8, %cst_8 [0] : vector<16x128xf32> to vector<128xf32>
    %10 = vector.shape_cast %9 : vector<128xf32> to vector<1x128xf32>
    %c1 = arith.constant 1 : index
    %c0_9 = arith.constant 0 : index
    %11 = vector.load %arg4[%c1, %c0_9] : memref<8x128xf32, #tpu.memory_space<vmem>>, vector<1x128xf32>
    tpu.vector_store %arg4[%c1, %c0_9], %10 {strides = array<i32>} : memref<8x128xf32, #tpu.memory_space<vmem>>, vector<1x128xf32>,
    return
  }
  func.func @transform_0(%arg0: i32) -> (i32, i32) {
    %c0_i32 = arith.constant 0 : i32
    %c0_i32_0 = arith.constant 0 : i32
    return %arg0, %c0_i32 : i32, i32
  }
  func.func @transform_1(%arg0: i32) -> (i32, i32) {
    %c0_i32 = arith.constant 0 : i32
    %c0_i32_0 = arith.constant 0 : i32
    %c0_i32_1 = arith.constant 0 : i32
    return %c0_i32, %c0_i32_0 : i32, i32
  }
  func.func @transform_2(%arg0: i32) -> (i32, i32) {
    %c0_i32 = arith.constant 0 : i32
    %c0_i32_0 = arith.constant 0 : i32
    return %arg0, %c0_i32 : i32, i32
  }
  func.func @transform_3(%arg0: i32) -> (i32, i32) {
    %c0_i32 = arith.constant 0 : i32
    %c0_i32_0 = arith.constant 0 : i32
    return %arg0, %c0_i32 : i32, i32
  }
}

module attributes {stable_mosaic.version = 11 : i64} {
  func.func @_bn_lrelu_kernel(%arg0: i32, %arg1: memref<16x128xbf16, #tpu.memory_space<vmem>>, %arg2: memref<1x128xf32, #tpu.memory_space<vmem>>, %arg3: memref<1x128xf32, #tpu.memory_space<vmem>>, %arg4: memref<16x128xbf16, #tpu.memory_space<vmem>>) attributes {dimension_semantics = [#tpu.dimension_semantics<parallel>], iteration_bounds = array<i64: 2>, scalar_prefetch = 0 : i64, scratch_operands = 0 : i64, tpu.core_type = #tpu.core_type<tc>, window_params = [{transform_indices = @transform_0, window_bounds = array<i64: 16, 128>}, {pipeline_mode = #tpu.pipeline_mode<synchronous>, transform_indices = @transform_1, window_bounds = array<i64: 1, 128>}, {pipeline_mode = #tpu.pipeline_mode<synchronous>, transform_indices = @transform_2, window_bounds = array<i64: 1, 128>}, {transform_indices = @transform_3, window_bounds = array<i64: 16, 128>}]} {
    %c0 = arith.constant 0 : index
    %c0_0 = arith.constant 0 : index
    %0 = vector.load %arg1[%c0, %c0_0] : memref<16x128xbf16, #tpu.memory_space<vmem>>, vector<16x128xbf16>
    %1 = arith.extf %0 : vector<16x128xbf16> to vector<16x128xf32>
    %c0_1 = arith.constant 0 : index
    %c0_2 = arith.constant 0 : index
    %2 = vector.load %arg2[%c0_1, %c0_2] : memref<1x128xf32, #tpu.memory_space<vmem>>, vector<1x128xf32>
    %3 = vector.broadcast %2 : vector<1x128xf32> to vector<16x128xf32>
    %4 = arith.mulf %1, %3 : vector<16x128xf32>
    %c0_3 = arith.constant 0 : index
    %c0_4 = arith.constant 0 : index
    %5 = vector.load %arg3[%c0_3, %c0_4] : memref<1x128xf32, #tpu.memory_space<vmem>>, vector<1x128xf32>
    %6 = vector.broadcast %5 : vector<1x128xf32> to vector<16x128xf32>
    %7 = arith.addf %4, %6 : vector<16x128xf32>
    %cst = arith.constant 0.000000e+00 : f32
    %8 = vector.broadcast %cst : f32 to vector<16x128xf32>
    %9 = arith.cmpf ogt, %7, %8 : vector<16x128xf32>
    %cst_5 = arith.constant 5.000000e-02 : f32
    %10 = vector.broadcast %cst_5 : f32 to vector<16x128xf32>
    %11 = arith.mulf %10, %7 : vector<16x128xf32>
    %12 = arith.select %9, %7, %11 : vector<16x128xi1>, vector<16x128xf32>
    %13 = arith.truncf %12 : vector<16x128xf32> to vector<16x128xbf16>
    %c0_6 = arith.constant 0 : index
    %c0_7 = arith.constant 0 : index
    %14 = vector.load %arg4[%c0_6, %c0_7] : memref<16x128xbf16, #tpu.memory_space<vmem>>, vector<16x128xbf16>
    tpu.vector_store %arg4[%c0_6, %c0_7], %13 {strides = array<i32>} : memref<16x128xbf16, #tpu.memory_space<vmem>>, vector<16x128xbf16>,
    return
  }
  func.func @transform_0(%arg0: i32) -> (i32, i32) {
    %c0_i32 = arith.constant 0 : i32
    %c0_i32_0 = arith.constant 0 : i32
    return %arg0, %c0_i32 : i32, i32
  }
  func.func @transform_1(%arg0: i32) -> (i32, i32) {
    %c0_i32 = arith.constant 0 : i32
    %c0_i32_0 = arith.constant 0 : i32
    %c0_i32_1 = arith.constant 0 : i32
    return %c0_i32, %c0_i32_0 : i32, i32
  }
  func.func @transform_2(%arg0: i32) -> (i32, i32) {
    %c0_i32 = arith.constant 0 : i32
    %c0_i32_0 = arith.constant 0 : i32
    %c0_i32_1 = arith.constant 0 : i32
    return %c0_i32, %c0_i32_0 : i32, i32
  }
  func.func @transform_3(%arg0: i32) -> (i32, i32) {
    %c0_i32 = arith.constant 0 : i32
    %c0_i32_0 = arith.constant 0 : i32
    return %arg0, %c0_i32 : i32, i32
  }
}

module attributes {stable_mosaic.version = 11 : i64} {
  func.func @_matmul_stats_kernel(%arg0: i32, %arg1: memref<16x512xbf16, #tpu.memory_space<vmem>>, %arg2: memref<512x128xbf16, #tpu.memory_space<vmem>>, %arg3: memref<16x128xbf16, #tpu.memory_space<vmem>>, %arg4: memref<8x128xf32, #tpu.memory_space<vmem>>) attributes {dimension_semantics = [#tpu.dimension_semantics<parallel>], iteration_bounds = array<i64: 1>, scalar_prefetch = 0 : i64, scratch_operands = 0 : i64, tpu.core_type = #tpu.core_type<tc>, window_params = [{transform_indices = @transform_0, window_bounds = array<i64: 16, 512>}, {pipeline_mode = #tpu.pipeline_mode<synchronous>, transform_indices = @transform_1, window_bounds = array<i64: 512, 128>}, {transform_indices = @transform_2, window_bounds = array<i64: 16, 128>}, {transform_indices = @transform_3, window_bounds = array<i64: 8, 128>}]} {
    %c0 = arith.constant 0 : index
    %c0_0 = arith.constant 0 : index
    %0 = vector.load %arg1[%c0, %c0_0] : memref<16x512xbf16, #tpu.memory_space<vmem>>, vector<16x512xbf16>
    %c0_1 = arith.constant 0 : index
    %c0_2 = arith.constant 0 : index
    %1 = vector.load %arg2[%c0_1, %c0_2] : memref<512x128xbf16, #tpu.memory_space<vmem>>, vector<512x128xbf16>
    %cst = arith.constant dense<0.000000e+00> : vector<16x128xf32>
    %2 = tpu.matmul %0, %1, %cst {dimension_numbers = #tpu.dot_dimension_numbers<[1], [0], [0], [1], [0, 0, 1, 1], [], []>} : vector<16x512xbf16>, vector<512x128xbf16>, vector<16x128xf32> -> vector<16x128xf32>
    %3 = arith.truncf %2 : vector<16x128xf32> to vector<16x128xbf16>
    %c0_3 = arith.constant 0 : index
    %c0_4 = arith.constant 0 : index
    %4 = vector.load %arg3[%c0_3, %c0_4] : memref<16x128xbf16, #tpu.memory_space<vmem>>, vector<16x128xbf16>
    tpu.vector_store %arg3[%c0_3, %c0_4], %3 {strides = array<i32>} : memref<16x128xbf16, #tpu.memory_space<vmem>>, vector<16x128xbf16>,
    %cst_5 = arith.constant dense<0.000000e+00> : vector<128xf32>
    %5 = vector.multi_reduction <add>, %2, %cst_5 [0] : vector<16x128xf32> to vector<128xf32>
    %6 = vector.shape_cast %5 : vector<128xf32> to vector<1x128xf32>
    %c0_6 = arith.constant 0 : index
    %c0_7 = arith.constant 0 : index
    %7 = vector.load %arg4[%c0_6, %c0_7] : memref<8x128xf32, #tpu.memory_space<vmem>>, vector<1x128xf32>
    tpu.vector_store %arg4[%c0_6, %c0_7], %6 {strides = array<i32>} : memref<8x128xf32, #tpu.memory_space<vmem>>, vector<1x128xf32>,
    %8 = arith.mulf %2, %2 : vector<16x128xf32>
    %cst_8 = arith.constant dense<0.000000e+00> : vector<128xf32>
    %9 = vector.multi_reduction <add>, %8, %cst_8 [0] : vector<16x128xf32> to vector<128xf32>
    %10 = vector.shape_cast %9 : vector<128xf32> to vector<1x128xf32>
    %c1 = arith.constant 1 : index
    %c0_9 = arith.constant 0 : index
    %11 = vector.load %arg4[%c1, %c0_9] : memref<8x128xf32, #tpu.memory_space<vmem>>, vector<1x128xf32>
    tpu.vector_store %arg4[%c1, %c0_9], %10 {strides = array<i32>} : memref<8x128xf32, #tpu.memory_space<vmem>>, vector<1x128xf32>,
    return
  }
  func.func @transform_0(%arg0: i32) -> (i32, i32) {
    %c0_i32 = arith.constant 0 : i32
    %c0_i32_0 = arith.constant 0 : i32
    return %arg0, %c0_i32 : i32, i32
  }
  func.func @transform_1(%arg0: i32) -> (i32, i32) {
    %c0_i32 = arith.constant 0 : i32
    %c0_i32_0 = arith.constant 0 : i32
    %c0_i32_1 = arith.constant 0 : i32
    return %c0_i32, %c0_i32_0 : i32, i32
  }
  func.func @transform_2(%arg0: i32) -> (i32, i32) {
    %c0_i32 = arith.constant 0 : i32
    %c0_i32_0 = arith.constant 0 : i32
    return %arg0, %c0_i32 : i32, i32
  }
  func.func @transform_3(%arg0: i32) -> (i32, i32) {
    %c0_i32 = arith.constant 0 : i32
    %c0_i32_0 = arith.constant 0 : i32
    return %arg0, %c0_i32 : i32, i32
  }
}

module attributes {stable_mosaic.version = 11 : i64} {
  func.func @_bn_lrelu_head_kernel(%arg0: i32, %arg1: memref<16x128xbf16, #tpu.memory_space<vmem>>, %arg2: memref<1x128xf32, #tpu.memory_space<vmem>>, %arg3: memref<1x128xf32, #tpu.memory_space<vmem>>, %arg4: memref<128x128xbf16, #tpu.memory_space<vmem>>, %arg5: memref<1x128xf32, #tpu.memory_space<vmem>>, %arg6: memref<16x128xf32, #tpu.memory_space<vmem>>) attributes {dimension_semantics = [#tpu.dimension_semantics<parallel>], iteration_bounds = array<i64: 1>, scalar_prefetch = 0 : i64, scratch_operands = 0 : i64, tpu.core_type = #tpu.core_type<tc>, window_params = [{transform_indices = @transform_0, window_bounds = array<i64: 16, 128>}, {pipeline_mode = #tpu.pipeline_mode<synchronous>, transform_indices = @transform_1, window_bounds = array<i64: 1, 128>}, {pipeline_mode = #tpu.pipeline_mode<synchronous>, transform_indices = @transform_2, window_bounds = array<i64: 1, 128>}, {pipeline_mode = #tpu.pipeline_mode<synchronous>, transform_indices = @transform_3, window_bounds = array<i64: 128, 128>}, {pipeline_mode = #tpu.pipeline_mode<synchronous>, transform_indices = @transform_4, window_bounds = array<i64: 1, 128>}, {transform_indices = @transform_5, window_bounds = array<i64: 16, 128>}]} {
    %c0 = arith.constant 0 : index
    %c0_0 = arith.constant 0 : index
    %0 = vector.load %arg1[%c0, %c0_0] : memref<16x128xbf16, #tpu.memory_space<vmem>>, vector<16x128xbf16>
    %1 = arith.extf %0 : vector<16x128xbf16> to vector<16x128xf32>
    %c0_1 = arith.constant 0 : index
    %c0_2 = arith.constant 0 : index
    %2 = vector.load %arg2[%c0_1, %c0_2] : memref<1x128xf32, #tpu.memory_space<vmem>>, vector<1x128xf32>
    %3 = vector.broadcast %2 : vector<1x128xf32> to vector<16x128xf32>
    %4 = arith.mulf %1, %3 : vector<16x128xf32>
    %c0_3 = arith.constant 0 : index
    %c0_4 = arith.constant 0 : index
    %5 = vector.load %arg3[%c0_3, %c0_4] : memref<1x128xf32, #tpu.memory_space<vmem>>, vector<1x128xf32>
    %6 = vector.broadcast %5 : vector<1x128xf32> to vector<16x128xf32>
    %7 = arith.addf %4, %6 : vector<16x128xf32>
    %cst = arith.constant 0.000000e+00 : f32
    %8 = vector.broadcast %cst : f32 to vector<16x128xf32>
    %9 = arith.cmpf ogt, %7, %8 : vector<16x128xf32>
    %cst_5 = arith.constant 5.000000e-02 : f32
    %10 = vector.broadcast %cst_5 : f32 to vector<16x128xf32>
    %11 = arith.mulf %10, %7 : vector<16x128xf32>
    %12 = arith.select %9, %7, %11 : vector<16x128xi1>, vector<16x128xf32>
    %13 = arith.truncf %12 : vector<16x128xf32> to vector<16x128xbf16>
    %c0_6 = arith.constant 0 : index
    %c0_7 = arith.constant 0 : index
    %14 = vector.load %arg4[%c0_6, %c0_7] : memref<128x128xbf16, #tpu.memory_space<vmem>>, vector<128x128xbf16>
    %cst_8 = arith.constant dense<0.000000e+00> : vector<16x128xf32>
    %15 = tpu.matmul %13, %14, %cst_8 {dimension_numbers = #tpu.dot_dimension_numbers<[1], [0], [0], [1], [0, 0, 1, 1], [], []>} : vector<16x128xbf16>, vector<128x128xbf16>, vector<16x128xf32> -> vector<16x128xf32>
    %c0_9 = arith.constant 0 : index
    %c0_10 = arith.constant 0 : index
    %16 = vector.load %arg5[%c0_9, %c0_10] : memref<1x128xf32, #tpu.memory_space<vmem>>, vector<1x128xf32>
    %17 = vector.broadcast %16 : vector<1x128xf32> to vector<16x128xf32>
    %18 = arith.addf %15, %17 : vector<16x128xf32>
    %c0_11 = arith.constant 0 : index
    %c0_12 = arith.constant 0 : index
    %19 = vector.load %arg6[%c0_11, %c0_12] : memref<16x128xf32, #tpu.memory_space<vmem>>, vector<16x128xf32>
    tpu.vector_store %arg6[%c0_11, %c0_12], %18 {strides = array<i32>} : memref<16x128xf32, #tpu.memory_space<vmem>>, vector<16x128xf32>,
    return
  }
  func.func @transform_0(%arg0: i32) -> (i32, i32) {
    %c0_i32 = arith.constant 0 : i32
    %c0_i32_0 = arith.constant 0 : i32
    return %arg0, %c0_i32 : i32, i32
  }
  func.func @transform_1(%arg0: i32) -> (i32, i32) {
    %c0_i32 = arith.constant 0 : i32
    %c0_i32_0 = arith.constant 0 : i32
    %c0_i32_1 = arith.constant 0 : i32
    return %c0_i32, %c0_i32_0 : i32, i32
  }
  func.func @transform_2(%arg0: i32) -> (i32, i32) {
    %c0_i32 = arith.constant 0 : i32
    %c0_i32_0 = arith.constant 0 : i32
    %c0_i32_1 = arith.constant 0 : i32
    return %c0_i32, %c0_i32_0 : i32, i32
  }
  func.func @transform_3(%arg0: i32) -> (i32, i32) {
    %c0_i32 = arith.constant 0 : i32
    %c0_i32_0 = arith.constant 0 : i32
    %c0_i32_1 = arith.constant 0 : i32
    return %c0_i32, %c0_i32_0 : i32, i32
  }
  func.func @transform_4(%arg0: i32) -> (i32, i32) {
    %c0_i32 = arith.constant 0 : i32
    %c0_i32_0 = arith.constant 0 : i32
    %c0_i32_1 = arith.constant 0 : i32
    return %c0_i32, %c0_i32_0 : i32, i32
  }
  func.func @transform_5(%arg0: i32) -> (i32, i32) {
    %c0_i32 = arith.constant 0 : i32
    %c0_i32_0 = arith.constant 0 : i32
    return %arg0, %c0_i32 : i32, i32
  }
}

</mosaic_0001>

<llo_original>
// kernel: _lambda_.9
$region0: #{_lambda_.9}
  #allocation0 [shape = 'u32[]', space=smem, size = 0x4, offset = 0x4, fixed_abs, tag = 'smem constant byte address 0x4 - core index']
  #allocation1 [shape = 'u32[144,128]{1,0:T(1,128)}', space=vmem, size = 0x12000, scoped, tag = 'internal scratch']
  %s0 = inlined_call_operand.vmem [shape: bf16[512,128], index: 0, kind: input, shape index: {}]
  %s1 = inlined_call_operand.vmem [shape: f32[1,128], index: 1, kind: input, shape index: {}]
  %s2 = inlined_call_operand.vmem [shape: f32[1,128], index: 2, kind: input, shape index: {}]
  %s3 = inlined_call_operand.vmem [shape: bf16[512,128], index: 3, kind: output, shape index: {}]
  %s4 = sld [smem:[#allocation0]]
  $region45: #{_lambda_.9} parent=0
    _
  %s6 = ssub.s32 1, %s4
  %s7 = scalar_select 0, %s6, %s4
  loop: start=0, step=1, limit=4
  $region2: #{_lambda_.9} parent=0 // loop_pre_header
    _
  $region3: #{_lambda_.9} parent=0 // loop_header
    %s9 = sphi 0, %s13
    %p10 = scmp.ge.s32.totalorder %s9, 4
    %s19 = sphi 0, %s21
    %s22 = sphi 0, %s19
    %s23 = sphi 0, %s22
    %s39 = sphi 0, %s23
    %s43 = sphi 0, %s43
    %s45 = sphi 0, %s43
    %s46 = sphi 0, %s45
    %s60 = sphi 0, %s46
    %s64 = sphi 0, %s64
    %s66 = sphi 0, %s64
    %s67 = sphi 0, %s66
    %s81 = sphi 0, %s67
    %s87 = sphi 0, %s89
    %s90 = sphi 0, %s87
    %s91 = sphi 0, %s90
    %s107 = sphi 0, %s91
  $region4: #{_lambda_.9} parent=0 // loop_header_branch
    %12 = sbr.rel (%p10) target = $region8
  $region5: #{_lambda_.9} parent=0 // loop_body
    %s14 = ssub.s32 %s9, 1
    %s15 = ssub.s32 %s9, 2
    %s16 = sadd.s32 %s9, 1
    %s17 = ssub.s32 %s9, %s16
    %p18 = scmp.eq.s32.totalorder %s17, 0
    %s20 = sadd.s32 %s19, 1
    %s21 = scalar_select %p18, %s19, %s20
    %p24 = pneg %p18
    %p25 = scmp.eq.s32.totalorder %s9, 1
    %p26 = por %p24, %p25
    %p27 = scmp.ne.s32.totalorder %s19, %s22
    %p28 = scmp.eq.s32.totalorder %s9, 0
    %p29 = por %p27, %p28
    %p30 = scmp.ne.s32.totalorder %s19, %s22
    %p31 = scmp.eq.s32.totalorder %s14, 1
    %p32 = por %p30, %p31
    %p33 = scmp.ne.s32.totalorder %s22, %s23
    %p34 = scmp.eq.s32.totalorder %s14, 0
    %p35 = por %p33, %p34
    %p36 = scmp.ne.s32.totalorder %s22, %s23
    %p37 = scmp.eq.s32.totalorder %s15, 1
    %p38 = por %p36, %p37
    %p40 = scmp.ne.s32.totalorder %s23, %s39
    %p41 = scmp.eq.s32.totalorder %s15, 0
    %p42 = por %p40, %p41
    %s44 = sadd.s32 %s43, 1
    %p47 = scmp.eq.s32.totalorder %s9, 1
    %p48 = scmp.ne.s32.totalorder %s43, %s45
    %p49 = scmp.eq.s32.totalorder %s9, 0
    %p50 = por %p48, %p49
    %p51 = scmp.ne.s32.totalorder %s43, %s45
    %p52 = scmp.eq.s32.totalorder %s14, 1
    %p53 = por %p51, %p52
    %p54 = scmp.ne.s32.totalorder %s45, %s46
    %p55 = scmp.eq.s32.totalorder %s14, 0
    %p56 = por %p54, %p55
    %p57 = scmp.ne.s32.totalorder %s45, %s46
    %p58 = scmp.eq.s32.totalorder %s15, 1
    %p59 = por %p57, %p58
    %p61 = scmp.ne.s32.totalorder %s46, %s60
    %p62 = scmp.eq.s32.totalorder %s15, 0
    %p63 = por %p61, %p62
    %s65 = sadd.s32 %s64, 1
    %p68 = scmp.eq.s32.totalorder %s9, 1
    %p69 = scmp.ne.s32.totalorder %s64, %s66
    %p70 = scmp.eq.s32.totalorder %s9, 0
    %p71 = por %p69, %p70
    %p72 = scmp.ne.s32.totalorder %s64, %s66
    %p73 = scmp.eq.s32.totalorder %s14, 1
    %p74 = por %p72, %p73
    %p75 = scmp.ne.s32.totalorder %s66, %s67
    %p76 = scmp.eq.s32.totalorder %s14, 0
    %p77 = por %p75, %p76
    %p78 = scmp.ne.s32.totalorder %s66, %s67
    %p79 = scmp.eq.s32.totalorder %s15, 1
    %p80 = por %p78, %p79
    %p82 = scmp.ne.s32.totalorder %s67, %s81
    %p83 = scmp.eq.s32.totalorder %s15, 0
    %p84 = por %p82, %p83
    %s85 = ssub.s32 %s9, %s16
    %p86 = scmp.eq.s32.totalorder %s85, 0
    %s88 = sadd.s32 %s87, 1
    %s89 = scalar_select %p86, %s87, %s88
    %p92 = pneg %p86
    %p93 = scmp.eq.s32.totalorder %s9, 1
    %p94 = por %p92, %p93
    %p95 = scmp.ne.s32.totalorder %s87, %s90
    %p96 = scmp.eq.s32.totalorder %s9, 0
    %p97 = por %p95, %p96
    %p98 = scmp.ne.s32.totalorder %s87, %s90
    %p99 = scmp.eq.s32.totalorder %s14, 1
    %p100 = por %p98, %p99
    %p101 = scmp.ne.s32.totalorder %s90, %s91
    %p102 = scmp.eq.s32.totalorder %s14, 0
    %p103 = por %p101, %p102
    %p104 = scmp.ne.s32.totalorder %s90, %s91
    %p105 = scmp.eq.s32.totalorder %s15, 1
    %p106 = por %p104, %p105
    %p108 = scmp.ne.s32.totalorder %s91, %s107
    %p109 = scmp.eq.s32.totalorder %s15, 0
    %p110 = por %p108, %p109
    %p111 = scmp.le.s32.totalorder 1, %s9
    %p112 = scmp.lt.s32.totalorder %s9, 3
    %p113 = pnand %p111, %p112
    %p114 = pneg %p113
    // Predicated region
    $region9: #{_lambda_.9} parent=5 // pred_check
      _
    $region10: #{_lambda_.9} parent=5 // pred_check_branch
      %116 = sbr.rel (%p113) target = $region12
    $region11: #{_lambda_.9} parent=5 // pred_region
      %s117 = ssub.s32 %s9, 1
      // Predicated region
      $region13: #{_lambda_.9} parent=11 // pred_check
        %p118 = pneg %p56
      $region14: #{_lambda_.9} parent=11 // pred_check_branch
        %120 = sbr.rel (%p118) target = $region16
      $region15: #{_lambda_.9} parent=11 // pred_region
        _
      $region16: #{_lambda_.9} parent=11 // pred_fallthru
        _
      // Predicated region
      $region17: #{_lambda_.9} parent=11 // pred_check
        %p121 = pneg %p77
      $region18: #{_lambda_.9} parent=11 // pred_check_branch
        %123 = sbr.rel (%p121) target = $region20
      $region19: #{_lambda_.9} parent=11 // pred_region
        _
      $region20: #{_lambda_.9} parent=11 // pred_fallthru
        _
    $region12: #{_lambda_.9} parent=5 // pred_fallthru
      _
    %p124 = scmp.lt.s32.totalorder %s9, 2
    // Predicated region
    $region21: #{_lambda_.9} parent=5 // pred_check
      %p125 = pneg %p124
    $region22: #{_lambda_.9} parent=5 // pred_check_branch
      %127 = sbr.rel (%p125) target = $region24
    $region23: #{_lambda_.9} parent=5 // pred_region
      // Predicated region
      $region25: #{_lambda_.9} parent=23 // pred_check
        %p128 = pneg %p29
      $region26: #{_lambda_.9} parent=23 // pred_check_branch
        %130 = sbr.rel (%p128) target = $region28
      $region27: #{_lambda_.9} parent=23 // pred_region
        %s131 = smul.u32 32, %s9
        %p132 = scmp.lt.s32.totalorder %s131, 63
        %s133 = scalar_select %p132, %s131, 63
        %s134 = smul.addr %s133, 4
        %s135 = scalar_lea.vmem %s0, %s134
        %s136 = smul.u32 32, %s9
      $region28: #{_lambda_.9} parent=23 // pred_fallthru
        _
    $region24: #{_lambda_.9} parent=5 // pred_fallthru
      _
    %p137 = scmp.le.s32.totalorder 1, %s9
    %p138 = scmp.lt.s32.totalorder %s9, 3
    %p139 = pnand %p137, %p138
    %p140 = pneg %p139
    // Predicated region
    $region29: #{_lambda_.9} parent=5 // pred_check
      _
    $region30: #{_lambda_.9} parent=5 // pred_check_branch
      %142 = sbr.rel (%p139) target = $region32
    $region31: #{_lambda_.9} parent=5 // pred_region
      %s143 = ssub.s32 %s9, 1
      %s144 = smul.u32 32, %s14
      %p145 = scmp.lt.s32.totalorder %s144, 63
      %s146 = scalar_select %p145, %s144, 63
      %s147 = smul.addr %s146, 4
      %s148 = scalar_lea.vmem %s0, %s147
      %p149 = pneg %p35
      %p150 = pneg %p32
      %p151 = pneg %p56
      %p152 = pneg %p53
      %p153 = pneg %p77
      %p154 = pneg %p74
      %p155 = pneg %p103
      %p156 = pneg %p100
      %s157 = smul.u32 32, %s14
      %p158 = scmp.lt.s32.totalorder %s157, 63
      %s159 = scalar_select %p158, %s157, 63
      %s160 = smul.addr %s159, 4
      %s161 = scalar_lea.vmem %s3, %s160
      %s162 = smul.u32 32, %s14
      %p163 = scmp.lt.s32.totalorder %s162, 63
      %s164 = scalar_select %p163, %s162, 63
      %s165 = smul.addr %s164, 4
      %s166 = scalar_lea.vmem %s0, %s165
      %s167 = smul.u32 32, %s14
      %s168 = smul.u32 32, %s14
      %p169 = scmp.lt.s32.totalorder %s168, 63
      %s170 = scalar_select %p169, %s168, 63
      %s171 = smul.addr %s170, 4
      %s172 = scalar_lea.vmem %s3, %s171
      %s173 = smul.u32 32, %s14
      %v174 = vld [vmem:[%s166] sm:$0xf]
      %v175 = vld [vmem:[%s166 + $0x4] sm:$0xf]
      %v176 = vld [vmem:[%s166 + $0x8] sm:$0xf]
      %v177 = vld [vmem:[%s166 + $0xc] sm:$0xf]
      %v178 = vld [vmem:[%s166 + $0x10] sm:$0xf]
      %v179 = vld [vmem:[%s166 + $0x14] sm:$0xf]
      %v180 = vld [vmem:[%s166 + $0x18] sm:$0xf]
      %v181 = vld [vmem:[%s166 + $0x1c] sm:$0xf]
      %v182 = vld [vmem:[%s166 + $0x20] sm:$0xf]
      %v183 = vld [vmem:[%s166 + $0x24] sm:$0xf]
      %v184 = vld [vmem:[%s166 + $0x28] sm:$0xf]
      %v185 = vld [vmem:[%s166 + $0x2c] sm:$0xf]
      %v186 = vld [vmem:[%s166 + $0x30] sm:$0xf]
      %v187 = vld [vmem:[%s166 + $0x34] sm:$0xf]
      %v188 = vld [vmem:[%s166 + $0x38] sm:$0xf]
      %v189 = vld [vmem:[%s166 + $0x3c] sm:$0xf]
      %v190 = vld [vmem:[%s166 + $0x40] sm:$0xf]
      %v191 = vld [vmem:[%s166 + $0x44] sm:$0xf]
      %v192 = vld [vmem:[%s166 + $0x48] sm:$0xf]
      %v193 = vld [vmem:[%s166 + $0x4c] sm:$0xf]
      %v194 = vld [vmem:[%s166 + $0x50] sm:$0xf]
      %v195 = vld [vmem:[%s166 + $0x54] sm:$0xf]
      %v196 = vld [vmem:[%s166 + $0x58] sm:$0xf]
      %v197 = vld [vmem:[%s166 + $0x5c] sm:$0xf]
      %v198 = vld [vmem:[%s166 + $0x60] sm:$0xf]
      %v199 = vld [vmem:[%s166 + $0x64] sm:$0xf]
      %v200 = vld [vmem:[%s166 + $0x68] sm:$0xf]
      %v201 = vld [vmem:[%s166 + $0x6c] sm:$0xf]
      %v202 = vld [vmem:[%s166 + $0x70] sm:$0xf]
      %v203 = vld [vmem:[%s166 + $0x74] sm:$0xf]
      %v204 = vld [vmem:[%s166 + $0x78] sm:$0xf]
      %v205 = vld [vmem:[%s166 + $0x7c] sm:$0xf]
      %v206 = vunpack.c.l.bf16 %v174
      %v207 = vunpack.c.l.bf16 %v175
      %v208 = vunpack.c.l.bf16 %v176
      %v209 = vunpack.c.l.bf16 %v177
      %v210 = vunpack.c.l.bf16 %v178
      %v211 = vunpack.c.l.bf16 %v179
      %v212 = vunpack.c.l.bf16 %v180
      %v213 = vunpack.c.l.bf16 %v181
      %v214 = vunpack.c.l.bf16 %v182
      %v215 = vunpack.c.l.bf16 %v183
      %v216 = vunpack.c.l.bf16 %v184
      %v217 = vunpack.c.l.bf16 %v185
      %v218 = vunpack.c.l.bf16 %v186
      %v219 = vunpack.c.l.bf16 %v187
      %v220 = vunpack.c.l.bf16 %v188
      %v221 = vunpack.c.l.bf16 %v189
      %v222 = vunpack.c.l.bf16 %v190
      %v223 = vunpack.c.l.bf16 %v191
      %v224 = vunpack.c.l.bf16 %v192
      %v225 = vunpack.c.l.bf16 %v193
      %v226 = vunpack.c.l.bf16 %v194
      %v227 = vunpack.c.l.bf16 %v195
      %v228 = vunpack.c.l.bf16 %v196
      %v229 = vunpack.c.l.bf16 %v197
      %v230 = vunpack.c.l.bf16 %v198
      %v231 = vunpack.c.l.bf16 %v199
      %v232 = vunpack.c.l.bf16 %v200
      %v233 = vunpack.c.l.bf16 %v201
      %v234 = vunpack.c.l.bf16 %v202
      %v235 = vunpack.c.l.bf16 %v203
      %v236 = vunpack.c.l.bf16 %v204
      %v237 = vunpack.c.l.bf16 %v205
      %v238 = vld [vmem:[%s1] sm:$0x1]
      %v240 = vlaneseq
      %v241 = vshrl.u32 %v240, 7
      %v242 = vsub.s32 0, %v241
      %v243 = vrot.slane %v238, %v242
      %v245 = vmul.f32 %v206, %v243
      %v246 = vmul.f32 %v207, %v243
      %v247 = vmul.f32 %v208, %v243
      %v248 = vmul.f32 %v209, %v243
      %v249 = vmul.f32 %v210, %v243
      %v250 = vmul.f32 %v211, %v243
      %v251 = vmul.f32 %v212, %v243
      %v252 = vmul.f32 %v213, %v243
      %v253 = vmul.f32 %v214, %v243
      %v254 = vmul.f32 %v215, %v243
      %v255 = vmul.f32 %v216, %v243
      %v256 = vmul.f32 %v217, %v243
      %v257 = vmul.f32 %v218, %v243
      %v258 = vmul.f32 %v219, %v243
      %v259 = vmul.f32 %v220, %v243
      %v260 = vmul.f32 %v221, %v243
      %v261 = vmul.f32 %v222, %v243
      %v262 = vmul.f32 %v223, %v243
      %v263 = vmul.f32 %v224, %v243
      %v264 = vmul.f32 %v225, %v243
      %v265 = vmul.f32 %v226, %v243
      %v266 = vmul.f32 %v227, %v243
      %v267 = vmul.f32 %v228, %v243
      %v268 = vmul.f32 %v229, %v243
      %v269 = vmul.f32 %v230, %v243
      %v270 = vmul.f32 %v231, %v243
      %v271 = vmul.f32 %v232, %v243
      %v272 = vmul.f32 %v233, %v243
      %v273 = vmul.f32 %v234, %v243
      %v274 = vmul.f32 %v235, %v243
      %v275 = vmul.f32 %v236, %v243
      %v276 = vmul.f32 %v237, %v243
      %v277 = vld [vmem:[%s2] sm:$0x1]
      %v279 = vlaneseq
      %v280 = vshrl.u32 %v279, 7
      %v281 = vsub.s32 0, %v280
      %v282 = vrot.slane %v277, %v281
      %v284 = vadd.f32 %v245, %v282
      %v285 = vadd.f32 %v246, %v282
      %v286 = vadd.f32 %v247, %v282
      %v287 = vadd.f32 %v248, %v282
      %v288 = vadd.f32 %v249, %v282
      %v289 = vadd.f32 %v250, %v282
      %v290 = vadd.f32 %v251, %v282
      %v291 = vadd.f32 %v252, %v282
      %v292 = vadd.f32 %v253, %v282
      %v293 = vadd.f32 %v254, %v282
      %v294 = vadd.f32 %v255, %v282
      %v295 = vadd.f32 %v256, %v282
      %v296 = vadd.f32 %v257, %v282
      %v297 = vadd.f32 %v258, %v282
      %v298 = vadd.f32 %v259, %v282
      %v299 = vadd.f32 %v260, %v282
      %v300 = vadd.f32 %v261, %v282
      %v301 = vadd.f32 %v262, %v282
      %v302 = vadd.f32 %v263, %v282
      %v303 = vadd.f32 %v264, %v282
      %v304 = vadd.f32 %v265, %v282
      %v305 = vadd.f32 %v266, %v282
      %v306 = vadd.f32 %v267, %v282
      %v307 = vadd.f32 %v268, %v282
      %v308 = vadd.f32 %v269, %v282
      %v309 = vadd.f32 %v270, %v282
      %v310 = vadd.f32 %v271, %v282
      %v311 = vadd.f32 %v272, %v282
      %v312 = vadd.f32 %v273, %v282
      %v313 = vadd.f32 %v274, %v282
      %v314 = vadd.f32 %v275, %v282
      %v315 = vadd.f32 %v276, %v282
      %vm316 = vcmp.gt.f32.partialorder %v284, 0.0
      %vm317 = vcmp.gt.f32.partialorder %v285, 0.0
      %vm318 = vcmp.gt.f32.partialorder %v286, 0.0
      %vm319 = vcmp.gt.f32.partialorder %v287, 0.0
      %vm320 = vcmp.gt.f32.partialorder %v288, 0.0
      %vm321 = vcmp.gt.f32.partialorder %v289, 0.0
      %vm322 = vcmp.gt.f32.partialorder %v290, 0.0
      %vm323 = vcmp.gt.f32.partialorder %v291, 0.0
      %vm324 = vcmp.gt.f32.partialorder %v292, 0.0
      %vm325 = vcmp.gt.f32.partialorder %v293, 0.0
      %vm326 = vcmp.gt.f32.partialorder %v294, 0.0
      %vm327 = vcmp.gt.f32.partialorder %v295, 0.0
      %vm328 = vcmp.gt.f32.partialorder %v296, 0.0
      %vm329 = vcmp.gt.f32.partialorder %v297, 0.0
      %vm330 = vcmp.gt.f32.partialorder %v298, 0.0
      %vm331 = vcmp.gt.f32.partialorder %v299, 0.0
      %vm332 = vcmp.gt.f32.partialorder %v300, 0.0
      %vm333 = vcmp.gt.f32.partialorder %v301, 0.0
      %vm334 = vcmp.gt.f32.partialorder %v302, 0.0
      %vm335 = vcmp.gt.f32.partialorder %v303, 0.0
      %vm336 = vcmp.gt.f32.partialorder %v304, 0.0
      %vm337 = vcmp.gt.f32.partialorder %v305, 0.0
      %vm338 = vcmp.gt.f32.partialorder %v306, 0.0
      %vm339 = vcmp.gt.f32.partialorder %v307, 0.0
      %vm340 = vcmp.gt.f32.partialorder %v308, 0.0
      %vm341 = vcmp.gt.f32.partialorder %v309, 0.0
      %vm342 = vcmp.gt.f32.partialorder %v310, 0.0
      %vm343 = vcmp.gt.f32.partialorder %v311, 0.0
      %vm344 = vcmp.gt.f32.partialorder %v312, 0.0
      %vm345 = vcmp.gt.f32.partialorder %v313, 0.0
      %vm346 = vcmp.gt.f32.partialorder %v314, 0.0
      %vm347 = vcmp.gt.f32.partialorder %v315, 0.0
      %v348 = vmul.f32 %v284, 0.05
      %v349 = vmul.f32 %v285, 0.05
      %v350 = vmul.f32 %v286, 0.05
      %v351 = vmul.f32 %v287, 0.05
      %v352 = vmul.f32 %v288, 0.05
      %v353 = vmul.f32 %v289, 0.05
      %v354 = vmul.f32 %v290, 0.05
      %v355 = vmul.f32 %v291, 0.05
      %v356 = vmul.f32 %v292, 0.05
      %v357 = vmul.f32 %v293, 0.05
      %v358 = vmul.f32 %v294, 0.05
      %v359 = vmul.f32 %v295, 0.05
      %v360 = vmul.f32 %v296, 0.05
      %v361 = vmul.f32 %v297, 0.05
      %v362 = vmul.f32 %v298, 0.05
      %v363 = vmul.f32 %v299, 0.05
      %v364 = vmul.f32 %v300, 0.05
      %v365 = vmul.f32 %v301, 0.05
      %v366 = vmul.f32 %v302, 0.05
      %v367 = vmul.f32 %v303, 0.05
      %v368 = vmul.f32 %v304, 0.05
      %v369 = vmul.f32 %v305, 0.05
      %v370 = vmul.f32 %v306, 0.05
      %v371 = vmul.f32 %v307, 0.05
      %v372 = vmul.f32 %v308, 0.05
      %v373 = vmul.f32 %v309, 0.05
      %v374 = vmul.f32 %v310, 0.05
      %v375 = vmul.f32 %v311, 0.05
      %v376 = vmul.f32 %v312, 0.05
      %v377 = vmul.f32 %v313, 0.05
      %v378 = vmul.f32 %v314, 0.05
      %v379 = vmul.f32 %v315, 0.05
      %v380 = vsel %vm316, %v284, %v348
      %v381 = vsel %vm317, %v285, %v349
      %v382 = vsel %vm318, %v286, %v350
      %v383 = vsel %vm319, %v287, %v351
      %v384 = vsel %vm320, %v288, %v352
      %v385 = vsel %vm321, %v289, %v353
      %v386 = vsel %vm322, %v290, %v354
      %v387 = vsel %vm323, %v291, %v355
      %v388 = vsel %vm324, %v292, %v356
      %v389 = vsel %vm325, %v293, %v357
      %v390 = vsel %vm326, %v294, %v358
      %v391 = vsel %vm327, %v295, %v359
      %v392 = vsel %vm328, %v296, %v360
      %v393 = vsel %vm329, %v297, %v361
      %v394 = vsel %vm330, %v298, %v362
      %v395 = vsel %vm331, %v299, %v363
      %v396 = vsel %vm332, %v300, %v364
      %v397 = vsel %vm333, %v301, %v365
      %v398 = vsel %vm334, %v302, %v366
      %v399 = vsel %vm335, %v303, %v367
      %v400 = vsel %vm336, %v304, %v368
      %v401 = vsel %vm337, %v305, %v369
      %v402 = vsel %vm338, %v306, %v370
      %v403 = vsel %vm339, %v307, %v371
      %v404 = vsel %vm340, %v308, %v372
      %v405 = vsel %vm341, %v309, %v373
      %v406 = vsel %vm342, %v310, %v374
      %v407 = vsel %vm343, %v311, %v375
      %v408 = vsel %vm344, %v312, %v376
      %v409 = vsel %vm345, %v313, %v377
      %v410 = vsel %vm346, %v314, %v378
      %v411 = vsel %vm347, %v315, %v379
      %v412 = vpack.c.bf16 %v381, %v380
      %v413 = vpack.c.bf16 %v383, %v382
      %v414 = vpack.c.bf16 %v385, %v384
      %v415 = vpack.c.bf16 %v387, %v386
      %v416 = vpack.c.bf16 %v389, %v388
      %v417 = vpack.c.bf16 %v391, %v390
      %v418 = vpack.c.bf16 %v393, %v392
      %v419 = vpack.c.bf16 %v395, %v394
      %v420 = vpack.c.bf16 %v397, %v396
      %v421 = vpack.c.bf16 %v399, %v398
      %v422 = vpack.c.bf16 %v401, %v400
      %v423 = vpack.c.bf16 %v403, %v402
      %v424 = vpack.c.bf16 %v405, %v404
      %v425 = vpack.c.bf16 %v407, %v406
      %v426 = vpack.c.bf16 %v409, %v408
      %v427 = vpack.c.bf16 %v411, %v410
      %v444 = vunpack.c.l.b16 %v412
      %v445 = vunpack.c.h.b16 %v412
      %v446 = vunpack.c.l.b16 %v413
      %v447 = vunpack.c.h.b16 %v413
      %v448 = vunpack.c.l.b16 %v414
      %v449 = vunpack.c.h.b16 %v414
      %v450 = vunpack.c.l.b16 %v415
      %v451 = vunpack.c.h.b16 %v415
      %v452 = vunpack.c.l.b16 %v416
      %v453 = vunpack.c.h.b16 %v416
      %v454 = vunpack.c.l.b16 %v417
      %v455 = vunpack.c.h.b16 %v417
      %v456 = vunpack.c.l.b16 %v418
      %v457 = vunpack.c.h.b16 %v418
      %v458 = vunpack.c.l.b16 %v419
      %v459 = vunpack.c.h.b16 %v419
      %v460 = vunpack.c.l.b16 %v420
      %v461 = vunpack.c.h.b16 %v420
      %v462 = vunpack.c.l.b16 %v421
      %v463 = vunpack.c.h.b16 %v421
      %v464 = vunpack.c.l.b16 %v422
      %v465 = vunpack.c.h.b16 %v422
      %v466 = vunpack.c.l.b16 %v423
      %v467 = vunpack.c.h.b16 %v423
      %v468 = vunpack.c.l.b16 %v424
      %v469 = vunpack.c.h.b16 %v424
      %v470 = vunpack.c.l.b16 %v425
      %v471 = vunpack.c.h.b16 %v425
      %v472 = vunpack.c.l.b16 %v426
      %v473 = vunpack.c.h.b16 %v426
      %v474 = vunpack.c.l.b16 %v427
      %v475 = vunpack.c.h.b16 %v427
      %v476 = vpack.c.b16 %v444, %v444
      %v477 = vpack.c.b16 %v445, %v445
      %v478 = vpack.c.b16 %v446, %v446
      %v479 = vpack.c.b16 %v447, %v447
      %v480 = vpack.c.b16 %v448, %v448
      %v481 = vpack.c.b16 %v449, %v449
      %v482 = vpack.c.b16 %v450, %v450
      %v483 = vpack.c.b16 %v451, %v451
      %v484 = vpack.c.b16 %v452, %v452
      %v485 = vpack.c.b16 %v453, %v453
      %v486 = vpack.c.b16 %v454, %v454
      %v487 = vpack.c.b16 %v455, %v455
      %v488 = vpack.c.b16 %v456, %v456
      %v489 = vpack.c.b16 %v457, %v457
      %v490 = vpack.c.b16 %v458, %v458
      %v491 = vpack.c.b16 %v459, %v459
      %v492 = vpack.c.b16 %v460, %v460
      %v493 = vpack.c.b16 %v461, %v461
      %v494 = vpack.c.b16 %v462, %v462
      %v495 = vpack.c.b16 %v463, %v463
      %v496 = vpack.c.b16 %v464, %v464
      %v497 = vpack.c.b16 %v465, %v465
      %v498 = vpack.c.b16 %v466, %v466
      %v499 = vpack.c.b16 %v467, %v467
      %v500 = vpack.c.b16 %v468, %v468
      %v501 = vpack.c.b16 %v469, %v469
      %v502 = vpack.c.b16 %v470, %v470
      %v503 = vpack.c.b16 %v471, %v471
      %v504 = vpack.c.b16 %v472, %v472
      %v505 = vpack.c.b16 %v473, %v473
      %v506 = vpack.c.b16 %v474, %v474
      %v507 = vpack.c.b16 %v475, %v475
      %540 = vst [vmem:[%s172] sm:$0xf] %v476
      %541 = vst [vmem:[%s172 + $0x4] sm:$0xf] %v477
      %542 = vst [vmem:[%s172 + $0x8] sm:$0xf] %v478
      %543 = vst [vmem:[%s172 + $0xc] sm:$0xf] %v479
      %544 = vst [vmem:[%s172 + $0x10] sm:$0xf] %v480
      %545 = vst [vmem:[%s172 + $0x14] sm:$0xf] %v481
      %546 = vst [vmem:[%s172 + $0x18] sm:$0xf] %v482
      %547 = vst [vmem:[%s172 + $0x1c] sm:$0xf] %v483
      %548 = vst [vmem:[%s172 + $0x20] sm:$0xf] %v484
      %549 = vst [vmem:[%s172 + $0x24] sm:$0xf] %v485
      %550 = vst [vmem:[%s172 + $0x28] sm:$0xf] %v486
      %551 = vst [vmem:[%s172 + $0x2c] sm:$0xf] %v487
      %552 = vst [vmem:[%s172 + $0x30] sm:$0xf] %v488
      %553 = vst [vmem:[%s172 + $0x34] sm:$0xf] %v489
      %554 = vst [vmem:[%s172 + $0x38] sm:$0xf] %v490
      %555 = vst [vmem:[%s172 + $0x3c] sm:$0xf] %v491
      %556 = vst [vmem:[%s172 + $0x40] sm:$0xf] %v492
      %557 = vst [vmem:[%s172 + $0x44] sm:$0xf] %v493
      %558 = vst [vmem:[%s172 + $0x48] sm:$0xf] %v494
      %559 = vst [vmem:[%s172 + $0x4c] sm:$0xf] %v495
      %560 = vst [vmem:[%s172 + $0x50] sm:$0xf] %v496
      %561 = vst [vmem:[%s172 + $0x54] sm:$0xf] %v497
      %562 = vst [vmem:[%s172 + $0x58] sm:$0xf] %v498
      %563 = vst [vmem:[%s172 + $0x5c] sm:$0xf] %v499
      %564 = vst [vmem:[%s172 + $0x60] sm:$0xf] %v500
      %565 = vst [vmem:[%s172 + $0x64] sm:$0xf] %v501
      %566 = vst [vmem:[%s172 + $0x68] sm:$0xf] %v502
      %567 = vst [vmem:[%s172 + $0x6c] sm:$0xf] %v503
      %568 = vst [vmem:[%s172 + $0x70] sm:$0xf] %v504
      %569 = vst [vmem:[%s172 + $0x74] sm:$0xf] %v505
      %570 = vst [vmem:[%s172 + $0x78] sm:$0xf] %v506
      %571 = vst [vmem:[%s172 + $0x7c] sm:$0xf] %v507
      %s572 = smul.u32 32, %s14
      %p573 = scmp.lt.s32.totalorder %s572, 63
      %s574 = scalar_select %p573, %s572, 63
      %s575 = smul.addr %s574, 4
      %s576 = scalar_lea.vmem %s3, %s575
      // Predicated region
      $region33: #{_lambda_.9} parent=31 // pred_check
        %p577 = pneg %p100
      $region34: #{_lambda_.9} parent=31 // pred_check_branch
        %579 = sbr.rel (%p577) target = $region36
      $region35: #{_lambda_.9} parent=31 // pred_region
        %s580 = smul.u32 32, %s14
      $region36: #{_lambda_.9} parent=31 // pred_fallthru
        _
    $region32: #{_lambda_.9} parent=5 // pred_fallthru
      _
    %p581 = scmp.le.s32.totalorder 2, %s9
    // Predicated region
    $region37: #{_lambda_.9} parent=5 // pred_check
      %p582 = pneg %p581
    $region38: #{_lambda_.9} parent=5 // pred_check_branch
      %584 = sbr.rel (%p582) target = $region40
    $region39: #{_lambda_.9} parent=5 // pred_region
      %s585 = ssub.s32 %s9, 2
      // Predicated region
      $region41: #{_lambda_.9} parent=39 // pred_check
        %p586 = pneg %p106
      $region42: #{_lambda_.9} parent=39 // pred_check_branch
        %588 = sbr.rel (%p586) target = $region44
      $region43: #{_lambda_.9} parent=39 // pred_region
        %s589 = smul.u32 32, %s15
        %p590 = scmp.lt.s32.totalorder %s589, 63
        %s591 = scalar_select %p590, %s589, 63
        %s592 = smul.addr %s591, 4
        %s593 = scalar_lea.vmem %s3, %s592
      $region44: #{_lambda_.9} parent=39 // pred_fallthru
        _
    $region40: #{_lambda_.9} parent=5 // pred_fallthru
      _
  $region6: #{_lambda_.9} parent=0 // loop_footer
    %s13 = sadd.s32 1, %s9
  $region7: #{_lambda_.9} parent=0 // loop_footer_branch
    %8 = sbr.rel target = $region3
  $region8: #{_lambda_.9} parent=0 // loop_exit
    _

// kernel: _lambda_.8
$region0: #{_lambda_.8}
  #allocation0 [shape = 'u32[]', space=smem, size = 0x4, offset = 0x4, fixed_abs, tag = 'smem constant byte address 0x4 - core index']
  #allocation1 [shape = 'u32[144,128]{1,0:T(1,128)}', space=vmem, size = 0x12000, scoped, tag = 'internal scratch']
  %s0 = inlined_call_operand.vmem [shape: bf16[512,80], index: 0, kind: input, shape index: {}]
  %s1 = inlined_call_operand.vmem [shape: bf16[80,128], index: 1, kind: input, shape index: {}]
  %s2 = inlined_call_operand.vmem [shape: bf16[512,128], index: 2, kind: output, shape index: {0}]
  %s3 = inlined_call_operand.vmem [shape: f32[16,128], index: 3, kind: output, shape index: {1}]
  %4 = xla_tuple %s2, %s3
  %s5 = sld [smem:[#allocation0]]
  $region49: #{_lambda_.8} parent=0
    _
  %s7 = ssub.s32 1, %s5
  %s8 = scalar_select 0, %s7, %s5
  loop: start=0, step=1, limit=4
  $region2: #{_lambda_.8} parent=0 // loop_pre_header
    _
  $region3: #{_lambda_.8} parent=0 // loop_header
    %s10 = sphi 0, %s14
    %p11 = scmp.ge.s32.totalorder %s10, 4
    %s20 = sphi 0, %s22
    %s23 = sphi 0, %s20
    %s24 = sphi 0, %s23
    %s40 = sphi 0, %s24
    %s44 = sphi 0, %s44
    %s46 = sphi 0, %s44
    %s47 = sphi 0, %s46
    %s61 = sphi 0, %s47
    %s67 = sphi 0, %s69
    %s70 = sphi 0, %s67
    %s71 = sphi 0, %s70
    %s87 = sphi 0, %s71
    %s93 = sphi 0, %s95
    %s96 = sphi 0, %s93
    %s97 = sphi 0, %s96
    %s113 = sphi 0, %s97
  $region4: #{_lambda_.8} parent=0 // loop_header_branch
    %13 = sbr.rel (%p11) target = $region8
  $region5: #{_lambda_.8} parent=0 // loop_body
    %s15 = ssub.s32 %s10, 1
    %s16 = ssub.s32 %s10, 2
    %s17 = sadd.s32 %s10, 1
    %s18 = ssub.s32 %s10, %s17
    %p19 = scmp.eq.s32.totalorder %s18, 0
    %s21 = sadd.s32 %s20, 1
    %s22 = scalar_select %p19, %s20, %s21
    %p25 = pneg %p19
    %p26 = scmp.eq.s32.totalorder %s10, 1
    %p27 = por %p25, %p26
    %p28 = scmp.ne.s32.totalorder %s20, %s23
    %p29 = scmp.eq.s32.totalorder %s10, 0
    %p30 = por %p28, %p29
    %p31 = scmp.ne.s32.totalorder %s20, %s23
    %p32 = scmp.eq.s32.totalorder %s15, 1
    %p33 = por %p31, %p32
    %p34 = scmp.ne.s32.totalorder %s23, %s24
    %p35 = scmp.eq.s32.totalorder %s15, 0
    %p36 = por %p34, %p35
    %p37 = scmp.ne.s32.totalorder %s23, %s24
    %p38 = scmp.eq.s32.totalorder %s16, 1
    %p39 = por %p37, %p38
    %p41 = scmp.ne.s32.totalorder %s24, %s40
    %p42 = scmp.eq.s32.totalorder %s16, 0
    %p43 = por %p41, %p42
    %s45 = sadd.s32 %s44, 1
    %p48 = scmp.eq.s32.totalorder %s10, 1
    %p49 = scmp.ne.s32.totalorder %s44, %s46
    %p50 = scmp.eq.s32.totalorder %s10, 0
    %p51 = por %p49, %p50
    %p52 = scmp.ne.s32.totalorder %s44, %s46
    %p53 = scmp.eq.s32.totalorder %s15, 1
    %p54 = por %p52, %p53
    %p55 = scmp.ne.s32.totalorder %s46, %s47
    %p56 = scmp.eq.s32.totalorder %s15, 0
    %p57 = por %p55, %p56
    %p58 = scmp.ne.s32.totalorder %s46, %s47
    %p59 = scmp.eq.s32.totalorder %s16, 1
    %p60 = por %p58, %p59
    %p62 = scmp.ne.s32.totalorder %s47, %s61
    %p63 = scmp.eq.s32.totalorder %s16, 0
    %p64 = por %p62, %p63
    %s65 = ssub.s32 %s10, %s17
    %p66 = scmp.eq.s32.totalorder %s65, 0
    %s68 = sadd.s32 %s67, 1
    %s69 = scalar_select %p66, %s67, %s68
    %p72 = pneg %p66
    %p73 = scmp.eq.s32.totalorder %s10, 1
    %p74 = por %p72, %p73
    %p75 = scmp.ne.s32.totalorder %s67, %s70
    %p76 = scmp.eq.s32.totalorder %s10, 0
    %p77 = por %p75, %p76
    %p78 = scmp.ne.s32.totalorder %s67, %s70
    %p79 = scmp.eq.s32.totalorder %s15, 1
    %p80 = por %p78, %p79
    %p81 = scmp.ne.s32.totalorder %s70, %s71
    %p82 = scmp.eq.s32.totalorder %s15, 0
    %p83 = por %p81, %p82
    %p84 = scmp.ne.s32.totalorder %s70, %s71
    %p85 = scmp.eq.s32.totalorder %s16, 1
    %p86 = por %p84, %p85
    %p88 = scmp.ne.s32.totalorder %s71, %s87
    %p89 = scmp.eq.s32.totalorder %s16, 0
    %p90 = por %p88, %p89
    %s91 = ssub.s32 %s10, %s17
    %p92 = scmp.eq.s32.totalorder %s91, 0
    %s94 = sadd.s32 %s93, 1
    %s95 = scalar_select %p92, %s93, %s94
    %p98 = pneg %p92
    %p99 = scmp.eq.s32.totalorder %s10, 1
    %p100 = por %p98, %p99
    %p101 = scmp.ne.s32.totalorder %s93, %s96
    %p102 = scmp.eq.s32.totalorder %s10, 0
    %p103 = por %p101, %p102
    %p104 = scmp.ne.s32.totalorder %s93, %s96
    %p105 = scmp.eq.s32.totalorder %s15, 1
    %p106 = por %p104, %p105
    %p107 = scmp.ne.s32.totalorder %s96, %s97
    %p108 = scmp.eq.s32.totalorder %s15, 0
    %p109 = por %p107, %p108
    %p110 = scmp.ne.s32.totalorder %s96, %s97
    %p111 = scmp.eq.s32.totalorder %s16, 1
    %p112 = por %p110, %p111
    %p114 = scmp.ne.s32.totalorder %s97, %s113
    %p115 = scmp.eq.s32.totalorder %s16, 0
    %p116 = por %p114, %p115
    %p117 = scmp.le.s32.totalorder 1, %s10
    %p118 = scmp.lt.s32.totalorder %s10, 3
    %p119 = pnand %p117, %p118
    %p120 = pneg %p119
    // Predicated region
    $region9: #{_lambda_.8} parent=5 // pred_check
      _
    $region10: #{_lambda_.8} parent=5 // pred_check_branch
      %122 = sbr.rel (%p119) target = $region12
    $region11: #{_lambda_.8} parent=5 // pred_region
      %s123 = ssub.s32 %s10, 1
      // Predicated region
      $region13: #{_lambda_.8} parent=11 // pred_check
        %p124 = pneg %p57
      $region14: #{_lambda_.8} parent=11 // pred_check_branch
        %126 = sbr.rel (%p124) target = $region16
      $region15: #{_lambda_.8} parent=11 // pred_region
        _
      $region16: #{_lambda_.8} parent=11 // pred_fallthru
        _
    $region12: #{_lambda_.8} parent=5 // pred_fallthru
      _
    %p127 = scmp.lt.s32.totalorder %s10, 2
    // Predicated region
    $region17: #{_lambda_.8} parent=5 // pred_check
      %p128 = pneg %p127
    $region18: #{_lambda_.8} parent=5 // pred_check_branch
      %130 = sbr.rel (%p128) target = $region20
    $region19: #{_lambda_.8} parent=5 // pred_region
      // Predicated region
      $region21: #{_lambda_.8} parent=19 // pred_check
        %p131 = pneg %p30
      $region22: #{_lambda_.8} parent=19 // pred_check_branch
        %133 = sbr.rel (%p131) target = $region24
      $region23: #{_lambda_.8} parent=19 // pred_region
        %s134 = smul.u32 32, %s10
        %p135 = scmp.lt.s32.totalorder %s134, 63
        %s136 = scalar_select %p135, %s134, 63
        %s137 = smul.addr %s136, 4
        %s138 = scalar_lea.vmem %s0, %s137
        %s139 = smul.u32 32, %s10
      $region24: #{_lambda_.8} parent=19 // pred_fallthru
        _
    $region20: #{_lambda_.8} parent=5 // pred_fallthru
      _
    %p140 = scmp.le.s32.totalorder 1, %s10
    %p141 = scmp.lt.s32.totalorder %s10, 3
    %p142 = pnand %p140, %p141
    %p143 = pneg %p142
    // Predicated region
    $region25: #{_lambda_.8} parent=5 // pred_check
      _
    $region26: #{_lambda_.8} parent=5 // pred_check_branch
      %145 = sbr.rel (%p142) target = $region28
    $region27: #{_lambda_.8} parent=5 // pred_region
      %s146 = ssub.s32 %s10, 1
      %s147 = smul.u32 32, %s15
      %p148 = scmp.lt.s32.totalorder %s147, 63
      %s149 = scalar_select %p148, %s147, 63
      %s150 = smul.addr %s149, 4
      %s151 = scalar_lea.vmem %s0, %s150
      %p152 = pneg %p36
      %p153 = pneg %p33
      %p154 = pneg %p57
      %p155 = pneg %p54
      %p156 = pneg %p83
      %p157 = pneg %p80
      %s158 = smul.u32 32, %s15
      %p159 = scmp.lt.s32.totalorder %s158, 63
      %s160 = scalar_select %p159, %s158, 63
      %s161 = smul.addr %s160, 4
      %s162 = scalar_lea.vmem %s2, %s161
      %p163 = pneg %p109
      %p164 = pneg %p106
      %p165 = scmp.lt.s32.totalorder %s15, 1
      %s166 = scalar_select %p165, %s15, 1
      %s167 = smul.addr %s166, 8
      %s168 = scalar_lea.vmem %s3, %s167
      %s169 = smul.u32 32, %s15
      %p170 = scmp.lt.s32.totalorder %s169, 63
      %s171 = scalar_select %p170, %s169, 63
      %s172 = smul.addr %s171, 4
      %s173 = scalar_lea.vmem %s0, %s172
      %s174 = smul.u32 32, %s15
      %s175 = smul.u32 32, %s15
      %p176 = scmp.lt.s32.totalorder %s175, 63
      %s177 = scalar_select %p176, %s175, 63
      %s178 = smul.addr %s177, 4
      %s179 = scalar_lea.vmem %s2, %s178
      %s180 = smul.u32 32, %s15
      %p181 = scmp.lt.s32.totalorder %s15, 1
      %s182 = scalar_select %p181, %s15, 1
      %s183 = smul.addr %s182, 8
      %s184 = scalar_lea.vmem %s3, %s183
      %v186 = vld [vmem:[%s173] sm:$0xf]
      %v187 = vld [vmem:[%s173 + $0x4] sm:$0xf]
      %v188 = vld [vmem:[%s173 + $0x8] sm:$0xf]
      %v189 = vld [vmem:[%s173 + $0xc] sm:$0xf]
      %v190 = vld [vmem:[%s173 + $0x10] sm:$0xf]
      %v191 = vld [vmem:[%s173 + $0x14] sm:$0xf]
      %v192 = vld [vmem:[%s173 + $0x18] sm:$0xf]
      %v193 = vld [vmem:[%s173 + $0x1c] sm:$0xf]
      %v194 = vld [vmem:[%s173 + $0x20] sm:$0xf]
      %v195 = vld [vmem:[%s173 + $0x24] sm:$0xf]
      %v196 = vld [vmem:[%s173 + $0x28] sm:$0xf]
      %v197 = vld [vmem:[%s173 + $0x2c] sm:$0xf]
      %v198 = vld [vmem:[%s173 + $0x30] sm:$0xf]
      %v199 = vld [vmem:[%s173 + $0x34] sm:$0xf]
      %v200 = vld [vmem:[%s173 + $0x38] sm:$0xf]
      %v201 = vld [vmem:[%s173 + $0x3c] sm:$0xf]
      %v202 = vld [vmem:[%s173 + $0x40] sm:$0xf]
      %v203 = vld [vmem:[%s173 + $0x44] sm:$0xf]
      %v204 = vld [vmem:[%s173 + $0x48] sm:$0xf]
      %v205 = vld [vmem:[%s173 + $0x4c] sm:$0xf]
      %v206 = vld [vmem:[%s173 + $0x50] sm:$0xf]
      %v207 = vld [vmem:[%s173 + $0x54] sm:$0xf]
      %v208 = vld [vmem:[%s173 + $0x58] sm:$0xf]
      %v209 = vld [vmem:[%s173 + $0x5c] sm:$0xf]
      %v210 = vld [vmem:[%s173 + $0x60] sm:$0xf]
      %v211 = vld [vmem:[%s173 + $0x64] sm:$0xf]
      %v212 = vld [vmem:[%s173 + $0x68] sm:$0xf]
      %v213 = vld [vmem:[%s173 + $0x6c] sm:$0xf]
      %v214 = vld [vmem:[%s173 + $0x70] sm:$0xf]
      %v215 = vld [vmem:[%s173 + $0x74] sm:$0xf]
      %v216 = vld [vmem:[%s173 + $0x78] sm:$0xf]
      %v217 = vld [vmem:[%s173 + $0x7c] sm:$0xf]
      %v218 = vld [vmem:[%s1] sm:$0xf]
      %v219 = vld [vmem:[%s1 + $0x4] sm:$0xf]
      %v220 = vld [vmem:[%s1 + $0x8] sm:$0xf]
      %v221 = vld [vmem:[%s1 + $0xc] sm:$0xf]
      %v222 = vld [vmem:[%s1 + $0x10] sm:$0xf]
      %v223 = vld [vmem:[%s1 + $0x14] sm:$0xf]
      %v224 = vld [vmem:[%s1 + $0x18] sm:$0xf]
      %v225 = vld [vmem:[%s1 + $0x1c] sm:$0xf]
      %v226 = vld [vmem:[%s1 + $0x20] sm:$0xf]
      %v227 = vld [vmem:[%s1 + $0x24] sm:$0xf]
      %v260 = vunpack.c.l.b16 %v186
      %v261 = vunpack.c.l.b16 %v187
      %v262 = vunpack.c.l.b16 %v188
      %v263 = vunpack.c.l.b16 %v189
      %v264 = vunpack.c.l.b16 %v190
      %v265 = vunpack.c.l.b16 %v191
      %v266 = vunpack.c.l.b16 %v192
      %v267 = vunpack.c.l.b16 %v193
      %v268 = vunpack.c.l.b16 %v194
      %v269 = vunpack.c.l.b16 %v195
      %v270 = vunpack.c.l.b16 %v196
      %v271 = vunpack.c.l.b16 %v197
      %v272 = vunpack.c.l.b16 %v198
      %v273 = vunpack.c.l.b16 %v199
      %v274 = vunpack.c.l.b16 %v200
      %v275 = vunpack.c.l.b16 %v201
      %v276 = vunpack.c.l.b16 %v202
      %v277 = vunpack.c.l.b16 %v203
      %v278 = vunpack.c.l.b16 %v204
      %v279 = vunpack.c.l.b16 %v205
      %v280 = vunpack.c.l.b16 %v206
      %v281 = vunpack.c.l.b16 %v207
      %v282 = vunpack.c.l.b16 %v208
      %v283 = vunpack.c.l.b16 %v209
      %v284 = vunpack.c.l.b16 %v210
      %v285 = vunpack.c.l.b16 %v211
      %v286 = vunpack.c.l.b16 %v212
      %v287 = vunpack.c.l.b16 %v213
      %v288 = vunpack.c.l.b16 %v214
      %v289 = vunpack.c.l.b16 %v215
      %v290 = vunpack.c.l.b16 %v216
      %v291 = vunpack.c.l.b16 %v217
      %v292 = vpack.c.b16 %v261, %v260
      %v293 = vpack.c.b16 %v263, %v262
      %v294 = vpack.c.b16 %v265, %v264
      %v295 = vpack.c.b16 %v267, %v266
      %v296 = vpack.c.b16 %v269, %v268
      %v297 = vpack.c.b16 %v271, %v270
      %v298 = vpack.c.b16 %v273, %v272
      %v299 = vpack.c.b16 %v275, %v274
      %v300 = vpack.c.b16 %v277, %v276
      %v301 = vpack.c.b16 %v279, %v278
      %v302 = vpack.c.b16 %v281, %v280
      %v303 = vpack.c.b16 %v283, %v282
      %v304 = vpack.c.b16 %v285, %v284
      %v305 = vpack.c.b16 %v287, %v286
      %v306 = vpack.c.b16 %v289, %v288
      %v307 = vpack.c.b16 %v291, %v290
      %v318 = vunpack.c.l.b16 %v218
      %v319 = vunpack.c.l.b16 %v219
      %v320 = vunpack.c.l.b16 %v220
      %v321 = vunpack.c.l.b16 %v221
      %v322 = vunpack.c.l.b16 %v222
      %v323 = vunpack.c.l.b16 %v223
      %v324 = vunpack.c.l.b16 %v224
      %v325 = vunpack.c.l.b16 %v225
      %v326 = vunpack.c.l.b16 %v226
      %v327 = vunpack.c.l.b16 %v227
      %v328 = vpack.c.b16 %v319, %v318
      %v329 = vpack.c.b16 %v321, %v320
      %v330 = vpack.c.b16 %v323, %v322
      %v331 = vpack.c.b16 %v325, %v324
      %v332 = vpack.c.b16 %v327, %v326
      %vm338 = vcmask 654336
      %v340 = vsel %vm338, %v292, 0
      %v343 = vsel %vm338, %v293, 0
      %v346 = vsel %vm338, %v294, 0
      %v349 = vsel %vm338, %v295, 0
      %v352 = vsel %vm338, %v296, 0
      %v355 = vsel %vm338, %v297, 0
      %v358 = vsel %vm338, %v298, 0
      %v361 = vsel %vm338, %v299, 0
      %v364 = vsel %vm338, %v300, 0
      %v367 = vsel %vm338, %v301, 0
      %v370 = vsel %vm338, %v302, 0
      %v373 = vsel %vm338, %v303, 0
      %v376 = vsel %vm338, %v304, 0
      %v379 = vsel %vm338, %v305, 0
      %v382 = vsel %vm338, %v306, 0
      %v385 = vsel %vm338, %v307, 0
      %387 = vmatprep.subr.bf16.mxu0 0
      %388 = vmatpush1.bf16.msra.mxu0 %v328
      %389 = vmatprep.subr.bf16.mxu0 0
      %390 = vmatpush1.bf16.msra.mxu0 %v329
      %391 = vmatprep.subr.bf16.mxu0 0
      %392 = vmatpush1.bf16.msra.mxu0 %v330
      %393 = vmatprep.subr.bf16.mxu0 0
      %394 = vmatpush1.bf16.msra.mxu0 %v331
      %395 = vmatprep.subr.bf16.mxu0 0
      %396 = vmatpush1.bf16.msra.mxu0 %v332
      %397 = vmatprep.subr.bf16.mxu0 0
      %398 = vmatpush1.bf16.msra.mxu0 0
      %399 = vmatprep.subr.bf16.mxu0 0
      %400 = vmatpush1.bf16.msra.mxu0 0
      %401 = vmatprep.subr.bf16.mxu0 0
      %402 = vmatpush1.bf16.msra.mxu0 0
      %403 = vmatprep.subr.bf16.mxu0 0
      %404 = vmatpush1.bf16.msra.mxu0 0
      %405 = vmatprep.subr.bf16.mxu0 0
      %406 = vmatpush1.bf16.msra.mxu0 0
      %407 = vmatprep.subr.bf16.mxu0 0
      %408 = vmatpush1.bf16.msra.mxu0 0
      %409 = vmatprep.subr.bf16.mxu0 0
      %410 = vmatpush1.bf16.msra.mxu0 0
      %411 = vmatprep.subr.bf16.mxu0 0
      %412 = vmatpush1.bf16.msra.mxu0 0
      %413 = vmatprep.subr.bf16.mxu0 0
      %414 = vmatpush1.bf16.msra.mxu0 0
      %415 = vmatprep.subr.bf16.mxu0 0
      %416 = vmatpush1.bf16.msra.mxu0 0
      %417 = vmatprep.subr.bf16.mxu0 0
      %418 = vmatpush1.bf16.msra.mxu0 0
      %419 = vmatprep.mubr.bf16.mxu0 0
      %420 = vmatmul.mubr.bf16.gmra.mrb[0].mxu0 %v340
      %v421 = vpop.f32.mrb[0].mxu0
      %v422 = vadd.f32 0.0, %v421
      %v423 = vpop.f32.mrb[0].mxu0
      %v424 = vpop.f32.mrb[0].mxu0
      %v425 = vadd.f32 0.0, %v424
      %v426 = vpop.f32.mrb[0].mxu0
      %427 = vmatprep.mubr.bf16.mxu0 0
      %428 = vmatmul.mubr.bf16.gmra.mrb[0].mxu0 %v343
      %v429 = vpop.f32.mrb[0].mxu0
      %v430 = vadd.f32 0.0, %v429
      %v431 = vpop.f32.mrb[0].mxu0
      %v432 = vpop.f32.mrb[0].mxu0
      %v433 = vadd.f32 0.0, %v432
      %v434 = vpop.f32.mrb[0].mxu0
      %435 = vmatprep.mubr.bf16.mxu0 0
      %436 = vmatmul.mubr.bf16.gmra.mrb[0].mxu0 %v346
      %v437 = vpop.f32.mrb[0].mxu0
      %v438 = vadd.f32 0.0, %v437
      %v439 = vpop.f32.mrb[0].mxu0
      %v440 = vpop.f32.mrb[0].mxu0
      %v441 = vadd.f32 0.0, %v440
      %v442 = vpop.f32.mrb[0].mxu0
      %443 = vmatprep.mubr.bf16.mxu0 0
      %444 = vmatmul.mubr.bf16.gmra.mrb[0].mxu0 %v349
      %v445 = vpop.f32.mrb[0].mxu0
      %v446 = vadd.f32 0.0, %v445
      %v447 = vpop.f32.mrb[0].mxu0
      %v448 = vpop.f32.mrb[0].mxu0
      %v449 = vadd.f32 0.0, %v448
      %v450 = vpop.f32.mrb[0].mxu0
      %451 = vmatprep.mubr.bf16.mxu0 0
      %452 = vmatmul.mubr.bf16.gmra.mrb[0].mxu0 %v352
      %v453 = vpop.f32.mrb[0].mxu0
      %v454 = vadd.f32 0.0, %v453
      %v455 = vpop.f32.mrb[0].mxu0
      %v456 = vpop.f32.mrb[0].mxu0
      %v457 = vadd.f32 0.0, %v456
      %v458 = vpop.f32.mrb[0].mxu0
      %459 = vmatprep.mubr.bf16.mxu0 0
      %460 = vmatmul.mubr.bf16.gmra.mrb[0].mxu0 %v355
      %v461 = vpop.f32.mrb[0].mxu0
      %v462 = vadd.f32 0.0, %v461
      %v463 = vpop.f32.mrb[0].mxu0
      %v464 = vpop.f32.mrb[0].mxu0
      %v465 = vadd.f32 0.0, %v464
      %v466 = vpop.f32.mrb[0].mxu0
      %467 = vmatprep.mubr.bf16.mxu0 0
      %468 = vmatmul.mubr.bf16.gmra.mrb[0].mxu0 %v358
      %v469 = vpop.f32.mrb[0].mxu0
      %v470 = vadd.f32 0.0, %v469
      %v471 = vpop.f32.mrb[0].mxu0
      %v472 = vpop.f32.mrb[0].mxu0
      %v473 = vadd.f32 0.0, %v472
      %v474 = vpop.f32.mrb[0].mxu0
      %475 = vmatprep.mubr.bf16.mxu0 0
      %476 = vmatmul.mubr.bf16.gmra.mrb[0].mxu0 %v361
      %v477 = vpop.f32.mrb[0].mxu0
      %v478 = vadd.f32 0.0, %v477
      %v479 = vpop.f32.mrb[0].mxu0
      %v480 = vpop.f32.mrb[0].mxu0
      %v481 = vadd.f32 0.0, %v480
      %v482 = vpop.f32.mrb[0].mxu0
      %483 = vmatprep.mubr.bf16.mxu0 0
      %484 = vmatmul.mubr.bf16.gmra.mrb[0].mxu0 %v364
      %v485 = vpop.f32.mrb[0].mxu0
      %v486 = vadd.f32 0.0, %v485
      %v487 = vpop.f32.mrb[0].mxu0
      %v488 = vpop.f32.mrb[0].mxu0
      %v489 = vadd.f32 0.0, %v488
      %v490 = vpop.f32.mrb[0].mxu0
      %491 = vmatprep.mubr.bf16.mxu0 0
      %492 = vmatmul.mubr.bf16.gmra.mrb[0].mxu0 %v367
      %v493 = vpop.f32.mrb[0].mxu0
      %v494 = vadd.f32 0.0, %v493
      %v495 = vpop.f32.mrb[0].mxu0
      %v496 = vpop.f32.mrb[0].mxu0
      %v497 = vadd.f32 0.0, %v496
      %v498 = vpop.f32.mrb[0].mxu0
      %499 = vmatprep.mubr.bf16.mxu0 0
      %500 = vmatmul.mubr.bf16.gmra.mrb[0].mxu0 %v370
      %v501 = vpop.f32.mrb[0].mxu0
      %v502 = vadd.f32 0.0, %v501
      %v503 = vpop.f32.mrb[0].mxu0
      %v504 = vpop.f32.mrb[0].mxu0
      %v505 = vadd.f32 0.0, %v504
      %v506 = vpop.f32.mrb[0].mxu0
      %507 = vmatprep.mubr.bf16.mxu0 0
      %508 = vmatmul.mubr.bf16.gmra.mrb[0].mxu0 %v373
      %v509 = vpop.f32.mrb[0].mxu0
      %v510 = vadd.f32 0.0, %v509
      %v511 = vpop.f32.mrb[0].mxu0
      %v512 = vpop.f32.mrb[0].mxu0
      %v513 = vadd.f32 0.0, %v512
      %v514 = vpop.f32.mrb[0].mxu0
      %515 = vmatprep.mubr.bf16.mxu0 0
      %516 = vmatmul.mubr.bf16.gmra.mrb[0].mxu0 %v376
      %v517 = vpop.f32.mrb[0].mxu0
      %v518 = vadd.f32 0.0, %v517
      %v519 = vpop.f32.mrb[0].mxu0
      %v520 = vpop.f32.mrb[0].mxu0
      %v521 = vadd.f32 0.0, %v520
      %v522 = vpop.f32.mrb[0].mxu0
      %523 = vmatprep.mubr.bf16.mxu0 0
      %524 = vmatmul.mubr.bf16.gmra.mrb[0].mxu0 %v379
      %v525 = vpop.f32.mrb[0].mxu0
      %v526 = vadd.f32 0.0, %v525
      %v527 = vpop.f32.mrb[0].mxu0
      %v528 = vpop.f32.mrb[0].mxu0
      %v529 = vadd.f32 0.0, %v528
      %v530 = vpop.f32.mrb[0].mxu0
      %531 = vmatprep.mubr.bf16.mxu0 0
      %532 = vmatmul.mubr.bf16.gmra.mrb[0].mxu0 %v382
      %v533 = vpop.f32.mrb[0].mxu0
      %v534 = vadd.f32 0.0, %v533
      %v535 = vpop.f32.mrb[0].mxu0
      %v536 = vpop.f32.mrb[0].mxu0
      %v537 = vadd.f32 0.0, %v536
      %v538 = vpop.f32.mrb[0].mxu0
      %539 = vmatprep.mubr.bf16.mxu0 0
      %540 = vmatmul.mubr.bf16.gmra.mrb[0].mxu0 %v385
      %v541 = vpop.f32.mrb[0].mxu0
      %v542 = vadd.f32 0.0, %v541
      %v543 = vpop.f32.mrb[0].mxu0
      %v544 = vpop.f32.mrb[0].mxu0
      %v545 = vadd.f32 0.0, %v544
      %v546 = vpop.f32.mrb[0].mxu0
      %547 = vdwg.mxu0
      %v548 = vpack.c.bf16 %v425, %v422
      %v549 = vpack.c.bf16 %v433, %v430
      %v550 = vpack.c.bf16 %v441, %v438
      %v551 = vpack.c.bf16 %v449, %v446
      %v552 = vpack.c.bf16 %v457, %v454
      %v553 = vpack.c.bf16 %v465, %v462
      %v554 = vpack.c.bf16 %v473, %v470
      %v555 = vpack.c.bf16 %v481, %v478
      %v556 = vpack.c.bf16 %v489, %v486
      %v557 = vpack.c.bf16 %v497, %v494
      %v558 = vpack.c.bf16 %v505, %v502
      %v559 = vpack.c.bf16 %v513, %v510
      %v560 = vpack.c.bf16 %v521, %v518
      %v561 = vpack.c.bf16 %v529, %v526
      %v562 = vpack.c.bf16 %v537, %v534
      %v563 = vpack.c.bf16 %v545, %v542
      %v580 = vunpack.c.l.b16 %v548
      %v581 = vunpack.c.h.b16 %v548
      %v582 = vunpack.c.l.b16 %v549
      %v583 = vunpack.c.h.b16 %v549
      %v584 = vunpack.c.l.b16 %v550
      %v585 = vunpack.c.h.b16 %v550
      %v586 = vunpack.c.l.b16 %v551
      %v587 = vunpack.c.h.b16 %v551
      %v588 = vunpack.c.l.b16 %v552
      %v589 = vunpack.c.h.b16 %v552
      %v590 = vunpack.c.l.b16 %v553
      %v591 = vunpack.c.h.b16 %v553
      %v592 = vunpack.c.l.b16 %v554
      %v593 = vunpack.c.h.b16 %v554
      %v594 = vunpack.c.l.b16 %v555
      %v595 = vunpack.c.h.b16 %v555
      %v596 = vunpack.c.l.b16 %v556
      %v597 = vunpack.c.h.b16 %v556
      %v598 = vunpack.c.l.b16 %v557
      %v599 = vunpack.c.h.b16 %v557
      %v600 = vunpack.c.l.b16 %v558
      %v601 = vunpack.c.h.b16 %v558
      %v602 = vunpack.c.l.b16 %v559
      %v603 = vunpack.c.h.b16 %v559
      %v604 = vunpack.c.l.b16 %v560
      %v605 = vunpack.c.h.b16 %v560
      %v606 = vunpack.c.l.b16 %v561
      %v607 = vunpack.c.h.b16 %v561
      %v608 = vunpack.c.l.b16 %v562
      %v609 = vunpack.c.h.b16 %v562
      %v610 = vunpack.c.l.b16 %v563
      %v611 = vunpack.c.h.b16 %v563
      %v612 = vpack.c.b16 %v580, %v580
      %v613 = vpack.c.b16 %v581, %v581
      %v614 = vpack.c.b16 %v582, %v582
      %v615 = vpack.c.b16 %v583, %v583
      %v616 = vpack.c.b16 %v584, %v584
      %v617 = vpack.c.b16 %v585, %v585
      %v618 = vpack.c.b16 %v586, %v586
      %v619 = vpack.c.b16 %v587, %v587
      %v620 = vpack.c.b16 %v588, %v588
      %v621 = vpack.c.b16 %v589, %v589
      %v622 = vpack.c.b16 %v590, %v590
      %v623 = vpack.c.b16 %v591, %v591
      %v624 = vpack.c.b16 %v592, %v592
      %v625 = vpack.c.b16 %v593, %v593
      %v626 = vpack.c.b16 %v594, %v594
      %v627 = vpack.c.b16 %v595, %v595
      %v628 = vpack.c.b16 %v596, %v596
      %v629 = vpack.c.b16 %v597, %v597
      %v630 = vpack.c.b16 %v598, %v598
      %v631 = vpack.c.b16 %v599, %v599
      %v632 = vpack.c.b16 %v600, %v600
      %v633 = vpack.c.b16 %v601, %v601
      %v634 = vpack.c.b16 %v602, %v602
      %v635 = vpack.c.b16 %v603, %v603
      %v636 = vpack.c.b16 %v604, %v604
      %v637 = vpack.c.b16 %v605, %v605
      %v638 = vpack.c.b16 %v606, %v606
      %v639 = vpack.c.b16 %v607, %v607
      %v640 = vpack.c.b16 %v608, %v608
      %v641 = vpack.c.b16 %v609, %v609
      %v642 = vpack.c.b16 %v610, %v610
      %v643 = vpack.c.b16 %v611, %v611
      %676 = vst [vmem:[%s179] sm:$0xf] %v612
      %677 = vst [vmem:[%s179 + $0x4] sm:$0xf] %v613
      %678 = vst [vmem:[%s179 + $0x8] sm:$0xf] %v614
      %679 = vst [vmem:[%s179 + $0xc] sm:$0xf] %v615
      %680 = vst [vmem:[%s179 + $0x10] sm:$0xf] %v616
      %681 = vst [vmem:[%s179 + $0x14] sm:$0xf] %v617
      %682 = vst [vmem:[%s179 + $0x18] sm:$0xf] %v618
      %683 = vst [vmem:[%s179 + $0x1c] sm:$0xf] %v619
      %684 = vst [vmem:[%s179 + $0x20] sm:$0xf] %v620
      %685 = vst [vmem:[%s179 + $0x24] sm:$0xf] %v621
      %686 = vst [vmem:[%s179 + $0x28] sm:$0xf] %v622
      %687 = vst [vmem:[%s179 + $0x2c] sm:$0xf] %v623
      %688 = vst [vmem:[%s179 + $0x30] sm:$0xf] %v624
      %689 = vst [vmem:[%s179 + $0x34] sm:$0xf] %v625
      %690 = vst [vmem:[%s179 + $0x38] sm:$0xf] %v626
      %691 = vst [vmem:[%s179 + $0x3c] sm:$0xf] %v627
      %692 = vst [vmem:[%s179 + $0x40] sm:$0xf] %v628
      %693 = vst [vmem:[%s179 + $0x44] sm:$0xf] %v629
      %694 = vst [vmem:[%s179 + $0x48] sm:$0xf] %v630
      %695 = vst [vmem:[%s179 + $0x4c] sm:$0xf] %v631
      %696 = vst [vmem:[%s179 + $0x50] sm:$0xf] %v632
      %697 = vst [vmem:[%s179 + $0x54] sm:$0xf] %v633
      %698 = vst [vmem:[%s179 + $0x58] sm:$0xf] %v634
      %699 = vst [vmem:[%s179 + $0x5c] sm:$0xf] %v635
      %700 = vst [vmem:[%s179 + $0x60] sm:$0xf] %v636
      %701 = vst [vmem:[%s179 + $0x64] sm:$0xf] %v637
      %702 = vst [vmem:[%s179 + $0x68] sm:$0xf] %v638
      %703 = vst [vmem:[%s179 + $0x6c] sm:$0xf] %v639
      %704 = vst [vmem:[%s179 + $0x70] sm:$0xf] %v640
      %705 = vst [vmem:[%s179 + $0x74] sm:$0xf] %v641
      %706 = vst [vmem:[%s179 + $0x78] sm:$0xf] %v642
      %707 = vst [vmem:[%s179 + $0x7c] sm:$0xf] %v643
      %v708 = vadd.f32 %v422, %v425
      %v709 = vadd.f32 %v708, %v430
      %v710 = vadd.f32 %v709, %v433
      %v711 = vadd.f32 %v710, %v438
      %v712 = vadd.f32 %v711, %v441
      %v713 = vadd.f32 %v712, %v446
      %v714 = vadd.f32 %v713, %v449
      %v715 = vadd.f32 %v714, %v454
      %v716 = vadd.f32 %v715, %v457
      %v717 = vadd.f32 %v716, %v462
      %v718 = vadd.f32 %v717, %v465
      %v719 = vadd.f32 %v718, %v470
      %v720 = vadd.f32 %v719, %v473
      %v721 = vadd.f32 %v720, %v478
      %v722 = vadd.f32 %v721, %v481
      %v723 = vadd.f32 %v722, %v486
      %v724 = vadd.f32 %v723, %v489
      %v725 = vadd.f32 %v724, %v494
      %v726 = vadd.f32 %v725, %v497
      %v727 = vadd.f32 %v726, %v502
      %v728 = vadd.f32 %v727, %v505
      %v729 = vadd.f32 %v728, %v510
      %v730 = vadd.f32 %v729, %v513
      %v731 = vadd.f32 %v730, %v518
      %v732 = vadd.f32 %v731, %v521
      %v733 = vadd.f32 %v732, %v526
      %v734 = vadd.f32 %v733, %v529
      %v735 = vadd.f32 %v734, %v534
      %v736 = vadd.f32 %v735, %v537
      %v737 = vadd.f32 %v736, %v542
      %v738 = vadd.f32 %v737, %v545
      %v739 = vrot.slane %v738, 4
      %v740 = vadd.f32 %v738, %v739
      %v741 = vrot.slane %v740, 2
      %v742 = vadd.f32 %v740, %v741
      %v743 = vrot.slane %v742, 1
      %v744 = vadd.f32 %v742, %v743
      %745 = vst [vmem:[%s184] sm:$0x1] %v744
      %v746 = vmul.f32 %v422, %v422
      %v747 = vmul.f32 %v425, %v425
      %v748 = vmul.f32 %v430, %v430
      %v749 = vmul.f32 %v433, %v433
      %v750 = vmul.f32 %v438, %v438
      %v751 = vmul.f32 %v441, %v441
      %v752 = vmul.f32 %v446, %v446
      %v753 = vmul.f32 %v449, %v449
      %v754 = vmul.f32 %v454, %v454
      %v755 = vmul.f32 %v457, %v457
      %v756 = vmul.f32 %v462, %v462
      %v757 = vmul.f32 %v465, %v465
      %v758 = vmul.f32 %v470, %v470
      %v759 = vmul.f32 %v473, %v473
      %v760 = vmul.f32 %v478, %v478
      %v761 = vmul.f32 %v481, %v481
      %v762 = vmul.f32 %v486, %v486
      %v763 = vmul.f32 %v489, %v489
      %v764 = vmul.f32 %v494, %v494
      %v765 = vmul.f32 %v497, %v497
      %v766 = vmul.f32 %v502, %v502
      %v767 = vmul.f32 %v505, %v505
      %v768 = vmul.f32 %v510, %v510
      %v769 = vmul.f32 %v513, %v513
      %v770 = vmul.f32 %v518, %v518
      %v771 = vmul.f32 %v521, %v521
      %v772 = vmul.f32 %v526, %v526
      %v773 = vmul.f32 %v529, %v529
      %v774 = vmul.f32 %v534, %v534
      %v775 = vmul.f32 %v537, %v537
      %v776 = vmul.f32 %v542, %v542
      %v777 = vmul.f32 %v545, %v545
      %v778 = vadd.f32 %v746, %v747
      %v779 = vadd.f32 %v778, %v748
      %v780 = vadd.f32 %v779, %v749
      %v781 = vadd.f32 %v780, %v750
      %v782 = vadd.f32 %v781, %v751
      %v783 = vadd.f32 %v782, %v752
      %v784 = vadd.f32 %v783, %v753
      %v785 = vadd.f32 %v784, %v754
      %v786 = vadd.f32 %v785, %v755
      %v787 = vadd.f32 %v786, %v756
      %v788 = vadd.f32 %v787, %v757
      %v789 = vadd.f32 %v788, %v758
      %v790 = vadd.f32 %v789, %v759
      %v791 = vadd.f32 %v790, %v760
      %v792 = vadd.f32 %v791, %v761
      %v793 = vadd.f32 %v792, %v762
      %v794 = vadd.f32 %v793, %v763
      %v795 = vadd.f32 %v794, %v764
      %v796 = vadd.f32 %v795, %v765
      %v797 = vadd.f32 %v796, %v766
      %v798 = vadd.f32 %v797, %v767
      %v799 = vadd.f32 %v798, %v768
      %v800 = vadd.f32 %v799, %v769
      %v801 = vadd.f32 %v800, %v770
      %v802 = vadd.f32 %v801, %v771
      %v803 = vadd.f32 %v802, %v772
      %v804 = vadd.f32 %v803, %v773
      %v805 = vadd.f32 %v804, %v774
      %v806 = vadd.f32 %v805, %v775
      %v807 = vadd.f32 %v806, %v776
      %v808 = vadd.f32 %v807, %v777
      %v809 = vrot.slane %v808, 4
      %v810 = vadd.f32 %v808, %v809
      %v811 = vrot.slane %v810, 2
      %v812 = vadd.f32 %v810, %v811
      %v813 = vrot.slane %v812, 1
      %v814 = vadd.f32 %v812, %v813
      %815 = vst [vmem:[%s184 + $0x1] sm:$0x1] %v814
      %s816 = smul.u32 32, %s15
      %p817 = scmp.lt.s32.totalorder %s816, 63
      %s818 = scalar_select %p817, %s816, 63
      %s819 = smul.addr %s818, 4
      %s820 = scalar_lea.vmem %s2, %s819
      %p821 = scmp.lt.s32.totalorder %s15, 1
      %s822 = scalar_select %p821, %s15, 1
      %s823 = smul.addr %s822, 8
      %s824 = scalar_lea.vmem %s3, %s823
      // Predicated region
      $region29: #{_lambda_.8} parent=27 // pred_check
        %p825 = pneg %p80
      $region30: #{_lambda_.8} parent=27 // pred_check_branch
        %827 = sbr.rel (%p825) target = $region32
      $region31: #{_lambda_.8} parent=27 // pred_region
        %s828 = smul.u32 32, %s15
      $region32: #{_lambda_.8} parent=27 // pred_fallthru
        _
      // Predicated region
      $region33: #{_lambda_.8} parent=27 // pred_check
        %p829 = pneg %p106
      $region34: #{_lambda_.8} parent=27 // pred_check_branch
        %831 = sbr.rel (%p829) target = $region36
      $region35: #{_lambda_.8} parent=27 // pred_region
        _
      $region36: #{_lambda_.8} parent=27 // pred_fallthru
        _
    $region28: #{_lambda_.8} parent=5 // pred_fallthru
      _
    %p832 = scmp.le.s32.totalorder 2, %s10
    // Predicated region
    $region37: #{_lambda_.8} parent=5 // pred_check
      %p833 = pneg %p832
    $region38: #{_lambda_.8} parent=5 // pred_check_branch
      %835 = sbr.rel (%p833) target = $region40
    $region39: #{_lambda_.8} parent=5 // pred_region
      %s836 = ssub.s32 %s10, 2
      // Predicated region
      $region41: #{_lambda_.8} parent=39 // pred_check
        %p837 = pneg %p86
      $region42: #{_lambda_.8} parent=39 // pred_check_branch
        %839 = sbr.rel (%p837) target = $region44
      $region43: #{_lambda_.8} parent=39 // pred_region
        %s840 = smul.u32 32, %s16
        %p841 = scmp.lt.s32.totalorder %s840, 63
        %s842 = scalar_select %p841, %s840, 63
        %s843 = smul.addr %s842, 4
        %s844 = scalar_lea.vmem %s2, %s843
      $region44: #{_lambda_.8} parent=39 // pred_fallthru
        _
      // Predicated region
      $region45: #{_lambda_.8} parent=39 // pred_check
        %p845 = pneg %p112
      $region46: #{_lambda_.8} parent=39 // pred_check_branch
        %847 = sbr.rel (%p845) target = $region48
      $region47: #{_lambda_.8} parent=39 // pred_region
        %p848 = scmp.lt.s32.totalorder %s16, 1
        %s849 = scalar_select %p848, %s16, 1
        %s850 = smul.addr %s849, 8
        %s851 = scalar_lea.vmem %s3, %s850
      $region48: #{_lambda_.8} parent=39 // pred_fallthru
        _
    $region40: #{_lambda_.8} parent=5 // pred_fallthru
      _
  $region6: #{_lambda_.8} parent=0 // loop_footer
    %s14 = sadd.s32 1, %s10
  $region7: #{_lambda_.8} parent=0 // loop_footer_branch
    %9 = sbr.rel target = $region3
  $region8: #{_lambda_.8} parent=0 // loop_exit
    _

// kernel: _lambda_.10
$region0: #{_lambda_.10}
  #allocation0 [shape = 'u32[]', space=smem, size = 0x4, offset = 0x4, fixed_abs, tag = 'smem constant byte address 0x4 - core index']
  #allocation1 [shape = 'u32[144,128]{1,0:T(1,128)}', space=vmem, size = 0x12000, scoped, tag = 'internal scratch']
  %s0 = inlined_call_operand.vmem [shape: bf16[128,208], index: 0, kind: input, shape index: {}]
  %s1 = inlined_call_operand.vmem [shape: bf16[208,128], index: 1, kind: input, shape index: {}]
  %s2 = inlined_call_operand.vmem [shape: bf16[128,128], index: 2, kind: output, shape index: {0}]
  %s3 = inlined_call_operand.vmem [shape: f32[16,128], index: 3, kind: output, shape index: {1}]
  %4 = xla_tuple %s2, %s3
  %s5 = sld [smem:[#allocation0]]
  $region49: #{_lambda_.10} parent=0
    _
  %s7 = ssub.s32 1, %s5
  %s8 = scalar_select 0, %s7, %s5
  loop: start=0, step=1, limit=4
  $region2: #{_lambda_.10} parent=0 // loop_pre_header
    _
  $region3: #{_lambda_.10} parent=0 // loop_header
    %s10 = sphi 0, %s14
    %p11 = scmp.ge.s32.totalorder %s10, 4
    %s20 = sphi 0, %s22
    %s23 = sphi 0, %s20
    %s24 = sphi 0, %s23
    %s40 = sphi 0, %s24
    %s44 = sphi 0, %s44
    %s46 = sphi 0, %s44
    %s47 = sphi 0, %s46
    %s61 = sphi 0, %s47
    %s67 = sphi 0, %s69
    %s70 = sphi 0, %s67
    %s71 = sphi 0, %s70
    %s87 = sphi 0, %s71
    %s93 = sphi 0, %s95
    %s96 = sphi 0, %s93
    %s97 = sphi 0, %s96
    %s113 = sphi 0, %s97
  $region4: #{_lambda_.10} parent=0 // loop_header_branch
    %13 = sbr.rel (%p11) target = $region8
  $region5: #{_lambda_.10} parent=0 // loop_body
    %s15 = ssub.s32 %s10, 1
    %s16 = ssub.s32 %s10, 2
    %s17 = sadd.s32 %s10, 1
    %s18 = ssub.s32 %s10, %s17
    %p19 = scmp.eq.s32.totalorder %s18, 0
    %s21 = sadd.s32 %s20, 1
    %s22 = scalar_select %p19, %s20, %s21
    %p25 = pneg %p19
    %p26 = scmp.eq.s32.totalorder %s10, 1
    %p27 = por %p25, %p26
    %p28 = scmp.ne.s32.totalorder %s20, %s23
    %p29 = scmp.eq.s32.totalorder %s10, 0
    %p30 = por %p28, %p29
    %p31 = scmp.ne.s32.totalorder %s20, %s23
    %p32 = scmp.eq.s32.totalorder %s15, 1
    %p33 = por %p31, %p32
    %p34 = scmp.ne.s32.totalorder %s23, %s24
    %p35 = scmp.eq.s32.totalorder %s15, 0
    %p36 = por %p34, %p35
    %p37 = scmp.ne.s32.totalorder %s23, %s24
    %p38 = scmp.eq.s32.totalorder %s16, 1
    %p39 = por %p37, %p38
    %p41 = scmp.ne.s32.totalorder %s24, %s40
    %p42 = scmp.eq.s32.totalorder %s16, 0
    %p43 = por %p41, %p42
    %s45 = sadd.s32 %s44, 1
    %p48 = scmp.eq.s32.totalorder %s10, 1
    %p49 = scmp.ne.s32.totalorder %s44, %s46
    %p50 = scmp.eq.s32.totalorder %s10, 0
    %p51 = por %p49, %p50
    %p52 = scmp.ne.s32.totalorder %s44, %s46
    %p53 = scmp.eq.s32.totalorder %s15, 1
    %p54 = por %p52, %p53
    %p55 = scmp.ne.s32.totalorder %s46, %s47
    %p56 = scmp.eq.s32.totalorder %s15, 0
    %p57 = por %p55, %p56
    %p58 = scmp.ne.s32.totalorder %s46, %s47
    %p59 = scmp.eq.s32.totalorder %s16, 1
    %p60 = por %p58, %p59
    %p62 = scmp.ne.s32.totalorder %s47, %s61
    %p63 = scmp.eq.s32.totalorder %s16, 0
    %p64 = por %p62, %p63
    %s65 = ssub.s32 %s10, %s17
    %p66 = scmp.eq.s32.totalorder %s65, 0
    %s68 = sadd.s32 %s67, 1
    %s69 = scalar_select %p66, %s67, %s68
    %p72 = pneg %p66
    %p73 = scmp.eq.s32.totalorder %s10, 1
    %p74 = por %p72, %p73
    %p75 = scmp.ne.s32.totalorder %s67, %s70
    %p76 = scmp.eq.s32.totalorder %s10, 0
    %p77 = por %p75, %p76
    %p78 = scmp.ne.s32.totalorder %s67, %s70
    %p79 = scmp.eq.s32.totalorder %s15, 1
    %p80 = por %p78, %p79
    %p81 = scmp.ne.s32.totalorder %s70, %s71
    %p82 = scmp.eq.s32.totalorder %s15, 0
    %p83 = por %p81, %p82
    %p84 = scmp.ne.s32.totalorder %s70, %s71
    %p85 = scmp.eq.s32.totalorder %s16, 1
    %p86 = por %p84, %p85
    %p88 = scmp.ne.s32.totalorder %s71, %s87
    %p89 = scmp.eq.s32.totalorder %s16, 0
    %p90 = por %p88, %p89
    %s91 = ssub.s32 %s10, %s17
    %p92 = scmp.eq.s32.totalorder %s91, 0
    %s94 = sadd.s32 %s93, 1
    %s95 = scalar_select %p92, %s93, %s94
    %p98 = pneg %p92
    %p99 = scmp.eq.s32.totalorder %s10, 1
    %p100 = por %p98, %p99
    %p101 = scmp.ne.s32.totalorder %s93, %s96
    %p102 = scmp.eq.s32.totalorder %s10, 0
    %p103 = por %p101, %p102
    %p104 = scmp.ne.s32.totalorder %s93, %s96
    %p105 = scmp.eq.s32.totalorder %s15, 1
    %p106 = por %p104, %p105
    %p107 = scmp.ne.s32.totalorder %s96, %s97
    %p108 = scmp.eq.s32.totalorder %s15, 0
    %p109 = por %p107, %p108
    %p110 = scmp.ne.s32.totalorder %s96, %s97
    %p111 = scmp.eq.s32.totalorder %s16, 1
    %p112 = por %p110, %p111
    %p114 = scmp.ne.s32.totalorder %s97, %s113
    %p115 = scmp.eq.s32.totalorder %s16, 0
    %p116 = por %p114, %p115
    %p117 = scmp.le.s32.totalorder 1, %s10
    %p118 = scmp.lt.s32.totalorder %s10, 3
    %p119 = pnand %p117, %p118
    %p120 = pneg %p119
    // Predicated region
    $region9: #{_lambda_.10} parent=5 // pred_check
      _
    $region10: #{_lambda_.10} parent=5 // pred_check_branch
      %122 = sbr.rel (%p119) target = $region12
    $region11: #{_lambda_.10} parent=5 // pred_region
      %s123 = ssub.s32 %s10, 1
      // Predicated region
      $region13: #{_lambda_.10} parent=11 // pred_check
        %p124 = pneg %p57
      $region14: #{_lambda_.10} parent=11 // pred_check_branch
        %126 = sbr.rel (%p124) target = $region16
      $region15: #{_lambda_.10} parent=11 // pred_region
        _
      $region16: #{_lambda_.10} parent=11 // pred_fallthru
        _
    $region12: #{_lambda_.10} parent=5 // pred_fallthru
      _
    %p127 = scmp.lt.s32.totalorder %s10, 2
    // Predicated region
    $region17: #{_lambda_.10} parent=5 // pred_check
      %p128 = pneg %p127
    $region18: #{_lambda_.10} parent=5 // pred_check_branch
      %130 = sbr.rel (%p128) target = $region20
    $region19: #{_lambda_.10} parent=5 // pred_region
      // Predicated region
      $region21: #{_lambda_.10} parent=19 // pred_check
        %p131 = pneg %p30
      $region22: #{_lambda_.10} parent=19 // pred_check_branch
        %133 = sbr.rel (%p131) target = $region24
      $region23: #{_lambda_.10} parent=19 // pred_region
        %s134 = smul.u32 8, %s10
        %p135 = scmp.lt.s32.totalorder %s134, 15
        %s136 = scalar_select %p135, %s134, 15
        %s137 = smul.addr %s136, 2
        %s138 = smul.addr %s137, 4
        %s139 = scalar_lea.vmem %s0, %s138
        %s140 = smul.u32 8, %s10
      $region24: #{_lambda_.10} parent=19 // pred_fallthru
        _
    $region20: #{_lambda_.10} parent=5 // pred_fallthru
      _
    %p141 = scmp.le.s32.totalorder 1, %s10
    %p142 = scmp.lt.s32.totalorder %s10, 3
    %p143 = pnand %p141, %p142
    %p144 = pneg %p143
    // Predicated region
    $region25: #{_lambda_.10} parent=5 // pred_check
      _
    $region26: #{_lambda_.10} parent=5 // pred_check_branch
      %146 = sbr.rel (%p143) target = $region28
    $region27: #{_lambda_.10} parent=5 // pred_region
      %s147 = ssub.s32 %s10, 1
      %s148 = smul.u32 8, %s15
      %p149 = scmp.lt.s32.totalorder %s148, 15
      %s150 = scalar_select %p149, %s148, 15
      %s151 = smul.addr %s150, 2
      %s152 = smul.addr %s151, 4
      %s153 = scalar_lea.vmem %s0, %s152
      %p154 = pneg %p36
      %p155 = pneg %p33
      %p156 = pneg %p57
      %p157 = pneg %p54
      %p158 = pneg %p83
      %p159 = pneg %p80
      %s160 = smul.u32 8, %s15
      %p161 = scmp.lt.s32.totalorder %s160, 15
      %s162 = scalar_select %p161, %s160, 15
      %s163 = smul.addr %s162, 4
      %s164 = scalar_lea.vmem %s2, %s163
      %p165 = pneg %p109
      %p166 = pneg %p106
      %p167 = scmp.lt.s32.totalorder %s15, 1
      %s168 = scalar_select %p167, %s15, 1
      %s169 = smul.addr %s168, 8
      %s170 = scalar_lea.vmem %s3, %s169
      %s171 = smul.u32 8, %s15
      %p172 = scmp.lt.s32.totalorder %s171, 15
      %s173 = scalar_select %p172, %s171, 15
      %s174 = smul.addr %s173, 2
      %s175 = smul.addr %s174, 4
      %s176 = scalar_lea.vmem %s0, %s175
      %s177 = smul.u32 8, %s15
      %s178 = smul.u32 8, %s15
      %p179 = scmp.lt.s32.totalorder %s178, 15
      %s180 = scalar_select %p179, %s178, 15
      %s181 = smul.addr %s180, 4
      %s182 = scalar_lea.vmem %s2, %s181
      %s183 = smul.u32 8, %s15
      %p184 = scmp.lt.s32.totalorder %s15, 1
      %s185 = scalar_select %p184, %s15, 1
      %s186 = smul.addr %s185, 8
      %s187 = scalar_lea.vmem %s3, %s186
      %v189 = vld [vmem:[%s176] sm:$0xff]
      %v190 = vld [vmem:[%s176 + $0x8] sm:$0xff]
      %v191 = vld [vmem:[%s176 + $0x10] sm:$0xff]
      %v192 = vld [vmem:[%s176 + $0x18] sm:$0xff]
      %v193 = vld [vmem:[%s176 + $0x20] sm:$0xff]
      %v194 = vld [vmem:[%s176 + $0x28] sm:$0xff]
      %v195 = vld [vmem:[%s176 + $0x30] sm:$0xff]
      %v196 = vld [vmem:[%s176 + $0x38] sm:$0xff]
      %v197 = vld [vmem:[%s1] sm:$0xf]
      %v198 = vld [vmem:[%s1 + $0x4] sm:$0xf]
      %v199 = vld [vmem:[%s1 + $0x8] sm:$0xf]
      %v200 = vld [vmem:[%s1 + $0xc] sm:$0xf]
      %v201 = vld [vmem:[%s1 + $0x10] sm:$0xf]
      %v202 = vld [vmem:[%s1 + $0x14] sm:$0xf]
      %v203 = vld [vmem:[%s1 + $0x18] sm:$0xf]
      %v204 = vld [vmem:[%s1 + $0x1c] sm:$0xf]
      %v205 = vld [vmem:[%s1 + $0x20] sm:$0xf]
      %v206 = vld [vmem:[%s1 + $0x24] sm:$0xf]
      %v207 = vld [vmem:[%s1 + $0x28] sm:$0xf]
      %v208 = vld [vmem:[%s1 + $0x2c] sm:$0xf]
      %v209 = vld [vmem:[%s1 + $0x30] sm:$0xf]
      %v210 = vld [vmem:[%s1 + $0x34] sm:$0xf]
      %v211 = vld [vmem:[%s1 + $0x38] sm:$0xf]
      %v212 = vld [vmem:[%s1 + $0x3c] sm:$0xf]
      %v213 = vld [vmem:[%s1 + $0x40] sm:$0xf]
      %v214 = vld [vmem:[%s1 + $0x44] sm:$0xf]
      %v215 = vld [vmem:[%s1 + $0x48] sm:$0xf]
      %v216 = vld [vmem:[%s1 + $0x4c] sm:$0xf]
      %v217 = vld [vmem:[%s1 + $0x50] sm:$0xf]
      %v218 = vld [vmem:[%s1 + $0x54] sm:$0xf]
      %v219 = vld [vmem:[%s1 + $0x58] sm:$0xf]
      %v220 = vld [vmem:[%s1 + $0x5c] sm:$0xf]
      %v221 = vld [vmem:[%s1 + $0x60] sm:$0xf]
      %v222 = vld [vmem:[%s1 + $0x64] sm:$0xf]
      %v231 = vunpack.c.l.b16 %v189
      %v232 = vunpack.c.h.b16 %v189
      %v233 = vunpack.c.l.b16 %v190
      %v234 = vunpack.c.h.b16 %v190
      %v235 = vunpack.c.l.b16 %v191
      %v236 = vunpack.c.h.b16 %v191
      %v237 = vunpack.c.l.b16 %v192
      %v238 = vunpack.c.h.b16 %v192
      %v239 = vunpack.c.l.b16 %v193
      %v240 = vunpack.c.h.b16 %v193
      %v241 = vunpack.c.l.b16 %v194
      %v242 = vunpack.c.h.b16 %v194
      %v243 = vunpack.c.l.b16 %v195
      %v244 = vunpack.c.h.b16 %v195
      %v245 = vunpack.c.l.b16 %v196
      %v246 = vunpack.c.h.b16 %v196
      %v247 = vpack.c.b16 %v233, %v231
      %v248 = vpack.c.b16 %v234, %v232
      %v249 = vpack.c.b16 %v237, %v235
      %v250 = vpack.c.b16 %v238, %v236
      %v251 = vpack.c.b16 %v241, %v239
      %v252 = vpack.c.b16 %v242, %v240
      %v253 = vpack.c.b16 %v245, %v243
      %v254 = vpack.c.b16 %v246, %v244
      %v285 = vunpack.c.l.b16 %v197
      %v286 = vunpack.c.l.b16 %v198
      %v287 = vunpack.c.l.b16 %v199
      %v288 = vunpack.c.l.b16 %v200
      %v289 = vunpack.c.l.b16 %v201
      %v290 = vunpack.c.l.b16 %v202
      %v291 = vunpack.c.l.b16 %v203
      %v292 = vunpack.c.l.b16 %v204
      %v293 = vunpack.c.l.b16 %v205
      %v294 = vunpack.c.l.b16 %v206
      %v295 = vunpack.c.l.b16 %v207
      %v296 = vunpack.c.l.b16 %v208
      %v297 = vunpack.c.l.b16 %v209
      %v298 = vunpack.c.l.b16 %v210
      %v299 = vunpack.c.l.b16 %v211
      %v300 = vunpack.c.l.b16 %v212
      %v301 = vunpack.c.l.b16 %v213
      %v302 = vunpack.c.l.b16 %v214
      %v303 = vunpack.c.l.b16 %v215
      %v304 = vunpack.c.l.b16 %v216
      %v305 = vunpack.c.l.b16 %v217
      %v306 = vunpack.c.l.b16 %v218
      %v307 = vunpack.c.l.b16 %v219
      %v308 = vunpack.c.l.b16 %v220
      %v309 = vunpack.c.l.b16 %v221
      %v310 = vunpack.c.l.b16 %v222
      %v311 = vpack.c.b16 %v286, %v285
      %v312 = vpack.c.b16 %v288, %v287
      %v313 = vpack.c.b16 %v290, %v289
      %v314 = vpack.c.b16 %v292, %v291
      %v315 = vpack.c.b16 %v294, %v293
      %v316 = vpack.c.b16 %v296, %v295
      %v317 = vpack.c.b16 %v298, %v297
      %v318 = vpack.c.b16 %v300, %v299
      %v319 = vpack.c.b16 %v302, %v301
      %v320 = vpack.c.b16 %v304, %v303
      %v321 = vpack.c.b16 %v306, %v305
      %v322 = vpack.c.b16 %v308, %v307
      %v323 = vpack.c.b16 %v310, %v309
      %vm337 = vcmask 654336
      %v339 = vsel %vm337, %v248, 0
      %v342 = vsel %vm337, %v250, 0
      %v345 = vsel %vm337, %v252, 0
      %v348 = vsel %vm337, %v254, 0
      %350 = vmatprep.subr.bf16.mxu0 0
      %351 = vmatpush1.bf16.msra.mxu0 %v311
      %352 = vmatprep.subr.bf16.mxu0 0
      %353 = vmatpush1.bf16.msra.mxu0 %v312
      %354 = vmatprep.subr.bf16.mxu0 0
      %355 = vmatpush1.bf16.msra.mxu0 %v313
      %356 = vmatprep.subr.bf16.mxu0 0
      %357 = vmatpush1.bf16.msra.mxu0 %v314
      %358 = vmatprep.subr.bf16.mxu0 0
      %359 = vmatpush1.bf16.msra.mxu0 %v315
      %360 = vmatprep.subr.bf16.mxu0 0
      %361 = vmatpush1.bf16.msra.mxu0 %v316
      %362 = vmatprep.subr.bf16.mxu0 0
      %363 = vmatpush1.bf16.msra.mxu0 %v317
      %364 = vmatprep.subr.bf16.mxu0 0
      %365 = vmatpush1.bf16.msra.mxu0 %v318
      %366 = vmatprep.subr.bf16.mxu0 0
      %367 = vmatpush1.bf16.msra.mxu0 %v319
      %368 = vmatprep.subr.bf16.mxu0 0
      %369 = vmatpush1.bf16.msra.mxu0 %v320
      %370 = vmatprep.subr.bf16.mxu0 0
      %371 = vmatpush1.bf16.msra.mxu0 %v321
      %372 = vmatprep.subr.bf16.mxu0 0
      %373 = vmatpush1.bf16.msra.mxu0 %v322
      %374 = vmatprep.subr.bf16.mxu0 0
      %375 = vmatpush1.bf16.msra.mxu0 %v323
      %376 = vmatprep.subr.bf16.mxu0 0
      %377 = vmatpush1.bf16.msra.mxu0 0
      %378 = vmatprep.subr.bf16.mxu0 0
      %379 = vmatpush1.bf16.msra.mxu0 0
      %380 = vmatprep.subr.bf16.mxu0 0
      %381 = vmatpush1.bf16.msra.mxu0 0
      %382 = vmatprep.mubr.bf16.mxu0 %v339
      %383 = vmatmul.mubr.bf16.gmra.mrb[0].mxu0 %v247
      %v384 = vpop.f32.mrb[0].mxu0
      %v385 = vadd.f32 0.0, %v384
      %v386 = vpop.f32.mrb[0].mxu0
      %v387 = vpop.f32.mrb[0].mxu0
      %v388 = vadd.f32 0.0, %v387
      %v389 = vpop.f32.mrb[0].mxu0
      %390 = vmatprep.mubr.bf16.mxu0 %v342
      %391 = vmatmul.mubr.bf16.gmra.mrb[0].mxu0 %v249
      %v392 = vpop.f32.mrb[0].mxu0
      %v393 = vadd.f32 0.0, %v392
      %v394 = vpop.f32.mrb[0].mxu0
      %v395 = vpop.f32.mrb[0].mxu0
      %v396 = vadd.f32 0.0, %v395
      %v397 = vpop.f32.mrb[0].mxu0
      %398 = vmatprep.mubr.bf16.mxu0 %v345
      %399 = vmatmul.mubr.bf16.gmra.mrb[0].mxu0 %v251
      %v400 = vpop.f32.mrb[0].mxu0
      %v401 = vadd.f32 0.0, %v400
      %v402 = vpop.f32.mrb[0].mxu0
      %v403 = vpop.f32.mrb[0].mxu0
      %v404 = vadd.f32 0.0, %v403
      %v405 = vpop.f32.mrb[0].mxu0
      %406 = vmatprep.mubr.bf16.mxu0 %v348
      %407 = vmatmul.mubr.bf16.gmra.mrb[0].mxu0 %v253
      %v408 = vpop.f32.mrb[0].mxu0
      %v409 = vadd.f32 0.0, %v408
      %v410 = vpop.f32.mrb[0].mxu0
      %v411 = vpop.f32.mrb[0].mxu0
      %v412 = vadd.f32 0.0, %v411
      %v413 = vpop.f32.mrb[0].mxu0
      %414 = vdwg.mxu0
      %v415 = vpack.c.bf16 %v388, %v385
      %v416 = vpack.c.bf16 %v396, %v393
      %v417 = vpack.c.bf16 %v404, %v401
      %v418 = vpack.c.bf16 %v412, %v409
      %v423 = vunpack.c.l.b16 %v415
      %v424 = vunpack.c.h.b16 %v415
      %v425 = vunpack.c.l.b16 %v416
      %v426 = vunpack.c.h.b16 %v416
      %v427 = vunpack.c.l.b16 %v417
      %v428 = vunpack.c.h.b16 %v417
      %v429 = vunpack.c.l.b16 %v418
      %v430 = vunpack.c.h.b16 %v418
      %v431 = vpack.c.b16 %v423, %v423
      %v432 = vpack.c.b16 %v424, %v424
      %v433 = vpack.c.b16 %v425, %v425
      %v434 = vpack.c.b16 %v426, %v426
      %v435 = vpack.c.b16 %v427, %v427
      %v436 = vpack.c.b16 %v428, %v428
      %v437 = vpack.c.b16 %v429, %v429
      %v438 = vpack.c.b16 %v430, %v430
      %447 = vst [vmem:[%s182] sm:$0xf] %v431
      %448 = vst [vmem:[%s182 + $0x4] sm:$0xf] %v432
      %449 = vst [vmem:[%s182 + $0x8] sm:$0xf] %v433
      %450 = vst [vmem:[%s182 + $0xc] sm:$0xf] %v434
      %451 = vst [vmem:[%s182 + $0x10] sm:$0xf] %v435
      %452 = vst [vmem:[%s182 + $0x14] sm:$0xf] %v436
      %453 = vst [vmem:[%s182 + $0x18] sm:$0xf] %v437
      %454 = vst [vmem:[%s182 + $0x1c] sm:$0xf] %v438
      %v455 = vadd.f32 %v385, %v388
      %v456 = vadd.f32 %v455, %v393
      %v457 = vadd.f32 %v456, %v396
      %v458 = vadd.f32 %v457, %v401
      %v459 = vadd.f32 %v458, %v404
      %v460 = vadd.f32 %v459, %v409
      %v461 = vadd.f32 %v460, %v412
      %v462 = vrot.slane %v461, 4
      %v463 = vadd.f32 %v461, %v462
      %v464 = vrot.slane %v463, 2
      %v465 = vadd.f32 %v463, %v464
      %v466 = vrot.slane %v465, 1
      %v467 = vadd.f32 %v465, %v466
      %468 = vst [vmem:[%s187] sm:$0x1] %v467
      %v469 = vmul.f32 %v385, %v385
      %v470 = vmul.f32 %v388, %v388
      %v471 = vmul.f32 %v393, %v393
      %v472 = vmul.f32 %v396, %v396
      %v473 = vmul.f32 %v401, %v401
      %v474 = vmul.f32 %v404, %v404
      %v475 = vmul.f32 %v409, %v409
      %v476 = vmul.f32 %v412, %v412
      %v477 = vadd.f32 %v469, %v470
      %v478 = vadd.f32 %v477, %v471
      %v479 = vadd.f32 %v478, %v472
      %v480 = vadd.f32 %v479, %v473
      %v481 = vadd.f32 %v480, %v474
      %v482 = vadd.f32 %v481, %v475
      %v483 = vadd.f32 %v482, %v476
      %v484 = vrot.slane %v483, 4
      %v485 = vadd.f32 %v483, %v484
      %v486 = vrot.slane %v485, 2
      %v487 = vadd.f32 %v485, %v486
      %v488 = vrot.slane %v487, 1
      %v489 = vadd.f32 %v487, %v488
      %490 = vst [vmem:[%s187 + $0x1] sm:$0x1] %v489
      %s491 = smul.u32 8, %s15
      %p492 = scmp.lt.s32.totalorder %s491, 15
      %s493 = scalar_select %p492, %s491, 15
      %s494 = smul.addr %s493, 4
      %s495 = scalar_lea.vmem %s2, %s494
      %p496 = scmp.lt.s32.totalorder %s15, 1
      %s497 = scalar_select %p496, %s15, 1
      %s498 = smul.addr %s497, 8
      %s499 = scalar_lea.vmem %s3, %s498
      // Predicated region
      $region29: #{_lambda_.10} parent=27 // pred_check
        %p500 = pneg %p80
      $region30: #{_lambda_.10} parent=27 // pred_check_branch
        %502 = sbr.rel (%p500) target = $region32
      $region31: #{_lambda_.10} parent=27 // pred_region
        %s503 = smul.u32 8, %s15
      $region32: #{_lambda_.10} parent=27 // pred_fallthru
        _
      // Predicated region
      $region33: #{_lambda_.10} parent=27 // pred_check
        %p504 = pneg %p106
      $region34: #{_lambda_.10} parent=27 // pred_check_branch
        %506 = sbr.rel (%p504) target = $region36
      $region35: #{_lambda_.10} parent=27 // pred_region
        _
      $region36: #{_lambda_.10} parent=27 // pred_fallthru
        _
    $region28: #{_lambda_.10} parent=5 // pred_fallthru
      _
    %p507 = scmp.le.s32.totalorder 2, %s10
    // Predicated region
    $region37: #{_lambda_.10} parent=5 // pred_check
      %p508 = pneg %p507
    $region38: #{_lambda_.10} parent=5 // pred_check_branch
      %510 = sbr.rel (%p508) target = $region40
    $region39: #{_lambda_.10} parent=5 // pred_region
      %s511 = ssub.s32 %s10, 2
      // Predicated region
      $region41: #{_lambda_.10} parent=39 // pred_check
        %p512 = pneg %p86
      $region42: #{_lambda_.10} parent=39 // pred_check_branch
        %514 = sbr.rel (%p512) target = $region44
      $region43: #{_lambda_.10} parent=39 // pred_region
        %s515 = smul.u32 8, %s16
        %p516 = scmp.lt.s32.totalorder %s515, 15
        %s517 = scalar_select %p516, %s515, 15
        %s518 = smul.addr %s517, 4
        %s519 = scalar_lea.vmem %s2, %s518
      $region44: #{_lambda_.10} parent=39 // pred_fallthru
        _
      // Predicated region
      $region45: #{_lambda_.10} parent=39 // pred_check
        %p520 = pneg %p112
      $region46: #{_lambda_.10} parent=39 // pred_check_branch
        %522 = sbr.rel (%p520) target = $region48
      $region47: #{_lambda_.10} parent=39 // pred_region
        %p523 = scmp.lt.s32.totalorder %s16, 1
        %s524 = scalar_select %p523, %s16, 1
        %s525 = smul.addr %s524, 8
        %s526 = scalar_lea.vmem %s3, %s525
      $region48: #{_lambda_.10} parent=39 // pred_fallthru
        _
    $region40: #{_lambda_.10} parent=5 // pred_fallthru
      _
  $region6: #{_lambda_.10} parent=0 // loop_footer
    %s14 = sadd.s32 1, %s10
  $region7: #{_lambda_.10} parent=0 // loop_footer_branch
    %9 = sbr.rel target = $region3
  $region8: #{_lambda_.10} parent=0 // loop_exit
    _

// kernel: _lambda_.11
$region0: #{_lambda_.11}
  #allocation0 [shape = 'u32[]', space=smem, size = 0x4, offset = 0x4, fixed_abs, tag = 'smem constant byte address 0x4 - core index']
  #allocation1 [shape = 'u32[144,128]{1,0:T(1,128)}', space=vmem, size = 0x12000, scoped, tag = 'internal scratch']
  %s0 = inlined_call_operand.vmem [shape: bf16[128,128], index: 0, kind: input, shape index: {}]
  %s1 = inlined_call_operand.vmem [shape: f32[1,128], index: 1, kind: input, shape index: {}]
  %s2 = inlined_call_operand.vmem [shape: f32[1,128], index: 2, kind: input, shape index: {}]
  %s3 = inlined_call_operand.vmem [shape: bf16[128,128], index: 3, kind: output, shape index: {}]
  %s4 = sld [smem:[#allocation0]]
  $region45: #{_lambda_.11} parent=0
    _
  %s6 = ssub.s32 1, %s4
  %s7 = scalar_select 0, %s6, %s4
  loop: start=0, step=1, limit=4
  $region2: #{_lambda_.11} parent=0 // loop_pre_header
    _
  $region3: #{_lambda_.11} parent=0 // loop_header
    %s9 = sphi 0, %s13
    %p10 = scmp.ge.s32.totalorder %s9, 4
    %s19 = sphi 0, %s21
    %s22 = sphi 0, %s19
    %s23 = sphi 0, %s22
    %s39 = sphi 0, %s23
    %s43 = sphi 0, %s43
    %s45 = sphi 0, %s43
    %s46 = sphi 0, %s45
    %s60 = sphi 0, %s46
    %s64 = sphi 0, %s64
    %s66 = sphi 0, %s64
    %s67 = sphi 0, %s66
    %s81 = sphi 0, %s67
    %s87 = sphi 0, %s89
    %s90 = sphi 0, %s87
    %s91 = sphi 0, %s90
    %s107 = sphi 0, %s91
  $region4: #{_lambda_.11} parent=0 // loop_header_branch
    %12 = sbr.rel (%p10) target = $region8
  $region5: #{_lambda_.11} parent=0 // loop_body
    %s14 = ssub.s32 %s9, 1
    %s15 = ssub.s32 %s9, 2
    %s16 = sadd.s32 %s9, 1
    %s17 = ssub.s32 %s9, %s16
    %p18 = scmp.eq.s32.totalorder %s17, 0
    %s20 = sadd.s32 %s19, 1
    %s21 = scalar_select %p18, %s19, %s20
    %p24 = pneg %p18
    %p25 = scmp.eq.s32.totalorder %s9, 1
    %p26 = por %p24, %p25
    %p27 = scmp.ne.s32.totalorder %s19, %s22
    %p28 = scmp.eq.s32.totalorder %s9, 0
    %p29 = por %p27, %p28
    %p30 = scmp.ne.s32.totalorder %s19, %s22
    %p31 = scmp.eq.s32.totalorder %s14, 1
    %p32 = por %p30, %p31
    %p33 = scmp.ne.s32.totalorder %s22, %s23
    %p34 = scmp.eq.s32.totalorder %s14, 0
    %p35 = por %p33, %p34
    %p36 = scmp.ne.s32.totalorder %s22, %s23
    %p37 = scmp.eq.s32.totalorder %s15, 1
    %p38 = por %p36, %p37
    %p40 = scmp.ne.s32.totalorder %s23, %s39
    %p41 = scmp.eq.s32.totalorder %s15, 0
    %p42 = por %p40, %p41
    %s44 = sadd.s32 %s43, 1
    %p47 = scmp.eq.s32.totalorder %s9, 1
    %p48 = scmp.ne.s32.totalorder %s43, %s45
    %p49 = scmp.eq.s32.totalorder %s9, 0
    %p50 = por %p48, %p49
    %p51 = scmp.ne.s32.totalorder %s43, %s45
    %p52 = scmp.eq.s32.totalorder %s14, 1
    %p53 = por %p51, %p52
    %p54 = scmp.ne.s32.totalorder %s45, %s46
    %p55 = scmp.eq.s32.totalorder %s14, 0
    %p56 = por %p54, %p55
    %p57 = scmp.ne.s32.totalorder %s45, %s46
    %p58 = scmp.eq.s32.totalorder %s15, 1
    %p59 = por %p57, %p58
    %p61 = scmp.ne.s32.totalorder %s46, %s60
    %p62 = scmp.eq.s32.totalorder %s15, 0
    %p63 = por %p61, %p62
    %s65 = sadd.s32 %s64, 1
    %p68 = scmp.eq.s32.totalorder %s9, 1
    %p69 = scmp.ne.s32.totalorder %s64, %s66
    %p70 = scmp.eq.s32.totalorder %s9, 0
    %p71 = por %p69, %p70
    %p72 = scmp.ne.s32.totalorder %s64, %s66
    %p73 = scmp.eq.s32.totalorder %s14, 1
    %p74 = por %p72, %p73
    %p75 = scmp.ne.s32.totalorder %s66, %s67
    %p76 = scmp.eq.s32.totalorder %s14, 0
    %p77 = por %p75, %p76
    %p78 = scmp.ne.s32.totalorder %s66, %s67
    %p79 = scmp.eq.s32.totalorder %s15, 1
    %p80 = por %p78, %p79
    %p82 = scmp.ne.s32.totalorder %s67, %s81
    %p83 = scmp.eq.s32.totalorder %s15, 0
    %p84 = por %p82, %p83
    %s85 = ssub.s32 %s9, %s16
    %p86 = scmp.eq.s32.totalorder %s85, 0
    %s88 = sadd.s32 %s87, 1
    %s89 = scalar_select %p86, %s87, %s88
    %p92 = pneg %p86
    %p93 = scmp.eq.s32.totalorder %s9, 1
    %p94 = por %p92, %p93
    %p95 = scmp.ne.s32.totalorder %s87, %s90
    %p96 = scmp.eq.s32.totalorder %s9, 0
    %p97 = por %p95, %p96
    %p98 = scmp.ne.s32.totalorder %s87, %s90
    %p99 = scmp.eq.s32.totalorder %s14, 1
    %p100 = por %p98, %p99
    %p101 = scmp.ne.s32.totalorder %s90, %s91
    %p102 = scmp.eq.s32.totalorder %s14, 0
    %p103 = por %p101, %p102
    %p104 = scmp.ne.s32.totalorder %s90, %s91
    %p105 = scmp.eq.s32.totalorder %s15, 1
    %p106 = por %p104, %p105
    %p108 = scmp.ne.s32.totalorder %s91, %s107
    %p109 = scmp.eq.s32.totalorder %s15, 0
    %p110 = por %p108, %p109
    %p111 = scmp.le.s32.totalorder 1, %s9
    %p112 = scmp.lt.s32.totalorder %s9, 3
    %p113 = pnand %p111, %p112
    %p114 = pneg %p113
    // Predicated region
    $region9: #{_lambda_.11} parent=5 // pred_check
      _
    $region10: #{_lambda_.11} parent=5 // pred_check_branch
      %116 = sbr.rel (%p113) target = $region12
    $region11: #{_lambda_.11} parent=5 // pred_region
      %s117 = ssub.s32 %s9, 1
      // Predicated region
      $region13: #{_lambda_.11} parent=11 // pred_check
        %p118 = pneg %p56
      $region14: #{_lambda_.11} parent=11 // pred_check_branch
        %120 = sbr.rel (%p118) target = $region16
      $region15: #{_lambda_.11} parent=11 // pred_region
        _
      $region16: #{_lambda_.11} parent=11 // pred_fallthru
        _
      // Predicated region
      $region17: #{_lambda_.11} parent=11 // pred_check
        %p121 = pneg %p77
      $region18: #{_lambda_.11} parent=11 // pred_check_branch
        %123 = sbr.rel (%p121) target = $region20
      $region19: #{_lambda_.11} parent=11 // pred_region
        _
      $region20: #{_lambda_.11} parent=11 // pred_fallthru
        _
    $region12: #{_lambda_.11} parent=5 // pred_fallthru
      _
    %p124 = scmp.lt.s32.totalorder %s9, 2
    // Predicated region
    $region21: #{_lambda_.11} parent=5 // pred_check
      %p125 = pneg %p124
    $region22: #{_lambda_.11} parent=5 // pred_check_branch
      %127 = sbr.rel (%p125) target = $region24
    $region23: #{_lambda_.11} parent=5 // pred_region
      // Predicated region
      $region25: #{_lambda_.11} parent=23 // pred_check
        %p128 = pneg %p29
      $region26: #{_lambda_.11} parent=23 // pred_check_branch
        %130 = sbr.rel (%p128) target = $region28
      $region27: #{_lambda_.11} parent=23 // pred_region
        %s131 = smul.u32 8, %s9
        %p132 = scmp.lt.s32.totalorder %s131, 15
        %s133 = scalar_select %p132, %s131, 15
        %s134 = smul.addr %s133, 4
        %s135 = scalar_lea.vmem %s0, %s134
        %s136 = smul.u32 8, %s9
      $region28: #{_lambda_.11} parent=23 // pred_fallthru
        _
    $region24: #{_lambda_.11} parent=5 // pred_fallthru
      _
    %p137 = scmp.le.s32.totalorder 1, %s9
    %p138 = scmp.lt.s32.totalorder %s9, 3
    %p139 = pnand %p137, %p138
    %p140 = pneg %p139
    // Predicated region
    $region29: #{_lambda_.11} parent=5 // pred_check
      _
    $region30: #{_lambda_.11} parent=5 // pred_check_branch
      %142 = sbr.rel (%p139) target = $region32
    $region31: #{_lambda_.11} parent=5 // pred_region
      %s143 = ssub.s32 %s9, 1
      %s144 = smul.u32 8, %s14
      %p145 = scmp.lt.s32.totalorder %s144, 15
      %s146 = scalar_select %p145, %s144, 15
      %s147 = smul.addr %s146, 4
      %s148 = scalar_lea.vmem %s0, %s147
      %p149 = pneg %p35
      %p150 = pneg %p32
      %p151 = pneg %p56
      %p152 = pneg %p53
      %p153 = pneg %p77
      %p154 = pneg %p74
      %p155 = pneg %p103
      %p156 = pneg %p100
      %s157 = smul.u32 8, %s14
      %p158 = scmp.lt.s32.totalorder %s157, 15
      %s159 = scalar_select %p158, %s157, 15
      %s160 = smul.addr %s159, 4
      %s161 = scalar_lea.vmem %s3, %s160
      %s162 = smul.u32 8, %s14
      %p163 = scmp.lt.s32.totalorder %s162, 15
      %s164 = scalar_select %p163, %s162, 15
      %s165 = smul.addr %s164, 4
      %s166 = scalar_lea.vmem %s0, %s165
      %s167 = smul.u32 8, %s14
      %s168 = smul.u32 8, %s14
      %p169 = scmp.lt.s32.totalorder %s168, 15
      %s170 = scalar_select %p169, %s168, 15
      %s171 = smul.addr %s170, 4
      %s172 = scalar_lea.vmem %s3, %s171
      %s173 = smul.u32 8, %s14
      %v174 = vld [vmem:[%s166] sm:$0xf]
      %v175 = vld [vmem:[%s166 + $0x4] sm:$0xf]
      %v176 = vld [vmem:[%s166 + $0x8] sm:$0xf]
      %v177 = vld [vmem:[%s166 + $0xc] sm:$0xf]
      %v178 = vld [vmem:[%s166 + $0x10] sm:$0xf]
      %v179 = vld [vmem:[%s166 + $0x14] sm:$0xf]
      %v180 = vld [vmem:[%s166 + $0x18] sm:$0xf]
      %v181 = vld [vmem:[%s166 + $0x1c] sm:$0xf]
      %v182 = vunpack.c.l.bf16 %v174
      %v183 = vunpack.c.l.bf16 %v175
      %v184 = vunpack.c.l.bf16 %v176
      %v185 = vunpack.c.l.bf16 %v177
      %v186 = vunpack.c.l.bf16 %v178
      %v187 = vunpack.c.l.bf16 %v179
      %v188 = vunpack.c.l.bf16 %v180
      %v189 = vunpack.c.l.bf16 %v181
      %v190 = vld [vmem:[%s1] sm:$0x1]
      %v192 = vlaneseq
      %v193 = vshrl.u32 %v192, 7
      %v194 = vsub.s32 0, %v193
      %v195 = vrot.slane %v190, %v194
      %v197 = vmul.f32 %v182, %v195
      %v198 = vmul.f32 %v183, %v195
      %v199 = vmul.f32 %v184, %v195
      %v200 = vmul.f32 %v185, %v195
      %v201 = vmul.f32 %v186, %v195
      %v202 = vmul.f32 %v187, %v195
      %v203 = vmul.f32 %v188, %v195
      %v204 = vmul.f32 %v189, %v195
      %v205 = vld [vmem:[%s2] sm:$0x1]
      %v207 = vlaneseq
      %v208 = vshrl.u32 %v207, 7
      %v209 = vsub.s32 0, %v208
      %v210 = vrot.slane %v205, %v209
      %v212 = vadd.f32 %v197, %v210
      %v213 = vadd.f32 %v198, %v210
      %v214 = vadd.f32 %v199, %v210
      %v215 = vadd.f32 %v200, %v210
      %v216 = vadd.f32 %v201, %v210
      %v217 = vadd.f32 %v202, %v210
      %v218 = vadd.f32 %v203, %v210
      %v219 = vadd.f32 %v204, %v210
      %vm220 = vcmp.gt.f32.partialorder %v212, 0.0
      %vm221 = vcmp.gt.f32.partialorder %v213, 0.0
      %vm222 = vcmp.gt.f32.partialorder %v214, 0.0
      %vm223 = vcmp.gt.f32.partialorder %v215, 0.0
      %vm224 = vcmp.gt.f32.partialorder %v216, 0.0
      %vm225 = vcmp.gt.f32.partialorder %v217, 0.0
      %vm226 = vcmp.gt.f32.partialorder %v218, 0.0
      %vm227 = vcmp.gt.f32.partialorder %v219, 0.0
      %v228 = vmul.f32 %v212, 0.05
      %v229 = vmul.f32 %v213, 0.05
      %v230 = vmul.f32 %v214, 0.05
      %v231 = vmul.f32 %v215, 0.05
      %v232 = vmul.f32 %v216, 0.05
      %v233 = vmul.f32 %v217, 0.05
      %v234 = vmul.f32 %v218, 0.05
      %v235 = vmul.f32 %v219, 0.05
      %v236 = vsel %vm220, %v212, %v228
      %v237 = vsel %vm221, %v213, %v229
      %v238 = vsel %vm222, %v214, %v230
      %v239 = vsel %vm223, %v215, %v231
      %v240 = vsel %vm224, %v216, %v232
      %v241 = vsel %vm225, %v217, %v233
      %v242 = vsel %vm226, %v218, %v234
      %v243 = vsel %vm227, %v219, %v235
      %v244 = vpack.c.bf16 %v237, %v236
      %v245 = vpack.c.bf16 %v239, %v238
      %v246 = vpack.c.bf16 %v241, %v240
      %v247 = vpack.c.bf16 %v243, %v242
      %v252 = vunpack.c.l.b16 %v244
      %v253 = vunpack.c.h.b16 %v244
      %v254 = vunpack.c.l.b16 %v245
      %v255 = vunpack.c.h.b16 %v245
      %v256 = vunpack.c.l.b16 %v246
      %v257 = vunpack.c.h.b16 %v246
      %v258 = vunpack.c.l.b16 %v247
      %v259 = vunpack.c.h.b16 %v247
      %v260 = vpack.c.b16 %v252, %v252
      %v261 = vpack.c.b16 %v253, %v253
      %v262 = vpack.c.b16 %v254, %v254
      %v263 = vpack.c.b16 %v255, %v255
      %v264 = vpack.c.b16 %v256, %v256
      %v265 = vpack.c.b16 %v257, %v257
      %v266 = vpack.c.b16 %v258, %v258
      %v267 = vpack.c.b16 %v259, %v259
      %276 = vst [vmem:[%s172] sm:$0xf] %v260
      %277 = vst [vmem:[%s172 + $0x4] sm:$0xf] %v261
      %278 = vst [vmem:[%s172 + $0x8] sm:$0xf] %v262
      %279 = vst [vmem:[%s172 + $0xc] sm:$0xf] %v263
      %280 = vst [vmem:[%s172 + $0x10] sm:$0xf] %v264
      %281 = vst [vmem:[%s172 + $0x14] sm:$0xf] %v265
      %282 = vst [vmem:[%s172 + $0x18] sm:$0xf] %v266
      %283 = vst [vmem:[%s172 + $0x1c] sm:$0xf] %v267
      %s284 = smul.u32 8, %s14
      %p285 = scmp.lt.s32.totalorder %s284, 15
      %s286 = scalar_select %p285, %s284, 15
      %s287 = smul.addr %s286, 4
      %s288 = scalar_lea.vmem %s3, %s287
      // Predicated region
      $region33: #{_lambda_.11} parent=31 // pred_check
        %p289 = pneg %p100
      $region34: #{_lambda_.11} parent=31 // pred_check_branch
        %291 = sbr.rel (%p289) target = $region36
      $region35: #{_lambda_.11} parent=31 // pred_region
        %s292 = smul.u32 8, %s14
      $region36: #{_lambda_.11} parent=31 // pred_fallthru
        _
    $region32: #{_lambda_.11} parent=5 // pred_fallthru
      _
    %p293 = scmp.le.s32.totalorder 2, %s9
    // Predicated region
    $region37: #{_lambda_.11} parent=5 // pred_check
      %p294 = pneg %p293
    $region38: #{_lambda_.11} parent=5 // pred_check_branch
      %296 = sbr.rel (%p294) target = $region40
    $region39: #{_lambda_.11} parent=5 // pred_region
      %s297 = ssub.s32 %s9, 2
      // Predicated region
      $region41: #{_lambda_.11} parent=39 // pred_check
        %p298 = pneg %p106
      $region42: #{_lambda_.11} parent=39 // pred_check_branch
        %300 = sbr.rel (%p298) target = $region44
      $region43: #{_lambda_.11} parent=39 // pred_region
        %s301 = smul.u32 8, %s15
        %p302 = scmp.lt.s32.totalorder %s301, 15
        %s303 = scalar_select %p302, %s301, 15
        %s304 = smul.addr %s303, 4
        %s305 = scalar_lea.vmem %s3, %s304
      $region44: #{_lambda_.11} parent=39 // pred_fallthru
        _
    $region40: #{_lambda_.11} parent=5 // pred_fallthru
      _
  $region6: #{_lambda_.11} parent=0 // loop_footer
    %s13 = sadd.s32 1, %s9
  $region7: #{_lambda_.11} parent=0 // loop_footer_branch
    %8 = sbr.rel target = $region3
  $region8: #{_lambda_.11} parent=0 // loop_exit
    _

// kernel: _lambda_.12
$region0: #{_lambda_.12}
  #allocation0 [shape = 'u32[]', space=smem, size = 0x4, offset = 0x4, fixed_abs, tag = 'smem constant byte address 0x4 - core index']
  #allocation1 [shape = 'u32[144,128]{1,0:T(1,128)}', space=vmem, size = 0x12000, scoped, tag = 'internal scratch']
  %s0 = inlined_call_operand.vmem [shape: bf16[32,400], index: 0, kind: input, shape index: {}]
  %s1 = inlined_call_operand.vmem [shape: bf16[400,128], index: 1, kind: input, shape index: {}]
  %s2 = inlined_call_operand.vmem [shape: bf16[32,128], index: 2, kind: output, shape index: {0}]
  %s3 = inlined_call_operand.vmem [shape: f32[16,128], index: 3, kind: output, shape index: {1}]
  %4 = xla_tuple %s2, %s3
  %s5 = sld [smem:[#allocation0]]
  $region49: #{_lambda_.12} parent=0
    _
  %s7 = ssub.s32 1, %s5
  %s8 = scalar_select 0, %s7, %s5
  loop: start=0, step=1, limit=4
  $region2: #{_lambda_.12} parent=0 // loop_pre_header
    _
  $region3: #{_lambda_.12} parent=0 // loop_header
    %s10 = sphi 0, %s14
    %p11 = scmp.ge.s32.totalorder %s10, 4
    %s20 = sphi 0, %s22
    %s23 = sphi 0, %s20
    %s24 = sphi 0, %s23
    %s40 = sphi 0, %s24
    %s44 = sphi 0, %s44
    %s46 = sphi 0, %s44
    %s47 = sphi 0, %s46
    %s61 = sphi 0, %s47
    %s67 = sphi 0, %s69
    %s70 = sphi 0, %s67
    %s71 = sphi 0, %s70
    %s87 = sphi 0, %s71
    %s93 = sphi 0, %s95
    %s96 = sphi 0, %s93
    %s97 = sphi 0, %s96
    %s113 = sphi 0, %s97
  $region4: #{_lambda_.12} parent=0 // loop_header_branch
    %13 = sbr.rel (%p11) target = $region8
  $region5: #{_lambda_.12} parent=0 // loop_body
    %s15 = ssub.s32 %s10, 1
    %s16 = ssub.s32 %s10, 2
    %s17 = sadd.s32 %s10, 1
    %s18 = ssub.s32 %s10, %s17
    %p19 = scmp.eq.s32.totalorder %s18, 0
    %s21 = sadd.s32 %s20, 1
    %s22 = scalar_select %p19, %s20, %s21
    %p25 = pneg %p19
    %p26 = scmp.eq.s32.totalorder %s10, 1
    %p27 = por %p25, %p26
    %p28 = scmp.ne.s32.totalorder %s20, %s23
    %p29 = scmp.eq.s32.totalorder %s10, 0
    %p30 = por %p28, %p29
    %p31 = scmp.ne.s32.totalorder %s20, %s23
    %p32 = scmp.eq.s32.totalorder %s15, 1
    %p33 = por %p31, %p32
    %p34 = scmp.ne.s32.totalorder %s23, %s24
    %p35 = scmp.eq.s32.totalorder %s15, 0
    %p36 = por %p34, %p35
    %p37 = scmp.ne.s32.totalorder %s23, %s24
    %p38 = scmp.eq.s32.totalorder %s16, 1
    %p39 = por %p37, %p38
    %p41 = scmp.ne.s32.totalorder %s24, %s40
    %p42 = scmp.eq.s32.totalorder %s16, 0
    %p43 = por %p41, %p42
    %s45 = sadd.s32 %s44, 1
    %p48 = scmp.eq.s32.totalorder %s10, 1
    %p49 = scmp.ne.s32.totalorder %s44, %s46
    %p50 = scmp.eq.s32.totalorder %s10, 0
    %p51 = por %p49, %p50
    %p52 = scmp.ne.s32.totalorder %s44, %s46
    %p53 = scmp.eq.s32.totalorder %s15, 1
    %p54 = por %p52, %p53
    %p55 = scmp.ne.s32.totalorder %s46, %s47
    %p56 = scmp.eq.s32.totalorder %s15, 0
    %p57 = por %p55, %p56
    %p58 = scmp.ne.s32.totalorder %s46, %s47
    %p59 = scmp.eq.s32.totalorder %s16, 1
    %p60 = por %p58, %p59
    %p62 = scmp.ne.s32.totalorder %s47, %s61
    %p63 = scmp.eq.s32.totalorder %s16, 0
    %p64 = por %p62, %p63
    %s65 = ssub.s32 %s10, %s17
    %p66 = scmp.eq.s32.totalorder %s65, 0
    %s68 = sadd.s32 %s67, 1
    %s69 = scalar_select %p66, %s67, %s68
    %p72 = pneg %p66
    %p73 = scmp.eq.s32.totalorder %s10, 1
    %p74 = por %p72, %p73
    %p75 = scmp.ne.s32.totalorder %s67, %s70
    %p76 = scmp.eq.s32.totalorder %s10, 0
    %p77 = por %p75, %p76
    %p78 = scmp.ne.s32.totalorder %s67, %s70
    %p79 = scmp.eq.s32.totalorder %s15, 1
    %p80 = por %p78, %p79
    %p81 = scmp.ne.s32.totalorder %s70, %s71
    %p82 = scmp.eq.s32.totalorder %s15, 0
    %p83 = por %p81, %p82
    %p84 = scmp.ne.s32.totalorder %s70, %s71
    %p85 = scmp.eq.s32.totalorder %s16, 1
    %p86 = por %p84, %p85
    %p88 = scmp.ne.s32.totalorder %s71, %s87
    %p89 = scmp.eq.s32.totalorder %s16, 0
    %p90 = por %p88, %p89
    %s91 = ssub.s32 %s10, %s17
    %p92 = scmp.eq.s32.totalorder %s91, 0
    %s94 = sadd.s32 %s93, 1
    %s95 = scalar_select %p92, %s93, %s94
    %p98 = pneg %p92
    %p99 = scmp.eq.s32.totalorder %s10, 1
    %p100 = por %p98, %p99
    %p101 = scmp.ne.s32.totalorder %s93, %s96
    %p102 = scmp.eq.s32.totalorder %s10, 0
    %p103 = por %p101, %p102
    %p104 = scmp.ne.s32.totalorder %s93, %s96
    %p105 = scmp.eq.s32.totalorder %s15, 1
    %p106 = por %p104, %p105
    %p107 = scmp.ne.s32.totalorder %s96, %s97
    %p108 = scmp.eq.s32.totalorder %s15, 0
    %p109 = por %p107, %p108
    %p110 = scmp.ne.s32.totalorder %s96, %s97
    %p111 = scmp.eq.s32.totalorder %s16, 1
    %p112 = por %p110, %p111
    %p114 = scmp.ne.s32.totalorder %s97, %s113
    %p115 = scmp.eq.s32.totalorder %s16, 0
    %p116 = por %p114, %p115
    %p117 = scmp.le.s32.totalorder 1, %s10
    %p118 = scmp.lt.s32.totalorder %s10, 3
    %p119 = pnand %p117, %p118
    %p120 = pneg %p119
    // Predicated region
    $region9: #{_lambda_.12} parent=5 // pred_check
      _
    $region10: #{_lambda_.12} parent=5 // pred_check_branch
      %122 = sbr.rel (%p119) target = $region12
    $region11: #{_lambda_.12} parent=5 // pred_region
      %s123 = ssub.s32 %s10, 1
      // Predicated region
      $region13: #{_lambda_.12} parent=11 // pred_check
        %p124 = pneg %p57
      $region14: #{_lambda_.12} parent=11 // pred_check_branch
        %126 = sbr.rel (%p124) target = $region16
      $region15: #{_lambda_.12} parent=11 // pred_region
        _
      $region16: #{_lambda_.12} parent=11 // pred_fallthru
        _
    $region12: #{_lambda_.12} parent=5 // pred_fallthru
      _
    %p127 = scmp.lt.s32.totalorder %s10, 2
    // Predicated region
    $region17: #{_lambda_.12} parent=5 // pred_check
      %p128 = pneg %p127
    $region18: #{_lambda_.12} parent=5 // pred_check_branch
      %130 = sbr.rel (%p128) target = $region20
    $region19: #{_lambda_.12} parent=5 // pred_region
      // Predicated region
      $region21: #{_lambda_.12} parent=19 // pred_check
        %p131 = pneg %p30
      $region22: #{_lambda_.12} parent=19 // pred_check_branch
        %133 = sbr.rel (%p131) target = $region24
      $region23: #{_lambda_.12} parent=19 // pred_region
        %s134 = smul.u32 2, %s10
        %p135 = scmp.lt.s32.totalorder %s134, 3
        %s136 = scalar_select %p135, %s134, 3
        %s137 = smul.addr %s136, 4
        %s138 = smul.addr %s137, 4
        %s139 = scalar_lea.vmem %s0, %s138
        %s140 = smul.u32 2, %s10
      $region24: #{_lambda_.12} parent=19 // pred_fallthru
        _
    $region20: #{_lambda_.12} parent=5 // pred_fallthru
      _
    %p141 = scmp.le.s32.totalorder 1, %s10
    %p142 = scmp.lt.s32.totalorder %s10, 3
    %p143 = pnand %p141, %p142
    %p144 = pneg %p143
    // Predicated region
    $region25: #{_lambda_.12} parent=5 // pred_check
      _
    $region26: #{_lambda_.12} parent=5 // pred_check_branch
      %146 = sbr.rel (%p143) target = $region28
    $region27: #{_lambda_.12} parent=5 // pred_region
      %s147 = ssub.s32 %s10, 1
      %s148 = smul.u32 2, %s15
      %p149 = scmp.lt.s32.totalorder %s148, 3
      %s150 = scalar_select %p149, %s148, 3
      %s151 = smul.addr %s150, 4
      %s152 = smul.addr %s151, 4
      %s153 = scalar_lea.vmem %s0, %s152
      %p154 = pneg %p36
      %p155 = pneg %p33
      %p156 = pneg %p57
      %p157 = pneg %p54
      %p158 = pneg %p83
      %p159 = pneg %p80
      %s160 = smul.u32 2, %s15
      %p161 = scmp.lt.s32.totalorder %s160, 3
      %s162 = scalar_select %p161, %s160, 3
      %s163 = smul.addr %s162, 4
      %s164 = scalar_lea.vmem %s2, %s163
      %p165 = pneg %p109
      %p166 = pneg %p106
      %p167 = scmp.lt.s32.totalorder %s15, 1
      %s168 = scalar_select %p167, %s15, 1
      %s169 = smul.addr %s168, 8
      %s170 = scalar_lea.vmem %s3, %s169
      %s171 = smul.u32 2, %s15
      %p172 = scmp.lt.s32.totalorder %s171, 3
      %s173 = scalar_select %p172, %s171, 3
      %s174 = smul.addr %s173, 4
      %s175 = smul.addr %s174, 4
      %s176 = scalar_lea.vmem %s0, %s175
      %s177 = smul.u32 2, %s15
      %s178 = smul.u32 2, %s15
      %p179 = scmp.lt.s32.totalorder %s178, 3
      %s180 = scalar_select %p179, %s178, 3
      %s181 = smul.addr %s180, 4
      %s182 = scalar_lea.vmem %s2, %s181
      %s183 = smul.u32 2, %s15
      %p184 = scmp.lt.s32.totalorder %s15, 1
      %s185 = scalar_select %p184, %s15, 1
      %s186 = smul.addr %s185, 8
      %s187 = scalar_lea.vmem %s3, %s186
      %v189 = vld [vmem:[%s176] sm:$0xff]
      %v190 = vld [vmem:[%s176 + $0x8] sm:$0xff]
      %v191 = vld [vmem:[%s176 + $0x10] sm:$0xff]
      %v192 = vld [vmem:[%s176 + $0x18] sm:$0xff]
      %v193 = vld [vmem:[%s1] sm:$0xf]
      %v194 = vld [vmem:[%s1 + $0x4] sm:$0xf]
      %v195 = vld [vmem:[%s1 + $0x8] sm:$0xf]
      %v196 = vld [vmem:[%s1 + $0xc] sm:$0xf]
      %v197 = vld [vmem:[%s1 + $0x10] sm:$0xf]
      %v198 = vld [vmem:[%s1 + $0x14] sm:$0xf]
      %v199 = vld [vmem:[%s1 + $0x18] sm:$0xf]
      %v200 = vld [vmem:[%s1 + $0x1c] sm:$0xf]
      %v201 = vld [vmem:[%s1 + $0x20] sm:$0xf]
      %v202 = vld [vmem:[%s1 + $0x24] sm:$0xf]
      %v203 = vld [vmem:[%s1 + $0x28] sm:$0xf]
      %v204 = vld [vmem:[%s1 + $0x2c] sm:$0xf]
      %v205 = vld [vmem:[%s1 + $0x30] sm:$0xf]
      %v206 = vld [vmem:[%s1 + $0x34] sm:$0xf]
      %v207 = vld [vmem:[%s1 + $0x38] sm:$0xf]
      %v208 = vld [vmem:[%s1 + $0x3c] sm:$0xf]
      %v209 = vld [vmem:[%s1 + $0x40] sm:$0xf]
      %v210 = vld [vmem:[%s1 + $0x44] sm:$0xf]
      %v211 = vld [vmem:[%s1 + $0x48] sm:$0xf]
      %v212 = vld [vmem:[%s1 + $0x4c] sm:$0xf]
      %v213 = vld [vmem:[%s1 + $0x50] sm:$0xf]
      %v214 = vld [vmem:[%s1 + $0x54] sm:$0xf]
      %v215 = vld [vmem:[%s1 + $0x58] sm:$0xf]
      %v216 = vld [vmem:[%s1 + $0x5c] sm:$0xf]
      %v217 = vld [vmem:[%s1 + $0x60] sm:$0xf]
      %v218 = vld [vmem:[%s1 + $0x64] sm:$0xf]
      %v219 = vld [vmem:[%s1 + $0x68] sm:$0xf]
      %v220 = vld [vmem:[%s1 + $0x6c] sm:$0xf]
      %v221 = vld [vmem:[%s1 + $0x70] sm:$0xf]
      %v222 = vld [vmem:[%s1 + $0x74] sm:$0xf]
      %v223 = vld [vmem:[%s1 + $0x78] sm:$0xf]
      %v224 = vld [vmem:[%s1 + $0x7c] sm:$0xf]
      %v225 = vld [vmem:[%s1 + $0x80] sm:$0xf]
      %v226 = vld [vmem:[%s1 + $0x84] sm:$0xf]
      %v227 = vld [vmem:[%s1 + $0x88] sm:$0xf]
      %v228 = vld [vmem:[%s1 + $0x8c] sm:$0xf]
      %v229 = vld [vmem:[%s1 + $0x90] sm:$0xf]
      %v230 = vld [vmem:[%s1 + $0x94] sm:$0xf]
      %v231 = vld [vmem:[%s1 + $0x98] sm:$0xf]
      %v232 = vld [vmem:[%s1 + $0x9c] sm:$0xf]
      %v233 = vld [vmem:[%s1 + $0xa0] sm:$0xf]
      %v234 = vld [vmem:[%s1 + $0xa4] sm:$0xf]
      %v235 = vld [vmem:[%s1 + $0xa8] sm:$0xf]
      %v236 = vld [vmem:[%s1 + $0xac] sm:$0xf]
      %v237 = vld [vmem:[%s1 + $0xb0] sm:$0xf]
      %v238 = vld [vmem:[%s1 + $0xb4] sm:$0xf]
      %v239 = vld [vmem:[%s1 + $0xb8] sm:$0xf]
      %v240 = vld [vmem:[%s1 + $0xbc] sm:$0xf]
      %v241 = vld [vmem:[%s1 + $0xc0] sm:$0xf]
      %v242 = vld [vmem:[%s1 + $0xc4] sm:$0xf]
      %v247 = vunpack.c.l.b16 %v189
      %v248 = vunpack.c.h.b16 %v189
      %v249 = vunpack.c.l.b16 %v190
      %v250 = vunpack.c.h.b16 %v190
      %v251 = vunpack.c.l.b16 %v191
      %v252 = vunpack.c.h.b16 %v191
      %v253 = vunpack.c.l.b16 %v192
      %v254 = vunpack.c.h.b16 %v192
      %v255 = vpack.c.b16 %v251, %v247
      %v256 = vpack.c.b16 %v252, %v248
      %v257 = vpack.c.b16 %v253, %v249
      %v258 = vpack.c.b16 %v254, %v250
      %v312 = vunpack.c.l.b16 %v193
      %v313 = vunpack.c.l.b16 %v194
      %v314 = vunpack.c.l.b16 %v195
      %v315 = vunpack.c.l.b16 %v196
      %v316 = vunpack.c.l.b16 %v197
      %v317 = vunpack.c.l.b16 %v198
      %v318 = vunpack.c.l.b16 %v199
      %v319 = vunpack.c.l.b16 %v200
      %v320 = vunpack.c.l.b16 %v201
      %v321 = vunpack.c.l.b16 %v202
      %v322 = vunpack.c.l.b16 %v203
      %v323 = vunpack.c.l.b16 %v204
      %v324 = vunpack.c.l.b16 %v205
      %v325 = vunpack.c.l.b16 %v206
      %v326 = vunpack.c.l.b16 %v207
      %v327 = vunpack.c.l.b16 %v208
      %v328 = vunpack.c.l.b16 %v209
      %v329 = vunpack.c.l.b16 %v210
      %v330 = vunpack.c.l.b16 %v211
      %v331 = vunpack.c.l.b16 %v212
      %v332 = vunpack.c.l.b16 %v213
      %v333 = vunpack.c.l.b16 %v214
      %v334 = vunpack.c.l.b16 %v215
      %v335 = vunpack.c.l.b16 %v216
      %v336 = vunpack.c.l.b16 %v217
      %v337 = vunpack.c.l.b16 %v218
      %v338 = vunpack.c.l.b16 %v219
      %v339 = vunpack.c.l.b16 %v220
      %v340 = vunpack.c.l.b16 %v221
      %v341 = vunpack.c.l.b16 %v222
      %v342 = vunpack.c.l.b16 %v223
      %v343 = vunpack.c.l.b16 %v224
      %v344 = vunpack.c.l.b16 %v225
      %v345 = vunpack.c.l.b16 %v226
      %v346 = vunpack.c.l.b16 %v227
      %v347 = vunpack.c.l.b16 %v228
      %v348 = vunpack.c.l.b16 %v229
      %v349 = vunpack.c.l.b16 %v230
      %v350 = vunpack.c.l.b16 %v231
      %v351 = vunpack.c.l.b16 %v232
      %v352 = vunpack.c.l.b16 %v233
      %v353 = vunpack.c.l.b16 %v234
      %v354 = vunpack.c.l.b16 %v235
      %v355 = vunpack.c.l.b16 %v236
      %v356 = vunpack.c.l.b16 %v237
      %v357 = vunpack.c.l.b16 %v238
      %v358 = vunpack.c.l.b16 %v239
      %v359 = vunpack.c.l.b16 %v240
      %v360 = vunpack.c.l.b16 %v241
      %v361 = vunpack.c.l.b16 %v242
      %v362 = vpack.c.b16 %v313, %v312
      %v363 = vpack.c.b16 %v315, %v314
      %v364 = vpack.c.b16 %v317, %v316
      %v365 = vpack.c.b16 %v319, %v318
      %v366 = vpack.c.b16 %v321, %v320
      %v367 = vpack.c.b16 %v323, %v322
      %v368 = vpack.c.b16 %v325, %v324
      %v369 = vpack.c.b16 %v327, %v326
      %v370 = vpack.c.b16 %v329, %v328
      %v371 = vpack.c.b16 %v331, %v330
      %v372 = vpack.c.b16 %v333, %v332
      %v373 = vpack.c.b16 %v335, %v334
      %v374 = vpack.c.b16 %v337, %v336
      %v375 = vpack.c.b16 %v339, %v338
      %v376 = vpack.c.b16 %v341, %v340
      %v377 = vpack.c.b16 %v343, %v342
      %v378 = vpack.c.b16 %v345, %v344
      %v379 = vpack.c.b16 %v347, %v346
      %v380 = vpack.c.b16 %v349, %v348
      %v381 = vpack.c.b16 %v351, %v350
      %v382 = vpack.c.b16 %v353, %v352
      %v383 = vpack.c.b16 %v355, %v354
      %v384 = vpack.c.b16 %v357, %v356
      %v385 = vpack.c.b16 %v359, %v358
      %v386 = vpack.c.b16 %v361, %v360
      %vm412 = vcmask 130048
      %v414 = vsel %vm412, %v258, 0
      %416 = vmatprep.subr.bf16.mxu0 0
      %417 = vmatpush1.bf16.msra.mxu0 %v362
      %418 = vmatprep.subr.bf16.mxu0 0
      %419 = vmatpush1.bf16.msra.mxu0 %v363
      %420 = vmatprep.subr.bf16.mxu0 0
      %421 = vmatpush1.bf16.msra.mxu0 %v364
      %422 = vmatprep.subr.bf16.mxu0 0
      %423 = vmatpush1.bf16.msra.mxu0 %v365
      %424 = vmatprep.subr.bf16.mxu0 0
      %425 = vmatpush1.bf16.msra.mxu0 %v366
      %426 = vmatprep.subr.bf16.mxu0 0
      %427 = vmatpush1.bf16.msra.mxu0 %v367
      %428 = vmatprep.subr.bf16.mxu0 0
      %429 = vmatpush1.bf16.msra.mxu0 %v368
      %430 = vmatprep.subr.bf16.mxu0 0
      %431 = vmatpush1.bf16.msra.mxu0 %v369
      %432 = vmatprep.subr.bf16.mxu0 0
      %433 = vmatpush1.bf16.msra.mxu0 %v370
      %434 = vmatprep.subr.bf16.mxu0 0
      %435 = vmatpush1.bf16.msra.mxu0 %v371
      %436 = vmatprep.subr.bf16.mxu0 0
      %437 = vmatpush1.bf16.msra.mxu0 %v372
      %438 = vmatprep.subr.bf16.mxu0 0
      %439 = vmatpush1.bf16.msra.mxu0 %v373
      %440 = vmatprep.subr.bf16.mxu0 0
      %441 = vmatpush1.bf16.msra.mxu0 %v374
      %442 = vmatprep.subr.bf16.mxu0 0
      %443 = vmatpush1.bf16.msra.mxu0 %v375
      %444 = vmatprep.subr.bf16.mxu0 0
      %445 = vmatpush1.bf16.msra.mxu0 %v376
      %446 = vmatprep.subr.bf16.mxu0 0
      %447 = vmatpush1.bf16.msra.mxu0 %v377
      %448 = vmatprep.mubr.bf16.mxu0 %v256
      %449 = vmatmul.mubr.bf16.gmra.mrb[0].mxu0 %v255
      %v450 = vpop.f32.mrb[0].mxu0
      %v451 = vadd.f32 0.0, %v450
      %v452 = vpop.f32.mrb[0].mxu0
      %v453 = vpop.f32.mrb[0].mxu0
      %v454 = vadd.f32 0.0, %v453
      %v455 = vpop.f32.mrb[0].mxu0
      %456 = vdwg.mxu0
      %457 = vmatprep.subr.bf16.mxu0 0
      %458 = vmatpush1.bf16.msra.mxu0 %v378
      %459 = vmatprep.subr.bf16.mxu0 0
      %460 = vmatpush1.bf16.msra.mxu0 %v379
      %461 = vmatprep.subr.bf16.mxu0 0
      %462 = vmatpush1.bf16.msra.mxu0 %v380
      %463 = vmatprep.subr.bf16.mxu0 0
      %464 = vmatpush1.bf16.msra.mxu0 %v381
      %465 = vmatprep.subr.bf16.mxu0 0
      %466 = vmatpush1.bf16.msra.mxu0 %v382
      %467 = vmatprep.subr.bf16.mxu0 0
      %468 = vmatpush1.bf16.msra.mxu0 %v383
      %469 = vmatprep.subr.bf16.mxu0 0
      %470 = vmatpush1.bf16.msra.mxu0 %v384
      %471 = vmatprep.subr.bf16.mxu0 0
      %472 = vmatpush1.bf16.msra.mxu0 %v385
      %473 = vmatprep.subr.bf16.mxu0 0
      %474 = vmatpush1.bf16.msra.mxu0 %v386
      %475 = vmatprep.subr.bf16.mxu0 0
      %476 = vmatpush1.bf16.msra.mxu0 0
      %477 = vmatprep.subr.bf16.mxu0 0
      %478 = vmatpush1.bf16.msra.mxu0 0
      %479 = vmatprep.subr.bf16.mxu0 0
      %480 = vmatpush1.bf16.msra.mxu0 0
      %481 = vmatprep.subr.bf16.mxu0 0
      %482 = vmatpush1.bf16.msra.mxu0 0
      %483 = vmatprep.subr.bf16.mxu0 0
      %484 = vmatpush1.bf16.msra.mxu0 0
      %485 = vmatprep.subr.bf16.mxu0 0
      %486 = vmatpush1.bf16.msra.mxu0 0
      %487 = vmatprep.subr.bf16.mxu0 0
      %488 = vmatpush1.bf16.msra.mxu0 0
      %489 = vmatprep.mubr.bf16.mxu0 %v414
      %490 = vmatmul.mubr.bf16.gmra.mrb[0].mxu0 %v257
      %v491 = vpop.f32.mrb[0].mxu0
      %v492 = vadd.f32 %v451, %v491
      %v493 = vpop.f32.mrb[0].mxu0
      %v494 = vpop.f32.mrb[0].mxu0
      %v495 = vadd.f32 %v454, %v494
      %v496 = vpop.f32.mrb[0].mxu0
      %497 = vdwg.mxu0
      %v498 = vpack.c.bf16 %v495, %v492
      %v500 = vunpack.c.l.b16 %v498
      %v501 = vunpack.c.h.b16 %v498
      %v502 = vpack.c.b16 %v500, %v500
      %v503 = vpack.c.b16 %v501, %v501
      %506 = vst [vmem:[%s182] sm:$0xf] %v502
      %507 = vst [vmem:[%s182 + $0x4] sm:$0xf] %v503
      %v508 = vadd.f32 %v492, %v495
      %v509 = vrot.slane %v508, 4
      %v510 = vadd.f32 %v508, %v509
      %v511 = vrot.slane %v510, 2
      %v512 = vadd.f32 %v510, %v511
      %v513 = vrot.slane %v512, 1
      %v514 = vadd.f32 %v512, %v513
      %515 = vst [vmem:[%s187] sm:$0x1] %v514
      %v516 = vmul.f32 %v492, %v492
      %v517 = vmul.f32 %v495, %v495
      %v518 = vadd.f32 %v516, %v517
      %v519 = vrot.slane %v518, 4
      %v520 = vadd.f32 %v518, %v519
      %v521 = vrot.slane %v520, 2
      %v522 = vadd.f32 %v520, %v521
      %v523 = vrot.slane %v522, 1
      %v524 = vadd.f32 %v522, %v523
      %525 = vst [vmem:[%s187 + $0x1] sm:$0x1] %v524
      %s526 = smul.u32 2, %s15
      %p527 = scmp.lt.s32.totalorder %s526, 3
      %s528 = scalar_select %p527, %s526, 3
      %s529 = smul.addr %s528, 4
      %s530 = scalar_lea.vmem %s2, %s529
      %p531 = scmp.lt.s32.totalorder %s15, 1
      %s532 = scalar_select %p531, %s15, 1
      %s533 = smul.addr %s532, 8
      %s534 = scalar_lea.vmem %s3, %s533
      // Predicated region
      $region29: #{_lambda_.12} parent=27 // pred_check
        %p535 = pneg %p80
      $region30: #{_lambda_.12} parent=27 // pred_check_branch
        %537 = sbr.rel (%p535) target = $region32
      $region31: #{_lambda_.12} parent=27 // pred_region
        %s538 = smul.u32 2, %s15
      $region32: #{_lambda_.12} parent=27 // pred_fallthru
        _
      // Predicated region
      $region33: #{_lambda_.12} parent=27 // pred_check
        %p539 = pneg %p106
      $region34: #{_lambda_.12} parent=27 // pred_check_branch
        %541 = sbr.rel (%p539) target = $region36
      $region35: #{_lambda_.12} parent=27 // pred_region
        _
      $region36: #{_lambda_.12} parent=27 // pred_fallthru
        _
    $region28: #{_lambda_.12} parent=5 // pred_fallthru
      _
    %p542 = scmp.le.s32.totalorder 2, %s10
    // Predicated region
    $region37: #{_lambda_.12} parent=5 // pred_check
      %p543 = pneg %p542
    $region38: #{_lambda_.12} parent=5 // pred_check_branch
      %545 = sbr.rel (%p543) target = $region40
    $region39: #{_lambda_.12} parent=5 // pred_region
      %s546 = ssub.s32 %s10, 2
      // Predicated region
      $region41: #{_lambda_.12} parent=39 // pred_check
        %p547 = pneg %p86
      $region42: #{_lambda_.12} parent=39 // pred_check_branch
        %549 = sbr.rel (%p547) target = $region44
      $region43: #{_lambda_.12} parent=39 // pred_region
        %s550 = smul.u32 2, %s16
        %p551 = scmp.lt.s32.totalorder %s550, 3
        %s552 = scalar_select %p551, %s550, 3
        %s553 = smul.addr %s552, 4
        %s554 = scalar_lea.vmem %s2, %s553
      $region44: #{_lambda_.12} parent=39 // pred_fallthru
        _
      // Predicated region
      $region45: #{_lambda_.12} parent=39 // pred_check
        %p555 = pneg %p112
      $region46: #{_lambda_.12} parent=39 // pred_check_branch
        %557 = sbr.rel (%p555) target = $region48
      $region47: #{_lambda_.12} parent=39 // pred_region
        %p558 = scmp.lt.s32.totalorder %s16, 1
        %s559 = scalar_select %p558, %s16, 1
        %s560 = smul.addr %s559, 8
        %s561 = scalar_lea.vmem %s3, %s560
      $region48: #{_lambda_.12} parent=39 // pred_fallthru
        _
    $region40: #{_lambda_.12} parent=5 // pred_fallthru
      _
  $region6: #{_lambda_.12} parent=0 // loop_footer
    %s14 = sadd.s32 1, %s10
  $region7: #{_lambda_.12} parent=0 // loop_footer_branch
    %9 = sbr.rel target = $region3
  $region8: #{_lambda_.12} parent=0 // loop_exit
    _

// kernel: _lambda_.13
$region0: #{_lambda_.13}
  #allocation0 [shape = 'u32[]', space=smem, size = 0x4, offset = 0x4, fixed_abs, tag = 'smem constant byte address 0x4 - core index']
  #allocation1 [shape = 'u32[144,128]{1,0:T(1,128)}', space=vmem, size = 0x12000, scoped, tag = 'internal scratch']
  %s0 = inlined_call_operand.vmem [shape: bf16[32,128], index: 0, kind: input, shape index: {}]
  %s1 = inlined_call_operand.vmem [shape: f32[1,128], index: 1, kind: input, shape index: {}]
  %s2 = inlined_call_operand.vmem [shape: f32[1,128], index: 2, kind: input, shape index: {}]
  %s3 = inlined_call_operand.vmem [shape: bf16[32,128], index: 3, kind: output, shape index: {}]
  %s4 = sld [smem:[#allocation0]]
  $region45: #{_lambda_.13} parent=0
    _
  %s6 = ssub.s32 1, %s4
  %s7 = scalar_select 0, %s6, %s4
  loop: start=0, step=1, limit=4
  $region2: #{_lambda_.13} parent=0 // loop_pre_header
    _
  $region3: #{_lambda_.13} parent=0 // loop_header
    %s9 = sphi 0, %s13
    %p10 = scmp.ge.s32.totalorder %s9, 4
    %s19 = sphi 0, %s21
    %s22 = sphi 0, %s19
    %s23 = sphi 0, %s22
    %s39 = sphi 0, %s23
    %s43 = sphi 0, %s43
    %s45 = sphi 0, %s43
    %s46 = sphi 0, %s45
    %s60 = sphi 0, %s46
    %s64 = sphi 0, %s64
    %s66 = sphi 0, %s64
    %s67 = sphi 0, %s66
    %s81 = sphi 0, %s67
    %s87 = sphi 0, %s89
    %s90 = sphi 0, %s87
    %s91 = sphi 0, %s90
    %s107 = sphi 0, %s91
  $region4: #{_lambda_.13} parent=0 // loop_header_branch
    %12 = sbr.rel (%p10) target = $region8
  $region5: #{_lambda_.13} parent=0 // loop_body
    %s14 = ssub.s32 %s9, 1
    %s15 = ssub.s32 %s9, 2
    %s16 = sadd.s32 %s9, 1
    %s17 = ssub.s32 %s9, %s16
    %p18 = scmp.eq.s32.totalorder %s17, 0
    %s20 = sadd.s32 %s19, 1
    %s21 = scalar_select %p18, %s19, %s20
    %p24 = pneg %p18
    %p25 = scmp.eq.s32.totalorder %s9, 1
    %p26 = por %p24, %p25
    %p27 = scmp.ne.s32.totalorder %s19, %s22
    %p28 = scmp.eq.s32.totalorder %s9, 0
    %p29 = por %p27, %p28
    %p30 = scmp.ne.s32.totalorder %s19, %s22
    %p31 = scmp.eq.s32.totalorder %s14, 1
    %p32 = por %p30, %p31
    %p33 = scmp.ne.s32.totalorder %s22, %s23
    %p34 = scmp.eq.s32.totalorder %s14, 0
    %p35 = por %p33, %p34
    %p36 = scmp.ne.s32.totalorder %s22, %s23
    %p37 = scmp.eq.s32.totalorder %s15, 1
    %p38 = por %p36, %p37
    %p40 = scmp.ne.s32.totalorder %s23, %s39
    %p41 = scmp.eq.s32.totalorder %s15, 0
    %p42 = por %p40, %p41
    %s44 = sadd.s32 %s43, 1
    %p47 = scmp.eq.s32.totalorder %s9, 1
    %p48 = scmp.ne.s32.totalorder %s43, %s45
    %p49 = scmp.eq.s32.totalorder %s9, 0
    %p50 = por %p48, %p49
    %p51 = scmp.ne.s32.totalorder %s43, %s45
    %p52 = scmp.eq.s32.totalorder %s14, 1
    %p53 = por %p51, %p52
    %p54 = scmp.ne.s32.totalorder %s45, %s46
    %p55 = scmp.eq.s32.totalorder %s14, 0
    %p56 = por %p54, %p55
    %p57 = scmp.ne.s32.totalorder %s45, %s46
    %p58 = scmp.eq.s32.totalorder %s15, 1
    %p59 = por %p57, %p58
    %p61 = scmp.ne.s32.totalorder %s46, %s60
    %p62 = scmp.eq.s32.totalorder %s15, 0
    %p63 = por %p61, %p62
    %s65 = sadd.s32 %s64, 1
    %p68 = scmp.eq.s32.totalorder %s9, 1
    %p69 = scmp.ne.s32.totalorder %s64, %s66
    %p70 = scmp.eq.s32.totalorder %s9, 0
    %p71 = por %p69, %p70
    %p72 = scmp.ne.s32.totalorder %s64, %s66
    %p73 = scmp.eq.s32.totalorder %s14, 1
    %p74 = por %p72, %p73
    %p75 = scmp.ne.s32.totalorder %s66, %s67
    %p76 = scmp.eq.s32.totalorder %s14, 0
    %p77 = por %p75, %p76
    %p78 = scmp.ne.s32.totalorder %s66, %s67
    %p79 = scmp.eq.s32.totalorder %s15, 1
    %p80 = por %p78, %p79
    %p82 = scmp.ne.s32.totalorder %s67, %s81
    %p83 = scmp.eq.s32.totalorder %s15, 0
    %p84 = por %p82, %p83
    %s85 = ssub.s32 %s9, %s16
    %p86 = scmp.eq.s32.totalorder %s85, 0
    %s88 = sadd.s32 %s87, 1
    %s89 = scalar_select %p86, %s87, %s88
    %p92 = pneg %p86
    %p93 = scmp.eq.s32.totalorder %s9, 1
    %p94 = por %p92, %p93
    %p95 = scmp.ne.s32.totalorder %s87, %s90
    %p96 = scmp.eq.s32.totalorder %s9, 0
    %p97 = por %p95, %p96
    %p98 = scmp.ne.s32.totalorder %s87, %s90
    %p99 = scmp.eq.s32.totalorder %s14, 1
    %p100 = por %p98, %p99
    %p101 = scmp.ne.s32.totalorder %s90, %s91
    %p102 = scmp.eq.s32.totalorder %s14, 0
    %p103 = por %p101, %p102
    %p104 = scmp.ne.s32.totalorder %s90, %s91
    %p105 = scmp.eq.s32.totalorder %s15, 1
    %p106 = por %p104, %p105
    %p108 = scmp.ne.s32.totalorder %s91, %s107
    %p109 = scmp.eq.s32.totalorder %s15, 0
    %p110 = por %p108, %p109
    %p111 = scmp.le.s32.totalorder 1, %s9
    %p112 = scmp.lt.s32.totalorder %s9, 3
    %p113 = pnand %p111, %p112
    %p114 = pneg %p113
    // Predicated region
    $region9: #{_lambda_.13} parent=5 // pred_check
      _
    $region10: #{_lambda_.13} parent=5 // pred_check_branch
      %116 = sbr.rel (%p113) target = $region12
    $region11: #{_lambda_.13} parent=5 // pred_region
      %s117 = ssub.s32 %s9, 1
      // Predicated region
      $region13: #{_lambda_.13} parent=11 // pred_check
        %p118 = pneg %p56
      $region14: #{_lambda_.13} parent=11 // pred_check_branch
        %120 = sbr.rel (%p118) target = $region16
      $region15: #{_lambda_.13} parent=11 // pred_region
        _
      $region16: #{_lambda_.13} parent=11 // pred_fallthru
        _
      // Predicated region
      $region17: #{_lambda_.13} parent=11 // pred_check
        %p121 = pneg %p77
      $region18: #{_lambda_.13} parent=11 // pred_check_branch
        %123 = sbr.rel (%p121) target = $region20
      $region19: #{_lambda_.13} parent=11 // pred_region
        _
      $region20: #{_lambda_.13} parent=11 // pred_fallthru
        _
    $region12: #{_lambda_.13} parent=5 // pred_fallthru
      _
    %p124 = scmp.lt.s32.totalorder %s9, 2
    // Predicated region
    $region21: #{_lambda_.13} parent=5 // pred_check
      %p125 = pneg %p124
    $region22: #{_lambda_.13} parent=5 // pred_check_branch
      %127 = sbr.rel (%p125) target = $region24
    $region23: #{_lambda_.13} parent=5 // pred_region
      // Predicated region
      $region25: #{_lambda_.13} parent=23 // pred_check
        %p128 = pneg %p29
      $region26: #{_lambda_.13} parent=23 // pred_check_branch
        %130 = sbr.rel (%p128) target = $region28
      $region27: #{_lambda_.13} parent=23 // pred_region
        %s131 = smul.u32 2, %s9
        %p132 = scmp.lt.s32.totalorder %s131, 3
        %s133 = scalar_select %p132, %s131, 3
        %s134 = smul.addr %s133, 4
        %s135 = scalar_lea.vmem %s0, %s134
        %s136 = smul.u32 2, %s9
      $region28: #{_lambda_.13} parent=23 // pred_fallthru
        _
    $region24: #{_lambda_.13} parent=5 // pred_fallthru
      _
    %p137 = scmp.le.s32.totalorder 1, %s9
    %p138 = scmp.lt.s32.totalorder %s9, 3
    %p139 = pnand %p137, %p138
    %p140 = pneg %p139
    // Predicated region
    $region29: #{_lambda_.13} parent=5 // pred_check
      _
    $region30: #{_lambda_.13} parent=5 // pred_check_branch
      %142 = sbr.rel (%p139) target = $region32
    $region31: #{_lambda_.13} parent=5 // pred_region
      %s143 = ssub.s32 %s9, 1
      %s144 = smul.u32 2, %s14
      %p145 = scmp.lt.s32.totalorder %s144, 3
      %s146 = scalar_select %p145, %s144, 3
      %s147 = smul.addr %s146, 4
      %s148 = scalar_lea.vmem %s0, %s147
      %p149 = pneg %p35
      %p150 = pneg %p32
      %p151 = pneg %p56
      %p152 = pneg %p53
      %p153 = pneg %p77
      %p154 = pneg %p74
      %p155 = pneg %p103
      %p156 = pneg %p100
      %s157 = smul.u32 2, %s14
      %p158 = scmp.lt.s32.totalorder %s157, 3
      %s159 = scalar_select %p158, %s157, 3
      %s160 = smul.addr %s159, 4
      %s161 = scalar_lea.vmem %s3, %s160
      %s162 = smul.u32 2, %s14
      %p163 = scmp.lt.s32.totalorder %s162, 3
      %s164 = scalar_select %p163, %s162, 3
      %s165 = smul.addr %s164, 4
      %s166 = scalar_lea.vmem %s0, %s165
      %s167 = smul.u32 2, %s14
      %s168 = smul.u32 2, %s14
      %p169 = scmp.lt.s32.totalorder %s168, 3
      %s170 = scalar_select %p169, %s168, 3
      %s171 = smul.addr %s170, 4
      %s172 = scalar_lea.vmem %s3, %s171
      %s173 = smul.u32 2, %s14
      %v174 = vld [vmem:[%s166] sm:$0xf]
      %v175 = vld [vmem:[%s166 + $0x4] sm:$0xf]
      %v176 = vunpack.c.l.bf16 %v174
      %v177 = vunpack.c.l.bf16 %v175
      %v178 = vld [vmem:[%s1] sm:$0x1]
      %v180 = vlaneseq
      %v181 = vshrl.u32 %v180, 7
      %v182 = vsub.s32 0, %v181
      %v183 = vrot.slane %v178, %v182
      %v185 = vmul.f32 %v176, %v183
      %v186 = vmul.f32 %v177, %v183
      %v187 = vld [vmem:[%s2] sm:$0x1]
      %v189 = vlaneseq
      %v190 = vshrl.u32 %v189, 7
      %v191 = vsub.s32 0, %v190
      %v192 = vrot.slane %v187, %v191
      %v194 = vadd.f32 %v185, %v192
      %v195 = vadd.f32 %v186, %v192
      %vm196 = vcmp.gt.f32.partialorder %v194, 0.0
      %vm197 = vcmp.gt.f32.partialorder %v195, 0.0
      %v198 = vmul.f32 %v194, 0.05
      %v199 = vmul.f32 %v195, 0.05
      %v200 = vsel %vm196, %v194, %v198
      %v201 = vsel %vm197, %v195, %v199
      %v202 = vpack.c.bf16 %v201, %v200
      %v204 = vunpack.c.l.b16 %v202
      %v205 = vunpack.c.h.b16 %v202
      %v206 = vpack.c.b16 %v204, %v204
      %v207 = vpack.c.b16 %v205, %v205
      %210 = vst [vmem:[%s172] sm:$0xf] %v206
      %211 = vst [vmem:[%s172 + $0x4] sm:$0xf] %v207
      %s212 = smul.u32 2, %s14
      %p213 = scmp.lt.s32.totalorder %s212, 3
      %s214 = scalar_select %p213, %s212, 3
      %s215 = smul.addr %s214, 4
      %s216 = scalar_lea.vmem %s3, %s215
      // Predicated region
      $region33: #{_lambda_.13} parent=31 // pred_check
        %p217 = pneg %p100
      $region34: #{_lambda_.13} parent=31 // pred_check_branch
        %219 = sbr.rel (%p217) target = $region36
      $region35: #{_lambda_.13} parent=31 // pred_region
        %s220 = smul.u32 2, %s14
      $region36: #{_lambda_.13} parent=31 // pred_fallthru
        _
    $region32: #{_lambda_.13} parent=5 // pred_fallthru
      _
    %p221 = scmp.le.s32.totalorder 2, %s9
    // Predicated region
    $region37: #{_lambda_.13} parent=5 // pred_check
      %p222 = pneg %p221
    $region38: #{_lambda_.13} parent=5 // pred_check_branch
      %224 = sbr.rel (%p222) target = $region40
    $region39: #{_lambda_.13} parent=5 // pred_region
      %s225 = ssub.s32 %s9, 2
      // Predicated region
      $region41: #{_lambda_.13} parent=39 // pred_check
        %p226 = pneg %p106
      $region42: #{_lambda_.13} parent=39 // pred_check_branch
        %228 = sbr.rel (%p226) target = $region44
      $region43: #{_lambda_.13} parent=39 // pred_region
        %s229 = smul.u32 2, %s15
        %p230 = scmp.lt.s32.totalorder %s229, 3
        %s231 = scalar_select %p230, %s229, 3
        %s232 = smul.addr %s231, 4
        %s233 = scalar_lea.vmem %s3, %s232
      $region44: #{_lambda_.13} parent=39 // pred_fallthru
        _
    $region40: #{_lambda_.13} parent=5 // pred_fallthru
      _
  $region6: #{_lambda_.13} parent=0 // loop_footer
    %s13 = sadd.s32 1, %s9
  $region7: #{_lambda_.13} parent=0 // loop_footer_branch
    %8 = sbr.rel target = $region3
  $region8: #{_lambda_.13} parent=0 // loop_exit
    _

// kernel: _lambda_.15
$region0: #{_lambda_.15}
  #allocation0 [shape = 'u32[]', space=smem, size = 0x4, offset = 0x4, fixed_abs, tag = 'smem constant byte address 0x4 - core index']
  #allocation1 [shape = 'u32[144,128]{1,0:T(1,128)}', space=vmem, size = 0x12000, scoped, tag = 'internal scratch']
  %s0 = inlined_call_operand.vmem [shape: bf16[16,128], index: 0, kind: input, shape index: {}]
  %s1 = inlined_call_operand.vmem [shape: f32[1,128], index: 1, kind: input, shape index: {}]
  %s2 = inlined_call_operand.vmem [shape: f32[1,128], index: 2, kind: input, shape index: {}]
  %s3 = inlined_call_operand.vmem [shape: bf16[128,128], index: 3, kind: input, shape index: {}]
  %s4 = inlined_call_operand.vmem [shape: f32[1,128], index: 4, kind: input, shape index: {}]
  %s5 = inlined_call_operand.vmem [shape: f32[16,128], index: 5, kind: output, shape index: {}]
  %s6 = sld [smem:[#allocation0]]
  $region30: #{_lambda_.15} parent=0
    _
  %s8 = ssub.s32 1, %s6
  %s9 = scalar_select 0, %s8, %s6
  // Predicated region
  $region2: #{_lambda_.15} parent=0 // pred_check
    _
  $region3: #{_lambda_.15} parent=0 // pred_check_branch
    %11 = sbr.rel (0) target = $region5
  $region4: #{_lambda_.15} parent=0 // pred_region
    _
  $region5: #{_lambda_.15} parent=0 // pred_fallthru
    _
  // Predicated region
  $region6: #{_lambda_.15} parent=0 // pred_check
    _
  $region7: #{_lambda_.15} parent=0 // pred_check_branch
    %13 = sbr.rel (0) target = $region9
  $region8: #{_lambda_.15} parent=0 // pred_region
    _
  $region9: #{_lambda_.15} parent=0 // pred_fallthru
    _
  // Predicated region
  $region10: #{_lambda_.15} parent=0 // pred_check
    _
  $region11: #{_lambda_.15} parent=0 // pred_check_branch
    %15 = sbr.rel (0) target = $region13
  $region12: #{_lambda_.15} parent=0 // pred_region
    _
  $region13: #{_lambda_.15} parent=0 // pred_fallthru
    _
  // Predicated region
  $region14: #{_lambda_.15} parent=0 // pred_check
    _
  $region15: #{_lambda_.15} parent=0 // pred_check_branch
    %17 = sbr.rel (0) target = $region17
  $region16: #{_lambda_.15} parent=0 // pred_region
    _
  $region17: #{_lambda_.15} parent=0 // pred_fallthru
    _
  // Predicated region
  $region18: #{_lambda_.15} parent=0 // pred_check
    _
  $region19: #{_lambda_.15} parent=0 // pred_check_branch
    %19 = sbr.rel (0) target = $region21
  $region20: #{_lambda_.15} parent=0 // pred_region
    _
  $region21: #{_lambda_.15} parent=0 // pred_fallthru
    _
  %v21 = vld [vmem:[%s0] sm:$0xf]
  %v22 = vld [vmem:[%s0 + $0x4] sm:$0xf]
  %v23 = vunpack.c.l.bf16 %v21
  %v24 = vunpack.c.l.bf16 %v22
  %v25 = vld [vmem:[%s1] sm:$0x1]
  %v27 = vlaneseq
  %v28 = vshrl.u32 %v27, 7
  %v29 = vsub.s32 0, %v28
  %v30 = vrot.slane %v25, %v29
  %v32 = vmul.f32 %v23, %v30
  %v33 = vmul.f32 %v24, %v30
  %v34 = vld [vmem:[%s2] sm:$0x1]
  %v36 = vlaneseq
  %v37 = vshrl.u32 %v36, 7
  %v38 = vsub.s32 0, %v37
  %v39 = vrot.slane %v34, %v38
  %v41 = vadd.f32 %v32, %v39
  %v42 = vadd.f32 %v33, %v39
  %vm43 = vcmp.gt.f32.partialorder %v41, 0.0
  %vm44 = vcmp.gt.f32.partialorder %v42, 0.0
  %v45 = vmul.f32 %v41, 0.05
  %v46 = vmul.f32 %v42, 0.05
  %v47 = vsel %vm43, %v41, %v45
  %v48 = vsel %vm44, %v42, %v46
  %v49 = vpack.c.bf16 %v48, %v47
  %v50 = vld [vmem:[%s3] sm:$0xf]
  %v51 = vld [vmem:[%s3 + $0x4] sm:$0xf]
  %v52 = vld [vmem:[%s3 + $0x8] sm:$0xf]
  %v53 = vld [vmem:[%s3 + $0xc] sm:$0xf]
  %v54 = vld [vmem:[%s3 + $0x10] sm:$0xf]
  %v55 = vld [vmem:[%s3 + $0x14] sm:$0xf]
  %v56 = vld [vmem:[%s3 + $0x18] sm:$0xf]
  %v57 = vld [vmem:[%s3 + $0x1c] sm:$0xf]
  %v58 = vld [vmem:[%s3 + $0x20] sm:$0xf]
  %v59 = vld [vmem:[%s3 + $0x24] sm:$0xf]
  %v60 = vld [vmem:[%s3 + $0x28] sm:$0xf]
  %v61 = vld [vmem:[%s3 + $0x2c] sm:$0xf]
  %v62 = vld [vmem:[%s3 + $0x30] sm:$0xf]
  %v63 = vld [vmem:[%s3 + $0x34] sm:$0xf]
  %v64 = vld [vmem:[%s3 + $0x38] sm:$0xf]
  %v65 = vld [vmem:[%s3 + $0x3c] sm:$0xf]
  %v66 = vld [vmem:[%s4] sm:$0x1]
  %v68 = vlaneseq
  %v69 = vshrl.u32 %v68, 7
  %v70 = vsub.s32 0, %v69
  %v71 = vrot.slane %v66, %v70
  %v89 = vunpack.c.l.b16 %v50
  %v90 = vunpack.c.l.b16 %v51
  %v91 = vunpack.c.l.b16 %v52
  %v92 = vunpack.c.l.b16 %v53
  %v93 = vunpack.c.l.b16 %v54
  %v94 = vunpack.c.l.b16 %v55
  %v95 = vunpack.c.l.b16 %v56
  %v96 = vunpack.c.l.b16 %v57
  %v97 = vunpack.c.l.b16 %v58
  %v98 = vunpack.c.l.b16 %v59
  %v99 = vunpack.c.l.b16 %v60
  %v100 = vunpack.c.l.b16 %v61
  %v101 = vunpack.c.l.b16 %v62
  %v102 = vunpack.c.l.b16 %v63
  %v103 = vunpack.c.l.b16 %v64
  %v104 = vunpack.c.l.b16 %v65
  %v105 = vpack.c.b16 %v90, %v89
  %v106 = vpack.c.b16 %v92, %v91
  %v107 = vpack.c.b16 %v94, %v93
  %v108 = vpack.c.b16 %v96, %v95
  %v109 = vpack.c.b16 %v98, %v97
  %v110 = vpack.c.b16 %v100, %v99
  %v111 = vpack.c.b16 %v102, %v101
  %v112 = vpack.c.b16 %v104, %v103
  %121 = vmatprep.subr.bf16.mxu0 0
  %122 = vmatpush1.bf16.msra.mxu0 %v105
  %123 = vmatprep.subr.bf16.mxu0 0
  %124 = vmatpush1.bf16.msra.mxu0 %v106
  %125 = vmatprep.subr.bf16.mxu0 0
  %126 = vmatpush1.bf16.msra.mxu0 %v107
  %127 = vmatprep.subr.bf16.mxu0 0
  %128 = vmatpush1.bf16.msra.mxu0 %v108
  %129 = vmatprep.subr.bf16.mxu0 0
  %130 = vmatpush1.bf16.msra.mxu0 %v109
  %131 = vmatprep.subr.bf16.mxu0 0
  %132 = vmatpush1.bf16.msra.mxu0 %v110
  %133 = vmatprep.subr.bf16.mxu0 0
  %134 = vmatpush1.bf16.msra.mxu0 %v111
  %135 = vmatprep.subr.bf16.mxu0 0
  %136 = vmatpush1.bf16.msra.mxu0 %v112
  %137 = vmatprep.subr.bf16.mxu0 0
  %138 = vmatpush1.bf16.msra.mxu0 0
  %139 = vmatprep.subr.bf16.mxu0 0
  %140 = vmatpush1.bf16.msra.mxu0 0
  %141 = vmatprep.subr.bf16.mxu0 0
  %142 = vmatpush1.bf16.msra.mxu0 0
  %143 = vmatprep.subr.bf16.mxu0 0
  %144 = vmatpush1.bf16.msra.mxu0 0
  %145 = vmatprep.subr.bf16.mxu0 0
  %146 = vmatpush1.bf16.msra.mxu0 0
  %147 = vmatprep.subr.bf16.mxu0 0
  %148 = vmatpush1.bf16.msra.mxu0 0
  %149 = vmatprep.subr.bf16.mxu0 0
  %150 = vmatpush1.bf16.msra.mxu0 0
  %151 = vmatprep.subr.bf16.mxu0 0
  %152 = vmatpush1.bf16.msra.mxu0 0
  %153 = vmatprep.mubr.bf16.mxu0 0
  %154 = vmatmul.mubr.bf16.gmra.mrb[0].mxu0 %v49
  %v155 = vpop.f32.mrb[0].mxu0
  %v156 = vadd.f32 %v71, %v155
  %v157 = vpop.f32.mrb[0].mxu0
  %v158 = vpop.f32.mrb[0].mxu0
  %v159 = vadd.f32 %v71, %v158
  %v160 = vpop.f32.mrb[0].mxu0
  %161 = vdwg.mxu0
  %162 = vst [vmem:[%s5] sm:$0xff] %v156
  %163 = vst [vmem:[%s5 + $0x8] sm:$0xff] %v159
  // Predicated region
  $region22: #{_lambda_.15} parent=0 // pred_check
    _
  $region23: #{_lambda_.15} parent=0 // pred_check_branch
    %165 = sbr.rel (0) target = $region25
  $region24: #{_lambda_.15} parent=0 // pred_region
    _
  $region25: #{_lambda_.15} parent=0 // pred_fallthru
    _
  // Predicated region
  $region26: #{_lambda_.15} parent=0 // pred_check
    _
  $region27: #{_lambda_.15} parent=0 // pred_check_branch
    %167 = sbr.rel (0) target = $region29
  $region28: #{_lambda_.15} parent=0 // pred_region
    _
  $region29: #{_lambda_.15} parent=0 // pred_fallthru
    _

// kernel: _lambda_.14
$region0: #{_lambda_.14}
  #allocation0 [shape = 'u32[]', space=smem, size = 0x4, offset = 0x4, fixed_abs, tag = 'smem constant byte address 0x4 - core index']
  #allocation1 [shape = 'u32[144,128]{1,0:T(1,128)}', space=vmem, size = 0x12000, scoped, tag = 'internal scratch']
  %s0 = inlined_call_operand.vmem [shape: bf16[16,512], index: 0, kind: input, shape index: {}]
  %s1 = inlined_call_operand.vmem [shape: bf16[512,128], index: 1, kind: input, shape index: {}]
  %s2 = inlined_call_operand.vmem [shape: bf16[16,128], index: 2, kind: output, shape index: {0}]
  %s3 = inlined_call_operand.vmem [shape: f32[8,128], index: 3, kind: output, shape index: {1}]
  %4 = xla_tuple %s2, %s3
  %s5 = sld [smem:[#allocation0]]
  $region26: #{_lambda_.14} parent=0
    _
  %s7 = ssub.s32 1, %s5
  %s8 = scalar_select 0, %s7, %s5
  // Predicated region
  $region2: #{_lambda_.14} parent=0 // pred_check
    _
  $region3: #{_lambda_.14} parent=0 // pred_check_branch
    %10 = sbr.rel (0) target = $region5
  $region4: #{_lambda_.14} parent=0 // pred_region
    _
  $region5: #{_lambda_.14} parent=0 // pred_fallthru
    _
  // Predicated region
  $region6: #{_lambda_.14} parent=0 // pred_check
    _
  $region7: #{_lambda_.14} parent=0 // pred_check_branch
    %12 = sbr.rel (0) target = $region9
  $region8: #{_lambda_.14} parent=0 // pred_region
    _
  $region9: #{_lambda_.14} parent=0 // pred_fallthru
    _
  %v14 = vld [vmem:[%s0] sm:$0xff]
  %v15 = vld [vmem:[%s0 + $0x8] sm:$0xff]
  %v16 = vld [vmem:[%s0 + $0x10] sm:$0xff]
  %v17 = vld [vmem:[%s0 + $0x18] sm:$0xff]
  %v18 = vld [vmem:[%s1] sm:$0xf]
  %v19 = vld [vmem:[%s1 + $0x4] sm:$0xf]
  %v20 = vld [vmem:[%s1 + $0x8] sm:$0xf]
  %v21 = vld [vmem:[%s1 + $0xc] sm:$0xf]
  %v22 = vld [vmem:[%s1 + $0x10] sm:$0xf]
  %v23 = vld [vmem:[%s1 + $0x14] sm:$0xf]
  %v24 = vld [vmem:[%s1 + $0x18] sm:$0xf]
  %v25 = vld [vmem:[%s1 + $0x1c] sm:$0xf]
  %v26 = vld [vmem:[%s1 + $0x20] sm:$0xf]
  %v27 = vld [vmem:[%s1 + $0x24] sm:$0xf]
  %v28 = vld [vmem:[%s1 + $0x28] sm:$0xf]
  %v29 = vld [vmem:[%s1 + $0x2c] sm:$0xf]
  %v30 = vld [vmem:[%s1 + $0x30] sm:$0xf]
  %v31 = vld [vmem:[%s1 + $0x34] sm:$0xf]
  %v32 = vld [vmem:[%s1 + $0x38] sm:$0xf]
  %v33 = vld [vmem:[%s1 + $0x3c] sm:$0xf]
  %v34 = vld [vmem:[%s1 + $0x40] sm:$0xf]
  %v35 = vld [vmem:[%s1 + $0x44] sm:$0xf]
  %v36 = vld [vmem:[%s1 + $0x48] sm:$0xf]
  %v37 = vld [vmem:[%s1 + $0x4c] sm:$0xf]
  %v38 = vld [vmem:[%s1 + $0x50] sm:$0xf]
  %v39 = vld [vmem:[%s1 + $0x54] sm:$0xf]
  %v40 = vld [vmem:[%s1 + $0x58] sm:$0xf]
  %v41 = vld [vmem:[%s1 + $0x5c] sm:$0xf]
  %v42 = vld [vmem:[%s1 + $0x60] sm:$0xf]
  %v43 = vld [vmem:[%s1 + $0x64] sm:$0xf]
  %v44 = vld [vmem:[%s1 + $0x68] sm:$0xf]
  %v45 = vld [vmem:[%s1 + $0x6c] sm:$0xf]
  %v46 = vld [vmem:[%s1 + $0x70] sm:$0xf]
  %v47 = vld [vmem:[%s1 + $0x74] sm:$0xf]
  %v48 = vld [vmem:[%s1 + $0x78] sm:$0xf]
  %v49 = vld [vmem:[%s1 + $0x7c] sm:$0xf]
  %v50 = vld [vmem:[%s1 + $0x80] sm:$0xf]
  %v51 = vld [vmem:[%s1 + $0x84] sm:$0xf]
  %v52 = vld [vmem:[%s1 + $0x88] sm:$0xf]
  %v53 = vld [vmem:[%s1 + $0x8c] sm:$0xf]
  %v54 = vld [vmem:[%s1 + $0x90] sm:$0xf]
  %v55 = vld [vmem:[%s1 + $0x94] sm:$0xf]
  %v56 = vld [vmem:[%s1 + $0x98] sm:$0xf]
  %v57 = vld [vmem:[%s1 + $0x9c] sm:$0xf]
  %v58 = vld [vmem:[%s1 + $0xa0] sm:$0xf]
  %v59 = vld [vmem:[%s1 + $0xa4] sm:$0xf]
  %v60 = vld [vmem:[%s1 + $0xa8] sm:$0xf]
  %v61 = vld [vmem:[%s1 + $0xac] sm:$0xf]
  %v62 = vld [vmem:[%s1 + $0xb0] sm:$0xf]
  %v63 = vld [vmem:[%s1 + $0xb4] sm:$0xf]
  %v64 = vld [vmem:[%s1 + $0xb8] sm:$0xf]
  %v65 = vld [vmem:[%s1 + $0xbc] sm:$0xf]
  %v66 = vld [vmem:[%s1 + $0xc0] sm:$0xf]
  %v67 = vld [vmem:[%s1 + $0xc4] sm:$0xf]
  %v68 = vld [vmem:[%s1 + $0xc8] sm:$0xf]
  %v69 = vld [vmem:[%s1 + $0xcc] sm:$0xf]
  %v70 = vld [vmem:[%s1 + $0xd0] sm:$0xf]
  %v71 = vld [vmem:[%s1 + $0xd4] sm:$0xf]
  %v72 = vld [vmem:[%s1 + $0xd8] sm:$0xf]
  %v73 = vld [vmem:[%s1 + $0xdc] sm:$0xf]
  %v74 = vld [vmem:[%s1 + $0xe0] sm:$0xf]
  %v75 = vld [vmem:[%s1 + $0xe4] sm:$0xf]
  %v76 = vld [vmem:[%s1 + $0xe8] sm:$0xf]
  %v77 = vld [vmem:[%s1 + $0xec] sm:$0xf]
  %v78 = vld [vmem:[%s1 + $0xf0] sm:$0xf]
  %v79 = vld [vmem:[%s1 + $0xf4] sm:$0xf]
  %v80 = vld [vmem:[%s1 + $0xf8] sm:$0xf]
  %v81 = vld [vmem:[%s1 + $0xfc] sm:$0xf]
  %v86 = vunpack.c.l.b16 %v14
  %v87 = vunpack.c.h.b16 %v14
  %v88 = vunpack.c.l.b16 %v15
  %v89 = vunpack.c.h.b16 %v15
  %v90 = vunpack.c.l.b16 %v16
  %v91 = vunpack.c.h.b16 %v16
  %v92 = vunpack.c.l.b16 %v17
  %v93 = vunpack.c.h.b16 %v17
  %v94 = vpack.c.b16 %v90, %v86
  %v95 = vpack.c.b16 %v91, %v87
  %v96 = vpack.c.b16 %v92, %v88
  %v97 = vpack.c.b16 %v93, %v89
  %v166 = vunpack.c.l.b16 %v18
  %v167 = vunpack.c.l.b16 %v19
  %v168 = vunpack.c.l.b16 %v20
  %v169 = vunpack.c.l.b16 %v21
  %v170 = vunpack.c.l.b16 %v22
  %v171 = vunpack.c.l.b16 %v23
  %v172 = vunpack.c.l.b16 %v24
  %v173 = vunpack.c.l.b16 %v25
  %v174 = vunpack.c.l.b16 %v26
  %v175 = vunpack.c.l.b16 %v27
  %v176 = vunpack.c.l.b16 %v28
  %v177 = vunpack.c.l.b16 %v29
  %v178 = vunpack.c.l.b16 %v30
  %v179 = vunpack.c.l.b16 %v31
  %v180 = vunpack.c.l.b16 %v32
  %v181 = vunpack.c.l.b16 %v33
  %v182 = vunpack.c.l.b16 %v34
  %v183 = vunpack.c.l.b16 %v35
  %v184 = vunpack.c.l.b16 %v36
  %v185 = vunpack.c.l.b16 %v37
  %v186 = vunpack.c.l.b16 %v38
  %v187 = vunpack.c.l.b16 %v39
  %v188 = vunpack.c.l.b16 %v40
  %v189 = vunpack.c.l.b16 %v41
  %v190 = vunpack.c.l.b16 %v42
  %v191 = vunpack.c.l.b16 %v43
  %v192 = vunpack.c.l.b16 %v44
  %v193 = vunpack.c.l.b16 %v45
  %v194 = vunpack.c.l.b16 %v46
  %v195 = vunpack.c.l.b16 %v47
  %v196 = vunpack.c.l.b16 %v48
  %v197 = vunpack.c.l.b16 %v49
  %v198 = vunpack.c.l.b16 %v50
  %v199 = vunpack.c.l.b16 %v51
  %v200 = vunpack.c.l.b16 %v52
  %v201 = vunpack.c.l.b16 %v53
  %v202 = vunpack.c.l.b16 %v54
  %v203 = vunpack.c.l.b16 %v55
  %v204 = vunpack.c.l.b16 %v56
  %v205 = vunpack.c.l.b16 %v57
  %v206 = vunpack.c.l.b16 %v58
  %v207 = vunpack.c.l.b16 %v59
  %v208 = vunpack.c.l.b16 %v60
  %v209 = vunpack.c.l.b16 %v61
  %v210 = vunpack.c.l.b16 %v62
  %v211 = vunpack.c.l.b16 %v63
  %v212 = vunpack.c.l.b16 %v64
  %v213 = vunpack.c.l.b16 %v65
  %v214 = vunpack.c.l.b16 %v66
  %v215 = vunpack.c.l.b16 %v67
  %v216 = vunpack.c.l.b16 %v68
  %v217 = vunpack.c.l.b16 %v69
  %v218 = vunpack.c.l.b16 %v70
  %v219 = vunpack.c.l.b16 %v71
  %v220 = vunpack.c.l.b16 %v72
  %v221 = vunpack.c.l.b16 %v73
  %v222 = vunpack.c.l.b16 %v74
  %v223 = vunpack.c.l.b16 %v75
  %v224 = vunpack.c.l.b16 %v76
  %v225 = vunpack.c.l.b16 %v77
  %v226 = vunpack.c.l.b16 %v78
  %v227 = vunpack.c.l.b16 %v79
  %v228 = vunpack.c.l.b16 %v80
  %v229 = vunpack.c.l.b16 %v81
  %v230 = vpack.c.b16 %v167, %v166
  %v231 = vpack.c.b16 %v169, %v168
  %v232 = vpack.c.b16 %v171, %v170
  %v233 = vpack.c.b16 %v173, %v172
  %v234 = vpack.c.b16 %v175, %v174
  %v235 = vpack.c.b16 %v177, %v176
  %v236 = vpack.c.b16 %v179, %v178
  %v237 = vpack.c.b16 %v181, %v180
  %v238 = vpack.c.b16 %v183, %v182
  %v239 = vpack.c.b16 %v185, %v184
  %v240 = vpack.c.b16 %v187, %v186
  %v241 = vpack.c.b16 %v189, %v188
  %v242 = vpack.c.b16 %v191, %v190
  %v243 = vpack.c.b16 %v193, %v192
  %v244 = vpack.c.b16 %v195, %v194
  %v245 = vpack.c.b16 %v197, %v196
  %v246 = vpack.c.b16 %v199, %v198
  %v247 = vpack.c.b16 %v201, %v200
  %v248 = vpack.c.b16 %v203, %v202
  %v249 = vpack.c.b16 %v205, %v204
  %v250 = vpack.c.b16 %v207, %v206
  %v251 = vpack.c.b16 %v209, %v208
  %v252 = vpack.c.b16 %v211, %v210
  %v253 = vpack.c.b16 %v213, %v212
  %v254 = vpack.c.b16 %v215, %v214
  %v255 = vpack.c.b16 %v217, %v216
  %v256 = vpack.c.b16 %v219, %v218
  %v257 = vpack.c.b16 %v221, %v220
  %v258 = vpack.c.b16 %v223, %v222
  %v259 = vpack.c.b16 %v225, %v224
  %v260 = vpack.c.b16 %v227, %v226
  %v261 = vpack.c.b16 %v229, %v228
  %294 = vmatprep.subr.bf16.mxu0 0
  %295 = vmatpush1.bf16.msra.mxu0 %v230
  %296 = vmatprep.subr.bf16.mxu0 0
  %297 = vmatpush1.bf16.msra.mxu0 %v231
  %298 = vmatprep.subr.bf16.mxu0 0
  %299 = vmatpush1.bf16.msra.mxu0 %v232
  %300 = vmatprep.subr.bf16.mxu0 0
  %301 = vmatpush1.bf16.msra.mxu0 %v233
  %302 = vmatprep.subr.bf16.mxu0 0
  %303 = vmatpush1.bf16.msra.mxu0 %v234
  %304 = vmatprep.subr.bf16.mxu0 0
  %305 = vmatpush1.bf16.msra.mxu0 %v235
  %306 = vmatprep.subr.bf16.mxu0 0
  %307 = vmatpush1.bf16.msra.mxu0 %v236
  %308 = vmatprep.subr.bf16.mxu0 0
  %309 = vmatpush1.bf16.msra.mxu0 %v237
  %310 = vmatprep.subr.bf16.mxu0 0
  %311 = vmatpush1.bf16.msra.mxu0 %v238
  %312 = vmatprep.subr.bf16.mxu0 0
  %313 = vmatpush1.bf16.msra.mxu0 %v239
  %314 = vmatprep.subr.bf16.mxu0 0
  %315 = vmatpush1.bf16.msra.mxu0 %v240
  %316 = vmatprep.subr.bf16.mxu0 0
  %317 = vmatpush1.bf16.msra.mxu0 %v241
  %318 = vmatprep.subr.bf16.mxu0 0
  %319 = vmatpush1.bf16.msra.mxu0 %v242
  %320 = vmatprep.subr.bf16.mxu0 0
  %321 = vmatpush1.bf16.msra.mxu0 %v243
  %322 = vmatprep.subr.bf16.mxu0 0
  %323 = vmatpush1.bf16.msra.mxu0 %v244
  %324 = vmatprep.subr.bf16.mxu0 0
  %325 = vmatpush1.bf16.msra.mxu0 %v245
  %326 = vmatprep.mubr.bf16.mxu0 %v95
  %327 = vmatmul.mubr.bf16.gmra.mrb[0].mxu0 %v94
  %v328 = vpop.f32.mrb[0].mxu0
  %v329 = vadd.f32 0.0, %v328
  %v330 = vpop.f32.mrb[0].mxu0
  %v331 = vpop.f32.mrb[0].mxu0
  %v332 = vadd.f32 0.0, %v331
  %v333 = vpop.f32.mrb[0].mxu0
  %334 = vdwg.mxu0
  %335 = vmatprep.subr.bf16.mxu0 0
  %336 = vmatpush1.bf16.msra.mxu0 %v246
  %337 = vmatprep.subr.bf16.mxu0 0
  %338 = vmatpush1.bf16.msra.mxu0 %v247
  %339 = vmatprep.subr.bf16.mxu0 0
  %340 = vmatpush1.bf16.msra.mxu0 %v248
  %341 = vmatprep.subr.bf16.mxu0 0
  %342 = vmatpush1.bf16.msra.mxu0 %v249
  %343 = vmatprep.subr.bf16.mxu0 0
  %344 = vmatpush1.bf16.msra.mxu0 %v250
  %345 = vmatprep.subr.bf16.mxu0 0
  %346 = vmatpush1.bf16.msra.mxu0 %v251
  %347 = vmatprep.subr.bf16.mxu0 0
  %348 = vmatpush1.bf16.msra.mxu0 %v252
  %349 = vmatprep.subr.bf16.mxu0 0
  %350 = vmatpush1.bf16.msra.mxu0 %v253
  %351 = vmatprep.subr.bf16.mxu0 0
  %352 = vmatpush1.bf16.msra.mxu0 %v254
  %353 = vmatprep.subr.bf16.mxu0 0
  %354 = vmatpush1.bf16.msra.mxu0 %v255
  %355 = vmatprep.subr.bf16.mxu0 0
  %356 = vmatpush1.bf16.msra.mxu0 %v256
  %357 = vmatprep.subr.bf16.mxu0 0
  %358 = vmatpush1.bf16.msra.mxu0 %v257
  %359 = vmatprep.subr.bf16.mxu0 0
  %360 = vmatpush1.bf16.msra.mxu0 %v258
  %361 = vmatprep.subr.bf16.mxu0 0
  %362 = vmatpush1.bf16.msra.mxu0 %v259
  %363 = vmatprep.subr.bf16.mxu0 0
  %364 = vmatpush1.bf16.msra.mxu0 %v260
  %365 = vmatprep.subr.bf16.mxu0 0
  %366 = vmatpush1.bf16.msra.mxu0 %v261
  %367 = vmatprep.mubr.bf16.mxu0 %v97
  %368 = vmatmul.mubr.bf16.gmra.mrb[0].mxu0 %v96
  %v369 = vpop.f32.mrb[0].mxu0
  %v370 = vadd.f32 %v329, %v369
  %v371 = vpop.f32.mrb[0].mxu0
  %v372 = vpop.f32.mrb[0].mxu0
  %v373 = vadd.f32 %v332, %v372
  %v374 = vpop.f32.mrb[0].mxu0
  %375 = vdwg.mxu0
  %v376 = vpack.c.bf16 %v373, %v370
  %v378 = vunpack.c.l.b16 %v376
  %v379 = vunpack.c.h.b16 %v376
  %v380 = vpack.c.b16 %v378, %v378
  %v381 = vpack.c.b16 %v379, %v379
  %384 = vst [vmem:[%s2] sm:$0xf] %v380
  %385 = vst [vmem:[%s2 + $0x4] sm:$0xf] %v381
  %v386 = vadd.f32 %v370, %v373
  %v387 = vrot.slane %v386, 4
  %v388 = vadd.f32 %v386, %v387
  %v389 = vrot.slane %v388, 2
  %v390 = vadd.f32 %v388, %v389
  %v391 = vrot.slane %v390, 1
  %v392 = vadd.f32 %v390, %v391
  %393 = vst [vmem:[%s3] sm:$0x1] %v392
  %v394 = vmul.f32 %v370, %v370
  %v395 = vmul.f32 %v373, %v373
  %v396 = vadd.f32 %v394, %v395
  %v397 = vrot.slane %v396, 4
  %v398 = vadd.f32 %v396, %v397
  %v399 = vrot.slane %v398, 2
  %v400 = vadd.f32 %v398, %v399
  %v401 = vrot.slane %v400, 1
  %v402 = vadd.f32 %v400, %v401
  %403 = vst [vmem:[%s3 + $0x1] sm:$0x1] %v402
  // Predicated region
  $region10: #{_lambda_.14} parent=0 // pred_check
    _
  $region11: #{_lambda_.14} parent=0 // pred_check_branch
    %405 = sbr.rel (0) target = $region13
  $region12: #{_lambda_.14} parent=0 // pred_region
    _
  $region13: #{_lambda_.14} parent=0 // pred_fallthru
    _
  // Predicated region
  $region14: #{_lambda_.14} parent=0 // pred_check
    _
  $region15: #{_lambda_.14} parent=0 // pred_check_branch
    %407 = sbr.rel (0) target = $region17
  $region16: #{_lambda_.14} parent=0 // pred_region
    _
  $region17: #{_lambda_.14} parent=0 // pred_fallthru
    _
  // Predicated region
  $region18: #{_lambda_.14} parent=0 // pred_check
    _
  $region19: #{_lambda_.14} parent=0 // pred_check_branch
    %409 = sbr.rel (0) target = $region21
  $region20: #{_lambda_.14} parent=0 // pred_region
    _
  $region21: #{_lambda_.14} parent=0 // pred_fallthru
    _
  // Predicated region
  $region22: #{_lambda_.14} parent=0 // pred_check
    _
  $region23: #{_lambda_.14} parent=0 // pred_check_branch
    %411 = sbr.rel (0) target = $region25
  $region24: #{_lambda_.14} parent=0 // pred_region
    _
  $region25: #{_lambda_.14} parent=0 // pred_fallthru
    _

</llo_original>
